<compile_context>
chip_gen: v5e
topology: v5e:2x2
jax: 0.10.0
libtpu: 0.0.40
codegen_flags: <defaults>
</compile_context>

<pallas_src>
import functools
import math

import jax
import jax.numpy as jnp
from jax.experimental import pallas as pl
from jax.experimental.pallas import tpu as pltpu

NEG_SLOPE = 0.2
VMEM_LIMIT = 32 * 1024 * 1024
_HIGHEST = jax.lax.Precision.HIGHEST


def _leaky(x):
    return jnp.where(x >= 0, x, NEG_SLOPE * x)


def _dot(a, b):
    return jnp.dot(a, b, precision=_HIGHEST, preferred_element_type=jnp.float32)


# ----------------------------------------------------------------------------
# In-kernel building blocks.  All values are (C, L): channels on sublanes,
# time on lanes (lane-dense for the later / larger stages and the HBM store).
# ----------------------------------------------------------------------------
def _resblock(x, w1p, b1, w2s, b2s, d):
    """leaky -> ReplicationPad(d) -> dilated 3-tap conv -> leaky -> 1x1 conv,
    plus 1x1 skip conv on the un-activated input, all fused."""
    C, L = x.shape
    a = _leaky(x)
    # Replication pad folded into clamped shifted slices (leaky commutes with
    # replication padding, so activating first is equivalent).
    left = jnp.concatenate(
        [jnp.broadcast_to(a[:, 0:1], (C, d)), a[:, :L - d]], axis=1)     # tap k=0
    right = jnp.concatenate(
        [a[:, d:], jnp.broadcast_to(a[:, L - 1:L], (C, d))], axis=1)     # tap k=2
    taps = jnp.concatenate([left, a, right], axis=0)                     # (3C, L)
    h = _leaky(_dot(w1p, taps) + b1)                                     # (C, L)
    hx = jnp.concatenate([h, x], axis=0)                                 # (2C, L)
    return _dot(w2s, hx) + b2s                                           # conv2 + skip


def _upsample(x, r, wup, bup, f):
    """leaky(x) -> cat([x, r], channels) -> ConvTranspose1d(2C -> Cout,
    K=2f, stride=f, padding=f//2), decomposed into f output phases."""
    Ch, L = x.shape
    cout = bup.shape[0]
    inp = jnp.concatenate([_leaky(x), r], axis=0)                        # (2C, L)
    zero = jnp.zeros((2 * Ch, 1), jnp.float32)
    sm1 = jnp.concatenate([zero, inp[:, :L - 1]], axis=1)                # s = q-1
    sp1 = jnp.concatenate([inp[:, 1:], zero], axis=1)                    # s = q+1
    inp6 = jnp.concatenate([sm1, inp, sp1], axis=0)                      # (6C, L)
    ph = _dot(wup, inp6)                  # (f*cout, L): ph[r*cout+o, q] = y[o, q*f+r]
    # Interleave the f phases back onto the time (lane) axis with a 0/1
    # permutation matmul built from an iota -- avoids reshape/transpose inside
    # the kernel.
    packed = jnp.concatenate(
        [ph[rr * cout:(rr + 1) * cout, :] for rr in range(f)], axis=1)   # (cout, f*L)
    perm = jnp.concatenate(
        [f * jax.lax.broadcasted_iota(jnp.int32, (L, 1), 0) + rr for rr in range(f)],
        axis=0)                                                          # (f*L, 1)
    lane = jax.lax.broadcasted_iota(jnp.int32, (f * L, f * L), 1)
    sel = (lane == perm).astype(jnp.float32)
    return _dot(packed, sel) + bup                                       # (cout, f*L)


def _decoder_kernel(*refs, cfg):
    """Whole decoder for one batch element.  refs:
    [x, residual(stage 0..S-1), (wres, bres, wup, bup) x S, out]."""
    S = len(cfg)
    x_ref = refs[0]
    res_refs = refs[1:1 + S]
    w_refs = refs[1 + S:1 + 5 * S]
    o_ref = refs[1 + 5 * S]

    x = x_ref[0]                                          # (C0, L0)
    for si, st in enumerate(cfg):
        C, f = st["C"], st["f"]
        wres = w_refs[4 * si][...]                        # (nb*C, 5C)
        bres = w_refs[4 * si + 1][...]                    # (nb*C, 2)
        wup = w_refs[4 * si + 2][...]                     # (f*cout, 6C)
        bup = w_refs[4 * si + 3][...]                     # (cout, 1)
        for j, d in enumerate(st["dils"]):
            rs = slice(j * C, (j + 1) * C)
            x = _resblock(x, wres[rs, 0:3 * C], bres[rs, 0:1],
                          wres[rs, 3 * C:5 * C], bres[rs, 1:2], d)
        x = _upsample(x, res_refs[si][0], wup, bup, f)
    o_ref[0] = x.astype(o_ref.dtype)


# ----------------------------------------------------------------------------
# Forward wrapper: one pallas_call, NCW in / NCW out, no transposes, no pads.
# ----------------------------------------------------------------------------
def decoder_forward(params, x_ncw, residuals_ncw):
    stages = params["stages"]
    S = len(stages)
    assert len(residuals_ncw) == S
    N, C0, L0 = x_ncw.shape
    res_in = list(reversed(residuals_ncw))    # residuals.pop() order -> stage order

    L = L0
    for si, st in enumerate(stages):
        assert res_in[si].shape == (N, st["C"], L), (si, res_in[si].shape)
        assert max(st["dils"]) < L, "dilation must be < sequence length"
        L *= st["f"]
    cout_last = stages[-1]["cout"]

    cfg = tuple(dict(C=st["C"], f=st["f"], cout=st["cout"], dils=st["dils"])
                for st in stages)

    operands = [x_ncw] + res_in
    in_specs = [pl.BlockSpec((1, C0, L0), lambda n: (n, 0, 0))]
    for r in res_in:
        in_specs.append(pl.BlockSpec((1,) + r.shape[1:], lambda n: (n, 0, 0)))
    for st in stages:
        for name in ("wres", "bres", "wup", "bup"):
            w = st[name]
            operands.append(w)
            in_specs.append(pl.BlockSpec(w.shape, lambda n: (0, 0)))

    return pl.pallas_call(
        functools.partial(_decoder_kernel, cfg=cfg),
        out_shape=jax.ShapeDtypeStruct((N, cout_last, L), x_ncw.dtype),
        grid=(N,),
        in_specs=in_specs,
        out_specs=pl.BlockSpec((1, cout_last, L), lambda n: (n, 0, 0)),
        compiler_params=pltpu.CompilerParams(
            dimension_semantics=("parallel",),
            vmem_limit_bytes=VMEM_LIMIT),
    )(*operands)


# ----------------------------------------------------------------------------
# Parameter construction + kernel-friendly packing
# ----------------------------------------------------------------------------
def pack_stage(raw_blocks, dils, wt, bt, f, cout, C):
    wrows, brows = [], []
    for blk in raw_blocks:
        w1p = jnp.concatenate([blk["w1"][:, :, k] for k in range(3)], axis=1)   # (C,3C)
        w2s = jnp.concatenate([blk["w2"][:, :, 0], blk["ws"][:, :, 0]], axis=1)  # (C,2C)
        wrows.append(jnp.concatenate([w1p, w2s], axis=1))                        # (C,5C)
        brows.append(jnp.stack([blk["b1"], blk["b2"] + blk["bs"]], axis=1))      # (C,2)
    wres = jnp.concatenate(wrows, axis=0)                  # (nb*C, 5C)
    bres = jnp.concatenate(brows, axis=0)                  # (nb*C, 2)

    p, K, cin2 = f // 2, 2 * f, 2 * C
    rows = []
    for r in range(f):                                     # output phase r
        cols = []
        for m in (-1, 0, 1):                               # input offset s = q + m
            k = r + p - m * f                              # kernel tap used, if valid
            cols.append(wt[:, :, k].T if 0 <= k < K
                        else jnp.zeros((cout, cin2), wt.dtype))
        rows.append(jnp.concatenate(cols, axis=1))         # (cout, 6C)
    wup = jnp.concatenate(rows, axis=0)                    # (f*cout, 6C)
    bup = bt.reshape(cout, 1)
    return dict(C=C, f=f, cout=cout, dils=tuple(dils),
                wres=wres, bres=bres, wup=wup, bup=bup,
                raw=dict(blocks=raw_blocks, wt=wt, bt=bt))


def build_decoder_params(key, channels, factors, blocks):
    keys = iter(jax.random.split(key, 4096))

    def uinit(shape, fan_in):
        bound = 1.0 / math.sqrt(fan_in)
        return jax.random.uniform(next(keys), shape, jnp.float32, -bound, bound)

    stages = []
    for i in range(1, len(channels)):
        C, cout, f = channels[i - 1], channels[i], factors[i - 1]
        assert f % 2 == 0, "only even upsample factors supported"
        raw_blocks, dils = [], []
        for _ in range(blocks[i - 1]):                     # blocks[i-1] ResStacks
            for j in range(4):                             # ResStack: 4 ResBlocks
                d = 3 ** j
                dils.append(d)
                raw_blocks.append(dict(
                    w1=uinit((C, C, 3), C * 3), b1=uinit((C,), C * 3),
                    w2=uinit((C, C, 1), C), b2=uinit((C,), C),
                    ws=uinit((C, C, 1), C), bs=uinit((C,), C)))
        wt = uinit((2 * C, cout, 2 * f), 2 * C * 2 * f)    # torch ConvT1d layout
        bt = uinit((cout,), 2 * C * 2 * f)
        stages.append(pack_stage(raw_blocks, dils, wt, bt, f, cout, C))
    return dict(stages=stages)


# ----------------------------------------------------------------------------
# Pure-JAX reference (mirrors PyTorch semantics exactly) for validation
# ----------------------------------------------------------------------------
def _ref_conv1d(x, w, b, dilation=1):
    out = jax.lax.conv_general_dilated(
        x, w, window_strides=(1,), padding=[(0, 0)],
        rhs_dilation=(dilation,), dimension_numbers=("NCH", "OIH", "NCH"),
        precision=_HIGHEST)
    return out + b[None, :, None]


def _ref_conv_transpose1d(x, w, b, stride, padding):
    K = w.shape[2]
    w_oik = jnp.transpose(jnp.flip(w, axis=2), (1, 0, 2))
    out = jax.lax.conv_general_dilated(
        x, w_oik, window_strides=(1,),
        padding=[(K - 1 - padding, K - 1 - padding)],
        lhs_dilation=(stride,), dimension_numbers=("NCH", "OIH", "NCH"),
        precision=_HIGHEST)
    return out + b[None, :, None]


def ref_decoder(params, x, residuals):
    res = list(residuals)
    for st in params["stages"]:
        for blk, d in zip(st["raw"]["blocks"], st["dils"]):
            h = _leaky(x)
            h = jnp.pad(h, ((0, 0), (0, 0), (d, d)), mode="edge")
            h = _ref_conv1d(h, blk["w1"], blk["b1"], dilation=d)
            h = _leaky(h)
            h = _ref_conv1d(h, blk["w2"], blk["b2"])
            x = h + _ref_conv1d(x, blk["ws"], blk["bs"])
        x = _leaky(x)
        x = jnp.concatenate([x, res.pop()], axis=1)
        x = _ref_conv_transpose1d(x, st["raw"]["wt"], st["raw"]["bt"],
                                  stride=st["f"], padding=st["f"] // 2)
    return x


# ----------------------------------------------------------------------------
if __name__ == "__main__":
    # Small Decoder config mirroring a [16, 8, 4] channel schedule.
    channels = [16, 8, 4]
    factors = [2, 2]
    blocks = [1, 1]

    key = jax.random.PRNGKey(0)
    kp, kx, kr1, kr2 = jax.random.split(key, 4)
    params = build_decoder_params(kp, channels, factors, blocks)

    N, L0 = 2, 32
    x = jax.random.normal(kx, (N, channels[0], L0), jnp.float32)
    # residuals.pop() order: stage 1 consumes the LAST entry (16ch @ L=32),
    # stage 2 the first (8ch @ L=64) -- mirrors the matching encoder's pushes.
    residuals = [
        jax.random.normal(kr2, (N, channels[1], L0 * factors[0]), jnp.float32),
        jax.random.normal(kr1, (N, channels[0], L0), jnp.float32),
    ]

    fwd = jax.jit(lambda xx, rr: decoder_forward(params, xx, rr))
    out = jax.block_until_ready(fwd(x, residuals))

    # Lengths 32 -> 64 -> 128, channels 16 -> 8 -> 4.
    assert out.shape == (N, channels[-1], L0 * factors[0] * factors[1]), out.shape

    # Numerical check vs. the pure-JAX f32 reference (f32 dots -> tight tol).
    ref = ref_decoder(params, x, residuals)
    err = float(jnp.max(jnp.abs(out - ref)))
    scale = float(jnp.max(jnp.abs(ref)))
    tol = 2e-4 * scale + 1e-5
    assert err <= tol, (err, scale, tol)

    print("KERNEL_OK")
</pallas_src>

<mosaic_0001>
module attributes {stable_mosaic.version = 11 : i64} {
  func.func @_decoder_kernel(%arg0: i32, %arg1: memref<1x16x32xf32, #tpu.memory_space<vmem>>, %arg2: memref<1x16x32xf32, #tpu.memory_space<vmem>>, %arg3: memref<1x8x64xf32, #tpu.memory_space<vmem>>, %arg4: memref<64x80xf32, #tpu.memory_space<vmem>>, %arg5: memref<64x2xf32, #tpu.memory_space<vmem>>, %arg6: memref<16x96xf32, #tpu.memory_space<vmem>>, %arg7: memref<8x1xf32, #tpu.memory_space<vmem>>, %arg8: memref<32x40xf32, #tpu.memory_space<vmem>>, %arg9: memref<32x2xf32, #tpu.memory_space<vmem>>, %arg10: memref<8x48xf32, #tpu.memory_space<vmem>>, %arg11: memref<4x1xf32, #tpu.memory_space<vmem>>, %arg12: memref<1x4x128xf32, #tpu.memory_space<vmem>>) attributes {dimension_semantics = [#tpu.dimension_semantics<parallel>], iteration_bounds = array<i64: 2>, scalar_prefetch = 0 : i64, scratch_operands = 0 : i64, tpu.core_type = #tpu.core_type<tc>, window_params = [{transform_indices = @transform_0, window_bounds = array<i64: 1, 16, 32>}, {transform_indices = @transform_1, window_bounds = array<i64: 1, 16, 32>}, {transform_indices = @transform_2, window_bounds = array<i64: 1, 8, 64>}, {pipeline_mode = #tpu.pipeline_mode<synchronous>, transform_indices = @transform_3, window_bounds = array<i64: 64, 80>}, {pipeline_mode = #tpu.pipeline_mode<synchronous>, transform_indices = @transform_4, window_bounds = array<i64: 64, 2>}, {pipeline_mode = #tpu.pipeline_mode<synchronous>, transform_indices = @transform_5, window_bounds = array<i64: 16, 96>}, {pipeline_mode = #tpu.pipeline_mode<synchronous>, transform_indices = @transform_6, window_bounds = array<i64: 8, 1>}, {pipeline_mode = #tpu.pipeline_mode<synchronous>, transform_indices = @transform_7, window_bounds = array<i64: 32, 40>}, {pipeline_mode = #tpu.pipeline_mode<synchronous>, transform_indices = @transform_8, window_bounds = array<i64: 32, 2>}, {pipeline_mode = #tpu.pipeline_mode<synchronous>, transform_indices = @transform_9, window_bounds = array<i64: 8, 48>}, {pipeline_mode = #tpu.pipeline_mode<synchronous>, transform_indices = @transform_10, window_bounds = array<i64: 4, 1>}, {transform_indices = @transform_11, window_bounds = array<i64: 1, 4, 128>}]} {
    %c0 = arith.constant 0 : index
    %c0_0 = arith.constant 0 : index
    %c0_1 = arith.constant 0 : index
    %0 = vector.load %arg1[%c0, %c0_0, %c0_1] : memref<1x16x32xf32, #tpu.memory_space<vmem>>, vector<1x16x32xf32>
    %1 = vector.shape_cast %0 : vector<1x16x32xf32> to vector<16x32xf32>
    %c0_2 = arith.constant 0 : index
    %c0_3 = arith.constant 0 : index
    %2 = vector.load %arg4[%c0_2, %c0_3] : memref<64x80xf32, #tpu.memory_space<vmem>>, vector<64x80xf32>
    %c0_4 = arith.constant 0 : index
    %c0_5 = arith.constant 0 : index
    %3 = vector.load %arg5[%c0_4, %c0_5] : memref<64x2xf32, #tpu.memory_space<vmem>>, vector<64x2xf32>
    %c0_6 = arith.constant 0 : index
    %c0_7 = arith.constant 0 : index
    %4 = vector.load %arg6[%c0_6, %c0_7] : memref<16x96xf32, #tpu.memory_space<vmem>>, vector<16x96xf32>
    %c0_8 = arith.constant 0 : index
    %c0_9 = arith.constant 0 : index
    %5 = vector.load %arg7[%c0_8, %c0_9] : memref<8x1xf32, #tpu.memory_space<vmem>>, vector<8x1xf32>
    %6 = vector.extract_strided_slice %2 {offsets = [0, 0], sizes = [16, 48], strides = [1, 1]} : vector<64x80xf32> to vector<16x48xf32>
    %7 = vector.extract_strided_slice %3 {offsets = [0, 0], sizes = [16, 1], strides = [1, 1]} : vector<64x2xf32> to vector<16x1xf32>
    %8 = vector.extract_strided_slice %2 {offsets = [0, 48], sizes = [16, 32], strides = [1, 1]} : vector<64x80xf32> to vector<16x32xf32>
    %9 = vector.extract_strided_slice %3 {offsets = [0, 1], sizes = [16, 1], strides = [1, 1]} : vector<64x2xf32> to vector<16x1xf32>
    %cst = arith.constant 0.000000e+00 : f32
    %10 = vector.broadcast %cst : f32 to vector<16x32xf32>
    %11 = arith.cmpf oge, %1, %10 : vector<16x32xf32>
    %cst_10 = arith.constant 2.000000e-01 : f32
    %12 = vector.broadcast %cst_10 : f32 to vector<16x32xf32>
    %13 = arith.mulf %12, %1 : vector<16x32xf32>
    %14 = arith.select %11, %1, %13 : vector<16x32xi1>, vector<16x32xf32>
    %15 = vector.extract_strided_slice %14 {offsets = [0, 0], sizes = [16, 1], strides = [1, 1]} : vector<16x32xf32> to vector<16x1xf32>
    %16 = vector.extract_strided_slice %14 {offsets = [0, 0], sizes = [16, 31], strides = [1, 1]} : vector<16x32xf32> to vector<16x31xf32>
    %17 = tpu.concatenate %15, %16 in 1 : vector<16x1xf32>, vector<16x31xf32> -> vector<16x32xf32>
    %18 = vector.extract_strided_slice %14 {offsets = [0, 1], sizes = [16, 31], strides = [1, 1]} : vector<16x32xf32> to vector<16x31xf32>
    %19 = vector.extract_strided_slice %14 {offsets = [0, 31], sizes = [16, 1], strides = [1, 1]} : vector<16x32xf32> to vector<16x1xf32>
    %20 = tpu.concatenate %18, %19 in 1 : vector<16x31xf32>, vector<16x1xf32> -> vector<16x32xf32>
    %21 = tpu.concatenate %17, %14, %20 in 0 : vector<16x32xf32>, vector<16x32xf32>, vector<16x32xf32> -> vector<48x32xf32>
    %cst_11 = arith.constant dense<0.000000e+00> : vector<16x32xf32>
    %22 = tpu.matmul %6, %21, %cst_11 {dimension_numbers = #tpu.dot_dimension_numbers<[1], [0], [0], [1], [0, 0, 1, 1], [], []>, precision = #tpu.contract_precision<fp32>} : vector<16x48xf32>, vector<48x32xf32>, vector<16x32xf32> -> vector<16x32xf32>
    %23 = vector.broadcast %7 : vector<16x1xf32> to vector<16x32xf32>
    %24 = arith.addf %22, %23 : vector<16x32xf32>
    %cst_12 = arith.constant 0.000000e+00 : f32
    %25 = vector.broadcast %cst_12 : f32 to vector<16x32xf32>
    %26 = arith.cmpf oge, %24, %25 : vector<16x32xf32>
    %cst_13 = arith.constant 2.000000e-01 : f32
    %27 = vector.broadcast %cst_13 : f32 to vector<16x32xf32>
    %28 = arith.mulf %27, %24 : vector<16x32xf32>
    %29 = arith.select %26, %24, %28 : vector<16x32xi1>, vector<16x32xf32>
    %30 = tpu.concatenate %29, %1 in 0 : vector<16x32xf32>, vector<16x32xf32> -> vector<32x32xf32>
    %cst_14 = arith.constant dense<0.000000e+00> : vector<16x32xf32>
    %31 = tpu.matmul %8, %30, %cst_14 {dimension_numbers = #tpu.dot_dimension_numbers<[1], [0], [0], [1], [0, 0, 1, 1], [], []>, precision = #tpu.contract_precision<fp32>} : vector<16x32xf32>, vector<32x32xf32>, vector<16x32xf32> -> vector<16x32xf32>
    %32 = vector.broadcast %9 : vector<16x1xf32> to vector<16x32xf32>
    %33 = arith.addf %31, %32 : vector<16x32xf32>
    %34 = vector.extract_strided_slice %2 {offsets = [16, 0], sizes = [16, 48], strides = [1, 1]} : vector<64x80xf32> to vector<16x48xf32>
    %35 = vector.extract_strided_slice %3 {offsets = [16, 0], sizes = [16, 1], strides = [1, 1]} : vector<64x2xf32> to vector<16x1xf32>
    %36 = vector.extract_strided_slice %2 {offsets = [16, 48], sizes = [16, 32], strides = [1, 1]} : vector<64x80xf32> to vector<16x32xf32>
    %37 = vector.extract_strided_slice %3 {offsets = [16, 1], sizes = [16, 1], strides = [1, 1]} : vector<64x2xf32> to vector<16x1xf32>
    %cst_15 = arith.constant 0.000000e+00 : f32
    %38 = vector.broadcast %cst_15 : f32 to vector<16x32xf32>
    %39 = arith.cmpf oge, %33, %38 : vector<16x32xf32>
    %cst_16 = arith.constant 2.000000e-01 : f32
    %40 = vector.broadcast %cst_16 : f32 to vector<16x32xf32>
    %41 = arith.mulf %40, %33 : vector<16x32xf32>
    %42 = arith.select %39, %33, %41 : vector<16x32xi1>, vector<16x32xf32>
    %43 = vector.extract_strided_slice %42 {offsets = [0, 0], sizes = [16, 1], strides = [1, 1]} : vector<16x32xf32> to vector<16x1xf32>
    %44 = vector.shape_cast %43 : vector<16x1xf32> to vector<16x1xf32>
    %45 = vector.broadcast %44 : vector<16x1xf32> to vector<16x3xf32>
    %46 = vector.extract_strided_slice %42 {offsets = [0, 0], sizes = [16, 29], strides = [1, 1]} : vector<16x32xf32> to vector<16x29xf32>
    %47 = tpu.concatenate %45, %46 in 1 : vector<16x3xf32>, vector<16x29xf32> -> vector<16x32xf32>
    %48 = vector.extract_strided_slice %42 {offsets = [0, 3], sizes = [16, 29], strides = [1, 1]} : vector<16x32xf32> to vector<16x29xf32>
    %49 = vector.extract_strided_slice %42 {offsets = [0, 31], sizes = [16, 1], strides = [1, 1]} : vector<16x32xf32> to vector<16x1xf32>
    %50 = vector.shape_cast %49 : vector<16x1xf32> to vector<16x1xf32>
    %51 = vector.broadcast %50 : vector<16x1xf32> to vector<16x3xf32>
    %52 = tpu.concatenate %48, %51 in 1 : vector<16x29xf32>, vector<16x3xf32> -> vector<16x32xf32>
    %53 = tpu.concatenate %47, %42, %52 in 0 : vector<16x32xf32>, vector<16x32xf32>, vector<16x32xf32> -> vector<48x32xf32>
    %cst_17 = arith.constant dense<0.000000e+00> : vector<16x32xf32>
    %54 = tpu.matmul %34, %53, %cst_17 {dimension_numbers = #tpu.dot_dimension_numbers<[1], [0], [0], [1], [0, 0, 1, 1], [], []>, precision = #tpu.contract_precision<fp32>} : vector<16x48xf32>, vector<48x32xf32>, vector<16x32xf32> -> vector<16x32xf32>
    %55 = vector.broadcast %35 : vector<16x1xf32> to vector<16x32xf32>
    %56 = arith.addf %54, %55 : vector<16x32xf32>
    %cst_18 = arith.constant 0.000000e+00 : f32
    %57 = vector.broadcast %cst_18 : f32 to vector<16x32xf32>
    %58 = arith.cmpf oge, %56, %57 : vector<16x32xf32>
    %cst_19 = arith.constant 2.000000e-01 : f32
    %59 = vector.broadcast %cst_19 : f32 to vector<16x32xf32>
    %60 = arith.mulf %59, %56 : vector<16x32xf32>
    %61 = arith.select %58, %56, %60 : vector<16x32xi1>, vector<16x32xf32>
    %62 = tpu.concatenate %61, %33 in 0 : vector<16x32xf32>, vector<16x32xf32> -> vector<32x32xf32>
    %cst_20 = arith.constant dense<0.000000e+00> : vector<16x32xf32>
    %63 = tpu.matmul %36, %62, %cst_20 {dimension_numbers = #tpu.dot_dimension_numbers<[1], [0], [0], [1], [0, 0, 1, 1], [], []>, precision = #tpu.contract_precision<fp32>} : vector<16x32xf32>, vector<32x32xf32>, vector<16x32xf32> -> vector<16x32xf32>
    %64 = vector.broadcast %37 : vector<16x1xf32> to vector<16x32xf32>
    %65 = arith.addf %63, %64 : vector<16x32xf32>
    %66 = vector.extract_strided_slice %2 {offsets = [32, 0], sizes = [16, 48], strides = [1, 1]} : vector<64x80xf32> to vector<16x48xf32>
    %67 = vector.extract_strided_slice %3 {offsets = [32, 0], sizes = [16, 1], strides = [1, 1]} : vector<64x2xf32> to vector<16x1xf32>
    %68 = vector.extract_strided_slice %2 {offsets = [32, 48], sizes = [16, 32], strides = [1, 1]} : vector<64x80xf32> to vector<16x32xf32>
    %69 = vector.extract_strided_slice %3 {offsets = [32, 1], sizes = [16, 1], strides = [1, 1]} : vector<64x2xf32> to vector<16x1xf32>
    %cst_21 = arith.constant 0.000000e+00 : f32
    %70 = vector.broadcast %cst_21 : f32 to vector<16x32xf32>
    %71 = arith.cmpf oge, %65, %70 : vector<16x32xf32>
    %cst_22 = arith.constant 2.000000e-01 : f32
    %72 = vector.broadcast %cst_22 : f32 to vector<16x32xf32>
    %73 = arith.mulf %72, %65 : vector<16x32xf32>
    %74 = arith.select %71, %65, %73 : vector<16x32xi1>, vector<16x32xf32>
    %75 = vector.extract_strided_slice %74 {offsets = [0, 0], sizes = [16, 1], strides = [1, 1]} : vector<16x32xf32> to vector<16x1xf32>
    %76 = vector.shape_cast %75 : vector<16x1xf32> to vector<16x1xf32>
    %77 = vector.broadcast %76 : vector<16x1xf32> to vector<16x9xf32>
    %78 = vector.extract_strided_slice %74 {offsets = [0, 0], sizes = [16, 23], strides = [1, 1]} : vector<16x32xf32> to vector<16x23xf32>
    %79 = tpu.concatenate %77, %78 in 1 : vector<16x9xf32>, vector<16x23xf32> -> vector<16x32xf32>
    %80 = vector.extract_strided_slice %74 {offsets = [0, 9], sizes = [16, 23], strides = [1, 1]} : vector<16x32xf32> to vector<16x23xf32>
    %81 = vector.extract_strided_slice %74 {offsets = [0, 31], sizes = [16, 1], strides = [1, 1]} : vector<16x32xf32> to vector<16x1xf32>
    %82 = vector.shape_cast %81 : vector<16x1xf32> to vector<16x1xf32>
    %83 = vector.broadcast %82 : vector<16x1xf32> to vector<16x9xf32>
    %84 = tpu.concatenate %80, %83 in 1 : vector<16x23xf32>, vector<16x9xf32> -> vector<16x32xf32>
    %85 = tpu.concatenate %79, %74, %84 in 0 : vector<16x32xf32>, vector<16x32xf32>, vector<16x32xf32> -> vector<48x32xf32>
    %cst_23 = arith.constant dense<0.000000e+00> : vector<16x32xf32>
    %86 = tpu.matmul %66, %85, %cst_23 {dimension_numbers = #tpu.dot_dimension_numbers<[1], [0], [0], [1], [0, 0, 1, 1], [], []>, precision = #tpu.contract_precision<fp32>} : vector<16x48xf32>, vector<48x32xf32>, vector<16x32xf32> -> vector<16x32xf32>
    %87 = vector.broadcast %67 : vector<16x1xf32> to vector<16x32xf32>
    %88 = arith.addf %86, %87 : vector<16x32xf32>
    %cst_24 = arith.constant 0.000000e+00 : f32
    %89 = vector.broadcast %cst_24 : f32 to vector<16x32xf32>
    %90 = arith.cmpf oge, %88, %89 : vector<16x32xf32>
    %cst_25 = arith.constant 2.000000e-01 : f32
    %91 = vector.broadcast %cst_25 : f32 to vector<16x32xf32>
    %92 = arith.mulf %91, %88 : vector<16x32xf32>
    %93 = arith.select %90, %88, %92 : vector<16x32xi1>, vector<16x32xf32>
    %94 = tpu.concatenate %93, %65 in 0 : vector<16x32xf32>, vector<16x32xf32> -> vector<32x32xf32>
    %cst_26 = arith.constant dense<0.000000e+00> : vector<16x32xf32>
    %95 = tpu.matmul %68, %94, %cst_26 {dimension_numbers = #tpu.dot_dimension_numbers<[1], [0], [0], [1], [0, 0, 1, 1], [], []>, precision = #tpu.contract_precision<fp32>} : vector<16x32xf32>, vector<32x32xf32>, vector<16x32xf32> -> vector<16x32xf32>
    %96 = vector.broadcast %69 : vector<16x1xf32> to vector<16x32xf32>
    %97 = arith.addf %95, %96 : vector<16x32xf32>
    %98 = vector.extract_strided_slice %2 {offsets = [48, 0], sizes = [16, 48], strides = [1, 1]} : vector<64x80xf32> to vector<16x48xf32>
    %99 = vector.extract_strided_slice %3 {offsets = [48, 0], sizes = [16, 1], strides = [1, 1]} : vector<64x2xf32> to vector<16x1xf32>
    %100 = vector.extract_strided_slice %2 {offsets = [48, 48], sizes = [16, 32], strides = [1, 1]} : vector<64x80xf32> to vector<16x32xf32>
    %101 = vector.extract_strided_slice %3 {offsets = [48, 1], sizes = [16, 1], strides = [1, 1]} : vector<64x2xf32> to vector<16x1xf32>
    %cst_27 = arith.constant 0.000000e+00 : f32
    %102 = vector.broadcast %cst_27 : f32 to vector<16x32xf32>
    %103 = arith.cmpf oge, %97, %102 : vector<16x32xf32>
    %cst_28 = arith.constant 2.000000e-01 : f32
    %104 = vector.broadcast %cst_28 : f32 to vector<16x32xf32>
    %105 = arith.mulf %104, %97 : vector<16x32xf32>
    %106 = arith.select %103, %97, %105 : vector<16x32xi1>, vector<16x32xf32>
    %107 = vector.extract_strided_slice %106 {offsets = [0, 0], sizes = [16, 1], strides = [1, 1]} : vector<16x32xf32> to vector<16x1xf32>
    %108 = vector.shape_cast %107 : vector<16x1xf32> to vector<16x1xf32>
    %109 = vector.broadcast %108 : vector<16x1xf32> to vector<16x27xf32>
    %110 = vector.extract_strided_slice %106 {offsets = [0, 0], sizes = [16, 5], strides = [1, 1]} : vector<16x32xf32> to vector<16x5xf32>
    %111 = tpu.concatenate %109, %110 in 1 : vector<16x27xf32>, vector<16x5xf32> -> vector<16x32xf32>
    %112 = vector.extract_strided_slice %106 {offsets = [0, 27], sizes = [16, 5], strides = [1, 1]} : vector<16x32xf32> to vector<16x5xf32>
    %113 = vector.extract_strided_slice %106 {offsets = [0, 31], sizes = [16, 1], strides = [1, 1]} : vector<16x32xf32> to vector<16x1xf32>
    %114 = vector.shape_cast %113 : vector<16x1xf32> to vector<16x1xf32>
    %115 = vector.broadcast %114 : vector<16x1xf32> to vector<16x27xf32>
    %116 = tpu.concatenate %112, %115 in 1 : vector<16x5xf32>, vector<16x27xf32> -> vector<16x32xf32>
    %117 = tpu.concatenate %111, %106, %116 in 0 : vector<16x32xf32>, vector<16x32xf32>, vector<16x32xf32> -> vector<48x32xf32>
    %cst_29 = arith.constant dense<0.000000e+00> : vector<16x32xf32>
    %118 = tpu.matmul %98, %117, %cst_29 {dimension_numbers = #tpu.dot_dimension_numbers<[1], [0], [0], [1], [0, 0, 1, 1], [], []>, precision = #tpu.contract_precision<fp32>} : vector<16x48xf32>, vector<48x32xf32>, vector<16x32xf32> -> vector<16x32xf32>
    %119 = vector.broadcast %99 : vector<16x1xf32> to vector<16x32xf32>
    %120 = arith.addf %118, %119 : vector<16x32xf32>
    %cst_30 = arith.constant 0.000000e+00 : f32
    %121 = vector.broadcast %cst_30 : f32 to vector<16x32xf32>
    %122 = arith.cmpf oge, %120, %121 : vector<16x32xf32>
    %cst_31 = arith.constant 2.000000e-01 : f32
    %123 = vector.broadcast %cst_31 : f32 to vector<16x32xf32>
    %124 = arith.mulf %123, %120 : vector<16x32xf32>
    %125 = arith.select %122, %120, %124 : vector<16x32xi1>, vector<16x32xf32>
    %126 = tpu.concatenate %125, %97 in 0 : vector<16x32xf32>, vector<16x32xf32> -> vector<32x32xf32>
    %cst_32 = arith.constant dense<0.000000e+00> : vector<16x32xf32>
    %127 = tpu.matmul %100, %126, %cst_32 {dimension_numbers = #tpu.dot_dimension_numbers<[1], [0], [0], [1], [0, 0, 1, 1], [], []>, precision = #tpu.contract_precision<fp32>} : vector<16x32xf32>, vector<32x32xf32>, vector<16x32xf32> -> vector<16x32xf32>
    %128 = vector.broadcast %101 : vector<16x1xf32> to vector<16x32xf32>
    %129 = arith.addf %127, %128 : vector<16x32xf32>
    %c0_33 = arith.constant 0 : index
    %c0_34 = arith.constant 0 : index
    %c0_35 = arith.constant 0 : index
    %130 = vector.load %arg2[%c0_33, %c0_34, %c0_35] : memref<1x16x32xf32, #tpu.memory_space<vmem>>, vector<1x16x32xf32>
    %131 = vector.shape_cast %130 : vector<1x16x32xf32> to vector<16x32xf32>
    %cst_36 = arith.constant 0.000000e+00 : f32
    %132 = vector.broadcast %cst_36 : f32 to vector<16x32xf32>
    %133 = arith.cmpf oge, %129, %132 : vector<16x32xf32>
    %cst_37 = arith.constant 2.000000e-01 : f32
    %134 = vector.broadcast %cst_37 : f32 to vector<16x32xf32>
    %135 = arith.mulf %134, %129 : vector<16x32xf32>
    %136 = arith.select %133, %129, %135 : vector<16x32xi1>, vector<16x32xf32>
    %137 = tpu.concatenate %136, %131 in 0 : vector<16x32xf32>, vector<16x32xf32> -> vector<32x32xf32>
    %cst_38 = arith.constant 0.000000e+00 : f32
    %138 = vector.broadcast %cst_38 : f32 to vector<32x1xf32>
    %139 = vector.extract_strided_slice %137 {offsets = [0, 0], sizes = [32, 31], strides = [1, 1]} : vector<32x32xf32> to vector<32x31xf32>
    %140 = tpu.concatenate %138, %139 in 1 : vector<32x1xf32>, vector<32x31xf32> -> vector<32x32xf32>
    %141 = vector.extract_strided_slice %137 {offsets = [0, 1], sizes = [32, 31], strides = [1, 1]} : vector<32x32xf32> to vector<32x31xf32>
    %142 = tpu.concatenate %141, %138 in 1 : vector<32x31xf32>, vector<32x1xf32> -> vector<32x32xf32>
    %143 = tpu.concatenate %140, %137, %142 in 0 : vector<32x32xf32>, vector<32x32xf32>, vector<32x32xf32> -> vector<96x32xf32>
    %cst_39 = arith.constant dense<0.000000e+00> : vector<16x32xf32>
    %144 = tpu.matmul %4, %143, %cst_39 {dimension_numbers = #tpu.dot_dimension_numbers<[1], [0], [0], [1], [0, 0, 1, 1], [], []>, precision = #tpu.contract_precision<fp32>} : vector<16x96xf32>, vector<96x32xf32>, vector<16x32xf32> -> vector<16x32xf32>
    %145 = vector.extract_strided_slice %144 {offsets = [0, 0], sizes = [8, 32], strides = [1, 1]} : vector<16x32xf32> to vector<8x32xf32>
    %146 = vector.extract_strided_slice %144 {offsets = [8, 0], sizes = [8, 32], strides = [1, 1]} : vector<16x32xf32> to vector<8x32xf32>
    %147 = tpu.concatenate %145, %146 in 1 : vector<8x32xf32>, vector<8x32xf32> -> vector<8x64xf32>
    %148 = tpu.iota {dimensions = array<i32: 0>} : vector<32x1xi32>
    %c2_i32 = arith.constant 2 : i32
    %149 = vector.broadcast %c2_i32 : i32 to vector<32x1xi32>
    %150 = arith.muli %149, %148 : vector<32x1xi32>
    %c0_i32 = arith.constant 0 : i32
    %151 = vector.broadcast %c0_i32 : i32 to vector<32x1xi32>
    %152 = arith.addi %150, %151 : vector<32x1xi32>
    %153 = tpu.iota {dimensions = array<i32: 0>} : vector<32x1xi32>
    %c2_i32_40 = arith.constant 2 : i32
    %154 = vector.broadcast %c2_i32_40 : i32 to vector<32x1xi32>
    %155 = arith.muli %154, %153 : vector<32x1xi32>
    %c1_i32 = arith.constant 1 : i32
    %156 = vector.broadcast %c1_i32 : i32 to vector<32x1xi32>
    %157 = arith.addi %155, %156 : vector<32x1xi32>
    %158 = tpu.concatenate %152, %157 in 0 : vector<32x1xi32>, vector<32x1xi32> -> vector<64x1xi32>
    %159 = tpu.iota {dimensions = array<i32: 1>} : vector<64x64xi32>
    %160 = vector.broadcast %158 : vector<64x1xi32> to vector<64x64xi32>
    %161 = arith.cmpi eq, %159, %160 : vector<64x64xi32>
    %162 = arith.extui %161 : vector<64x64xi1> to vector<64x64xi32>
    %163 = arith.sitofp %162 : vector<64x64xi32> to vector<64x64xf32>
    %cst_41 = arith.constant dense<0.000000e+00> : vector<8x64xf32>
    %164 = tpu.matmul %147, %163, %cst_41 {dimension_numbers = #tpu.dot_dimension_numbers<[1], [0], [0], [1], [0, 0, 1, 1], [], []>, precision = #tpu.contract_precision<fp32>} : vector<8x64xf32>, vector<64x64xf32>, vector<8x64xf32> -> vector<8x64xf32>
    %165 = vector.broadcast %5 : vector<8x1xf32> to vector<8x64xf32>
    %166 = arith.addf %164, %165 : vector<8x64xf32>
    %c0_42 = arith.constant 0 : index
    %c0_43 = arith.constant 0 : index
    %167 = vector.load %arg8[%c0_42, %c0_43] : memref<32x40xf32, #tpu.memory_space<vmem>>, vector<32x40xf32>
    %c0_44 = arith.constant 0 : index
    %c0_45 = arith.constant 0 : index
    %168 = vector.load %arg9[%c0_44, %c0_45] : memref<32x2xf32, #tpu.memory_space<vmem>>, vector<32x2xf32>
    %c0_46 = arith.constant 0 : index
    %c0_47 = arith.constant 0 : index
    %169 = vector.load %arg10[%c0_46, %c0_47] : memref<8x48xf32, #tpu.memory_space<vmem>>, vector<8x48xf32>
    %c0_48 = arith.constant 0 : index
    %c0_49 = arith.constant 0 : index
    %170 = vector.load %arg11[%c0_48, %c0_49] : memref<4x1xf32, #tpu.memory_space<vmem>>, vector<4x1xf32>
    %171 = vector.extract_strided_slice %167 {offsets = [0, 0], sizes = [8, 24], strides = [1, 1]} : vector<32x40xf32> to vector<8x24xf32>
    %172 = vector.extract_strided_slice %168 {offsets = [0, 0], sizes = [8, 1], strides = [1, 1]} : vector<32x2xf32> to vector<8x1xf32>
    %173 = vector.extract_strided_slice %167 {offsets = [0, 24], sizes = [8, 16], strides = [1, 1]} : vector<32x40xf32> to vector<8x16xf32>
    %174 = vector.extract_strided_slice %168 {offsets = [0, 1], sizes = [8, 1], strides = [1, 1]} : vector<32x2xf32> to vector<8x1xf32>
    %cst_50 = arith.constant 0.000000e+00 : f32
    %175 = vector.broadcast %cst_50 : f32 to vector<8x64xf32>
    %176 = arith.cmpf oge, %166, %175 : vector<8x64xf32>
    %cst_51 = arith.constant 2.000000e-01 : f32
    %177 = vector.broadcast %cst_51 : f32 to vector<8x64xf32>
    %178 = arith.mulf %177, %166 : vector<8x64xf32>
    %179 = arith.select %176, %166, %178 : vector<8x64xi1>, vector<8x64xf32>
    %180 = vector.extract_strided_slice %179 {offsets = [0, 0], sizes = [8, 1], strides = [1, 1]} : vector<8x64xf32> to vector<8x1xf32>
    %181 = vector.extract_strided_slice %179 {offsets = [0, 0], sizes = [8, 63], strides = [1, 1]} : vector<8x64xf32> to vector<8x63xf32>
    %182 = tpu.concatenate %180, %181 in 1 : vector<8x1xf32>, vector<8x63xf32> -> vector<8x64xf32>
    %183 = vector.extract_strided_slice %179 {offsets = [0, 1], sizes = [8, 63], strides = [1, 1]} : vector<8x64xf32> to vector<8x63xf32>
    %184 = vector.extract_strided_slice %179 {offsets = [0, 63], sizes = [8, 1], strides = [1, 1]} : vector<8x64xf32> to vector<8x1xf32>
    %185 = tpu.concatenate %183, %184 in 1 : vector<8x63xf32>, vector<8x1xf32> -> vector<8x64xf32>
    %186 = tpu.concatenate %182, %179, %185 in 0 : vector<8x64xf32>, vector<8x64xf32>, vector<8x64xf32> -> vector<24x64xf32>
    %cst_52 = arith.constant dense<0.000000e+00> : vector<8x64xf32>
    %187 = tpu.matmul %171, %186, %cst_52 {dimension_numbers = #tpu.dot_dimension_numbers<[1], [0], [0], [1], [0, 0, 1, 1], [], []>, precision = #tpu.contract_precision<fp32>} : vector<8x24xf32>, vector<24x64xf32>, vector<8x64xf32> -> vector<8x64xf32>
    %188 = vector.broadcast %172 : vector<8x1xf32> to vector<8x64xf32>
    %189 = arith.addf %187, %188 : vector<8x64xf32>
    %cst_53 = arith.constant 0.000000e+00 : f32
    %190 = vector.broadcast %cst_53 : f32 to vector<8x64xf32>
    %191 = arith.cmpf oge, %189, %190 : vector<8x64xf32>
    %cst_54 = arith.constant 2.000000e-01 : f32
    %192 = vector.broadcast %cst_54 : f32 to vector<8x64xf32>
    %193 = arith.mulf %192, %189 : vector<8x64xf32>
    %194 = arith.select %191, %189, %193 : vector<8x64xi1>, vector<8x64xf32>
    %195 = tpu.concatenate %194, %166 in 0 : vector<8x64xf32>, vector<8x64xf32> -> vector<16x64xf32>
    %cst_55 = arith.constant dense<0.000000e+00> : vector<8x64xf32>
    %196 = tpu.matmul %173, %195, %cst_55 {dimension_numbers = #tpu.dot_dimension_numbers<[1], [0], [0], [1], [0, 0, 1, 1], [], []>, precision = #tpu.contract_precision<fp32>} : vector<8x16xf32>, vector<16x64xf32>, vector<8x64xf32> -> vector<8x64xf32>
    %197 = vector.broadcast %174 : vector<8x1xf32> to vector<8x64xf32>
    %198 = arith.addf %196, %197 : vector<8x64xf32>
    %199 = vector.extract_strided_slice %167 {offsets = [8, 0], sizes = [8, 24], strides = [1, 1]} : vector<32x40xf32> to vector<8x24xf32>
    %200 = vector.extract_strided_slice %168 {offsets = [8, 0], sizes = [8, 1], strides = [1, 1]} : vector<32x2xf32> to vector<8x1xf32>
    %201 = vector.extract_strided_slice %167 {offsets = [8, 24], sizes = [8, 16], strides = [1, 1]} : vector<32x40xf32> to vector<8x16xf32>
    %202 = vector.extract_strided_slice %168 {offsets = [8, 1], sizes = [8, 1], strides = [1, 1]} : vector<32x2xf32> to vector<8x1xf32>
    %cst_56 = arith.constant 0.000000e+00 : f32
    %203 = vector.broadcast %cst_56 : f32 to vector<8x64xf32>
    %204 = arith.cmpf oge, %198, %203 : vector<8x64xf32>
    %cst_57 = arith.constant 2.000000e-01 : f32
    %205 = vector.broadcast %cst_57 : f32 to vector<8x64xf32>
    %206 = arith.mulf %205, %198 : vector<8x64xf32>
    %207 = arith.select %204, %198, %206 : vector<8x64xi1>, vector<8x64xf32>
    %208 = vector.extract_strided_slice %207 {offsets = [0, 0], sizes = [8, 1], strides = [1, 1]} : vector<8x64xf32> to vector<8x1xf32>
    %209 = vector.shape_cast %208 : vector<8x1xf32> to vector<8x1xf32>
    %210 = vector.broadcast %209 : vector<8x1xf32> to vector<8x3xf32>
    %211 = vector.extract_strided_slice %207 {offsets = [0, 0], sizes = [8, 61], strides = [1, 1]} : vector<8x64xf32> to vector<8x61xf32>
    %212 = tpu.concatenate %210, %211 in 1 : vector<8x3xf32>, vector<8x61xf32> -> vector<8x64xf32>
    %213 = vector.extract_strided_slice %207 {offsets = [0, 3], sizes = [8, 61], strides = [1, 1]} : vector<8x64xf32> to vector<8x61xf32>
    %214 = vector.extract_strided_slice %207 {offsets = [0, 63], sizes = [8, 1], strides = [1, 1]} : vector<8x64xf32> to vector<8x1xf32>
    %215 = vector.shape_cast %214 : vector<8x1xf32> to vector<8x1xf32>
    %216 = vector.broadcast %215 : vector<8x1xf32> to vector<8x3xf32>
    %217 = tpu.concatenate %213, %216 in 1 : vector<8x61xf32>, vector<8x3xf32> -> vector<8x64xf32>
    %218 = tpu.concatenate %212, %207, %217 in 0 : vector<8x64xf32>, vector<8x64xf32>, vector<8x64xf32> -> vector<24x64xf32>
    %cst_58 = arith.constant dense<0.000000e+00> : vector<8x64xf32>
    %219 = tpu.matmul %199, %218, %cst_58 {dimension_numbers = #tpu.dot_dimension_numbers<[1], [0], [0], [1], [0, 0, 1, 1], [], []>, precision = #tpu.contract_precision<fp32>} : vector<8x24xf32>, vector<24x64xf32>, vector<8x64xf32> -> vector<8x64xf32>
    %220 = vector.broadcast %200 : vector<8x1xf32> to vector<8x64xf32>
    %221 = arith.addf %219, %220 : vector<8x64xf32>
    %cst_59 = arith.constant 0.000000e+00 : f32
    %222 = vector.broadcast %cst_59 : f32 to vector<8x64xf32>
    %223 = arith.cmpf oge, %221, %222 : vector<8x64xf32>
    %cst_60 = arith.constant 2.000000e-01 : f32
    %224 = vector.broadcast %cst_60 : f32 to vector<8x64xf32>
    %225 = arith.mulf %224, %221 : vector<8x64xf32>
    %226 = arith.select %223, %221, %225 : vector<8x64xi1>, vector<8x64xf32>
    %227 = tpu.concatenate %226, %198 in 0 : vector<8x64xf32>, vector<8x64xf32> -> vector<16x64xf32>
    %cst_61 = arith.constant dense<0.000000e+00> : vector<8x64xf32>
    %228 = tpu.matmul %201, %227, %cst_61 {dimension_numbers = #tpu.dot_dimension_numbers<[1], [0], [0], [1], [0, 0, 1, 1], [], []>, precision = #tpu.contract_precision<fp32>} : vector<8x16xf32>, vector<16x64xf32>, vector<8x64xf32> -> vector<8x64xf32>
    %229 = vector.broadcast %202 : vector<8x1xf32> to vector<8x64xf32>
    %230 = arith.addf %228, %229 : vector<8x64xf32>
    %231 = vector.extract_strided_slice %167 {offsets = [16, 0], sizes = [8, 24], strides = [1, 1]} : vector<32x40xf32> to vector<8x24xf32>
    %232 = vector.extract_strided_slice %168 {offsets = [16, 0], sizes = [8, 1], strides = [1, 1]} : vector<32x2xf32> to vector<8x1xf32>
    %233 = vector.extract_strided_slice %167 {offsets = [16, 24], sizes = [8, 16], strides = [1, 1]} : vector<32x40xf32> to vector<8x16xf32>
    %234 = vector.extract_strided_slice %168 {offsets = [16, 1], sizes = [8, 1], strides = [1, 1]} : vector<32x2xf32> to vector<8x1xf32>
    %cst_62 = arith.constant 0.000000e+00 : f32
    %235 = vector.broadcast %cst_62 : f32 to vector<8x64xf32>
    %236 = arith.cmpf oge, %230, %235 : vector<8x64xf32>
    %cst_63 = arith.constant 2.000000e-01 : f32
    %237 = vector.broadcast %cst_63 : f32 to vector<8x64xf32>
    %238 = arith.mulf %237, %230 : vector<8x64xf32>
    %239 = arith.select %236, %230, %238 : vector<8x64xi1>, vector<8x64xf32>
    %240 = vector.extract_strided_slice %239 {offsets = [0, 0], sizes = [8, 1], strides = [1, 1]} : vector<8x64xf32> to vector<8x1xf32>
    %241 = vector.shape_cast %240 : vector<8x1xf32> to vector<8x1xf32>
    %242 = vector.broadcast %241 : vector<8x1xf32> to vector<8x9xf32>
    %243 = vector.extract_strided_slice %239 {offsets = [0, 0], sizes = [8, 55], strides = [1, 1]} : vector<8x64xf32> to vector<8x55xf32>
    %244 = tpu.concatenate %242, %243 in 1 : vector<8x9xf32>, vector<8x55xf32> -> vector<8x64xf32>
    %245 = vector.extract_strided_slice %239 {offsets = [0, 9], sizes = [8, 55], strides = [1, 1]} : vector<8x64xf32> to vector<8x55xf32>
    %246 = vector.extract_strided_slice %239 {offsets = [0, 63], sizes = [8, 1], strides = [1, 1]} : vector<8x64xf32> to vector<8x1xf32>
    %247 = vector.shape_cast %246 : vector<8x1xf32> to vector<8x1xf32>
    %248 = vector.broadcast %247 : vector<8x1xf32> to vector<8x9xf32>
    %249 = tpu.concatenate %245, %248 in 1 : vector<8x55xf32>, vector<8x9xf32> -> vector<8x64xf32>
    %250 = tpu.concatenate %244, %239, %249 in 0 : vector<8x64xf32>, vector<8x64xf32>, vector<8x64xf32> -> vector<24x64xf32>
    %cst_64 = arith.constant dense<0.000000e+00> : vector<8x64xf32>
    %251 = tpu.matmul %231, %250, %cst_64 {dimension_numbers = #tpu.dot_dimension_numbers<[1], [0], [0], [1], [0, 0, 1, 1], [], []>, precision = #tpu.contract_precision<fp32>} : vector<8x24xf32>, vector<24x64xf32>, vector<8x64xf32> -> vector<8x64xf32>
    %252 = vector.broadcast %232 : vector<8x1xf32> to vector<8x64xf32>
    %253 = arith.addf %251, %252 : vector<8x64xf32>
    %cst_65 = arith.constant 0.000000e+00 : f32
    %254 = vector.broadcast %cst_65 : f32 to vector<8x64xf32>
    %255 = arith.cmpf oge, %253, %254 : vector<8x64xf32>
    %cst_66 = arith.constant 2.000000e-01 : f32
    %256 = vector.broadcast %cst_66 : f32 to vector<8x64xf32>
    %257 = arith.mulf %256, %253 : vector<8x64xf32>
    %258 = arith.select %255, %253, %257 : vector<8x64xi1>, vector<8x64xf32>
    %259 = tpu.concatenate %258, %230 in 0 : vector<8x64xf32>, vector<8x64xf32> -> vector<16x64xf32>
    %cst_67 = arith.constant dense<0.000000e+00> : vector<8x64xf32>
    %260 = tpu.matmul %233, %259, %cst_67 {dimension_numbers = #tpu.dot_dimension_numbers<[1], [0], [0], [1], [0, 0, 1, 1], [], []>, precision = #tpu.contract_precision<fp32>} : vector<8x16xf32>, vector<16x64xf32>, vector<8x64xf32> -> vector<8x64xf32>
    %261 = vector.broadcast %234 : vector<8x1xf32> to vector<8x64xf32>
    %262 = arith.addf %260, %261 : vector<8x64xf32>
    %263 = vector.extract_strided_slice %167 {offsets = [24, 0], sizes = [8, 24], strides = [1, 1]} : vector<32x40xf32> to vector<8x24xf32>
    %264 = vector.extract_strided_slice %168 {offsets = [24, 0], sizes = [8, 1], strides = [1, 1]} : vector<32x2xf32> to vector<8x1xf32>
    %265 = vector.extract_strided_slice %167 {offsets = [24, 24], sizes = [8, 16], strides = [1, 1]} : vector<32x40xf32> to vector<8x16xf32>
    %266 = vector.extract_strided_slice %168 {offsets = [24, 1], sizes = [8, 1], strides = [1, 1]} : vector<32x2xf32> to vector<8x1xf32>
    %cst_68 = arith.constant 0.000000e+00 : f32
    %267 = vector.broadcast %cst_68 : f32 to vector<8x64xf32>
    %268 = arith.cmpf oge, %262, %267 : vector<8x64xf32>
    %cst_69 = arith.constant 2.000000e-01 : f32
    %269 = vector.broadcast %cst_69 : f32 to vector<8x64xf32>
    %270 = arith.mulf %269, %262 : vector<8x64xf32>
    %271 = arith.select %268, %262, %270 : vector<8x64xi1>, vector<8x64xf32>
    %272 = vector.extract_strided_slice %271 {offsets = [0, 0], sizes = [8, 1], strides = [1, 1]} : vector<8x64xf32> to vector<8x1xf32>
    %273 = vector.shape_cast %272 : vector<8x1xf32> to vector<8x1xf32>
    %274 = vector.broadcast %273 : vector<8x1xf32> to vector<8x27xf32>
    %275 = vector.extract_strided_slice %271 {offsets = [0, 0], sizes = [8, 37], strides = [1, 1]} : vector<8x64xf32> to vector<8x37xf32>
    %276 = tpu.concatenate %274, %275 in 1 : vector<8x27xf32>, vector<8x37xf32> -> vector<8x64xf32>
    %277 = vector.extract_strided_slice %271 {offsets = [0, 27], sizes = [8, 37], strides = [1, 1]} : vector<8x64xf32> to vector<8x37xf32>
    %278 = vector.extract_strided_slice %271 {offsets = [0, 63], sizes = [8, 1], strides = [1, 1]} : vector<8x64xf32> to vector<8x1xf32>
    %279 = vector.shape_cast %278 : vector<8x1xf32> to vector<8x1xf32>
    %280 = vector.broadcast %279 : vector<8x1xf32> to vector<8x27xf32>
    %281 = tpu.concatenate %277, %280 in 1 : vector<8x37xf32>, vector<8x27xf32> -> vector<8x64xf32>
    %282 = tpu.concatenate %276, %271, %281 in 0 : vector<8x64xf32>, vector<8x64xf32>, vector<8x64xf32> -> vector<24x64xf32>
    %cst_70 = arith.constant dense<0.000000e+00> : vector<8x64xf32>
    %283 = tpu.matmul %263, %282, %cst_70 {dimension_numbers = #tpu.dot_dimension_numbers<[1], [0], [0], [1], [0, 0, 1, 1], [], []>, precision = #tpu.contract_precision<fp32>} : vector<8x24xf32>, vector<24x64xf32>, vector<8x64xf32> -> vector<8x64xf32>
    %284 = vector.broadcast %264 : vector<8x1xf32> to vector<8x64xf32>
    %285 = arith.addf %283, %284 : vector<8x64xf32>
    %cst_71 = arith.constant 0.000000e+00 : f32
    %286 = vector.broadcast %cst_71 : f32 to vector<8x64xf32>
    %287 = arith.cmpf oge, %285, %286 : vector<8x64xf32>
    %cst_72 = arith.constant 2.000000e-01 : f32
    %288 = vector.broadcast %cst_72 : f32 to vector<8x64xf32>
    %289 = arith.mulf %288, %285 : vector<8x64xf32>
    %290 = arith.select %287, %285, %289 : vector<8x64xi1>, vector<8x64xf32>
    %291 = tpu.concatenate %290, %262 in 0 : vector<8x64xf32>, vector<8x64xf32> -> vector<16x64xf32>
    %cst_73 = arith.constant dense<0.000000e+00> : vector<8x64xf32>
    %292 = tpu.matmul %265, %291, %cst_73 {dimension_numbers = #tpu.dot_dimension_numbers<[1], [0], [0], [1], [0, 0, 1, 1], [], []>, precision = #tpu.contract_precision<fp32>} : vector<8x16xf32>, vector<16x64xf32>, vector<8x64xf32> -> vector<8x64xf32>
    %293 = vector.broadcast %266 : vector<8x1xf32> to vector<8x64xf32>
    %294 = arith.addf %292, %293 : vector<8x64xf32>
    %c0_74 = arith.constant 0 : index
    %c0_75 = arith.constant 0 : index
    %c0_76 = arith.constant 0 : index
    %295 = vector.load %arg3[%c0_74, %c0_75, %c0_76] : memref<1x8x64xf32, #tpu.memory_space<vmem>>, vector<1x8x64xf32>
    %296 = vector.shape_cast %295 : vector<1x8x64xf32> to vector<8x64xf32>
    %cst_77 = arith.constant 0.000000e+00 : f32
    %297 = vector.broadcast %cst_77 : f32 to vector<8x64xf32>
    %298 = arith.cmpf oge, %294, %297 : vector<8x64xf32>
    %cst_78 = arith.constant 2.000000e-01 : f32
    %299 = vector.broadcast %cst_78 : f32 to vector<8x64xf32>
    %300 = arith.mulf %299, %294 : vector<8x64xf32>
    %301 = arith.select %298, %294, %300 : vector<8x64xi1>, vector<8x64xf32>
    %302 = tpu.concatenate %301, %296 in 0 : vector<8x64xf32>, vector<8x64xf32> -> vector<16x64xf32>
    %cst_79 = arith.constant 0.000000e+00 : f32
    %303 = vector.broadcast %cst_79 : f32 to vector<16x1xf32>
    %304 = vector.extract_strided_slice %302 {offsets = [0, 0], sizes = [16, 63], strides = [1, 1]} : vector<16x64xf32> to vector<16x63xf32>
    %305 = tpu.concatenate %303, %304 in 1 : vector<16x1xf32>, vector<16x63xf32> -> vector<16x64xf32>
    %306 = vector.extract_strided_slice %302 {offsets = [0, 1], sizes = [16, 63], strides = [1, 1]} : vector<16x64xf32> to vector<16x63xf32>
    %307 = tpu.concatenate %306, %303 in 1 : vector<16x63xf32>, vector<16x1xf32> -> vector<16x64xf32>
    %308 = tpu.concatenate %305, %302, %307 in 0 : vector<16x64xf32>, vector<16x64xf32>, vector<16x64xf32> -> vector<48x64xf32>
    %cst_80 = arith.constant dense<0.000000e+00> : vector<8x64xf32>
    %309 = tpu.matmul %169, %308, %cst_80 {dimension_numbers = #tpu.dot_dimension_numbers<[1], [0], [0], [1], [0, 0, 1, 1], [], []>, precision = #tpu.contract_precision<fp32>} : vector<8x48xf32>, vector<48x64xf32>, vector<8x64xf32> -> vector<8x64xf32>
    %310 = vector.extract_strided_slice %309 {offsets = [0, 0], sizes = [4, 64], strides = [1, 1]} : vector<8x64xf32> to vector<4x64xf32>
    %311 = vector.extract_strided_slice %309 {offsets = [4, 0], sizes = [4, 64], strides = [1, 1]} : vector<8x64xf32> to vector<4x64xf32>
    %312 = tpu.concatenate %310, %311 in 1 : vector<4x64xf32>, vector<4x64xf32> -> vector<4x128xf32>
    %313 = tpu.iota {dimensions = array<i32: 0>} : vector<64x1xi32>
    %c2_i32_81 = arith.constant 2 : i32
    %314 = vector.broadcast %c2_i32_81 : i32 to vector<64x1xi32>
    %315 = arith.muli %314, %313 : vector<64x1xi32>
    %c0_i32_82 = arith.constant 0 : i32
    %316 = vector.broadcast %c0_i32_82 : i32 to vector<64x1xi32>
    %317 = arith.addi %315, %316 : vector<64x1xi32>
    %318 = tpu.iota {dimensions = array<i32: 0>} : vector<64x1xi32>
    %c2_i32_83 = arith.constant 2 : i32
    %319 = vector.broadcast %c2_i32_83 : i32 to vector<64x1xi32>
    %320 = arith.muli %319, %318 : vector<64x1xi32>
    %c1_i32_84 = arith.constant 1 : i32
    %321 = vector.broadcast %c1_i32_84 : i32 to vector<64x1xi32>
    %322 = arith.addi %320, %321 : vector<64x1xi32>
    %323 = tpu.concatenate %317, %322 in 0 : vector<64x1xi32>, vector<64x1xi32> -> vector<128x1xi32>
    %324 = tpu.iota {dimensions = array<i32: 1>} : vector<128x128xi32>
    %325 = vector.broadcast %323 : vector<128x1xi32> to vector<128x128xi32>
    %326 = arith.cmpi eq, %324, %325 : vector<128x128xi32>
    %327 = arith.extui %326 : vector<128x128xi1> to vector<128x128xi32>
    %328 = arith.sitofp %327 : vector<128x128xi32> to vector<128x128xf32>
    %cst_85 = arith.constant dense<0.000000e+00> : vector<4x128xf32>
    %329 = tpu.matmul %312, %328, %cst_85 {dimension_numbers = #tpu.dot_dimension_numbers<[1], [0], [0], [1], [0, 0, 1, 1], [], []>, precision = #tpu.contract_precision<fp32>} : vector<4x128xf32>, vector<128x128xf32>, vector<4x128xf32> -> vector<4x128xf32>
    %330 = vector.broadcast %170 : vector<4x1xf32> to vector<4x128xf32>
    %331 = arith.addf %329, %330 : vector<4x128xf32>
    %c0_86 = arith.constant 0 : index
    %c0_87 = arith.constant 0 : index
    %c0_88 = arith.constant 0 : index
    %332 = vector.load %arg12[%c0_86, %c0_87, %c0_88] : memref<1x4x128xf32, #tpu.memory_space<vmem>>, vector<1x4x128xf32>
    %333 = vector.shape_cast %332 : vector<1x4x128xf32> to vector<4x128xf32>
    %334 = vector.shape_cast %331 : vector<4x128xf32> to vector<1x4x128xf32>
    tpu.vector_store %arg12[%c0_86, %c0_87, %c0_88], %334 {strides = array<i32>} : memref<1x4x128xf32, #tpu.memory_space<vmem>>, vector<1x4x128xf32>,
    return
  }
  func.func @transform_0(%arg0: i32) -> (i32, i32, i32) {
    %c0_i32 = arith.constant 0 : i32
    %c0_i32_0 = arith.constant 0 : i32
    %c0_i32_1 = arith.constant 0 : i32
    return %arg0, %c0_i32, %c0_i32_0 : i32, i32, i32
  }
  func.func @transform_1(%arg0: i32) -> (i32, i32, i32) {
    %c0_i32 = arith.constant 0 : i32
    %c0_i32_0 = arith.constant 0 : i32
    %c0_i32_1 = arith.constant 0 : i32
    return %arg0, %c0_i32, %c0_i32_0 : i32, i32, i32
  }
  func.func @transform_2(%arg0: i32) -> (i32, i32, i32) {
    %c0_i32 = arith.constant 0 : i32
    %c0_i32_0 = arith.constant 0 : i32
    %c0_i32_1 = arith.constant 0 : i32
    return %arg0, %c0_i32, %c0_i32_0 : i32, i32, i32
  }
  func.func @transform_3(%arg0: i32) -> (i32, i32) {
    %c0_i32 = arith.constant 0 : i32
    %c0_i32_0 = arith.constant 0 : i32
    %c0_i32_1 = arith.constant 0 : i32
    return %c0_i32, %c0_i32_0 : i32, i32
  }
  func.func @transform_4(%arg0: i32) -> (i32, i32) {
    %c0_i32 = arith.constant 0 : i32
    %c0_i32_0 = arith.constant 0 : i32
    %c0_i32_1 = arith.constant 0 : i32
    return %c0_i32, %c0_i32_0 : i32, i32
  }
  func.func @transform_5(%arg0: i32) -> (i32, i32) {
    %c0_i32 = arith.constant 0 : i32
    %c0_i32_0 = arith.constant 0 : i32
    %c0_i32_1 = arith.constant 0 : i32
    return %c0_i32, %c0_i32_0 : i32, i32
  }
  func.func @transform_6(%arg0: i32) -> (i32, i32) {
    %c0_i32 = arith.constant 0 : i32
    %c0_i32_0 = arith.constant 0 : i32
    %c0_i32_1 = arith.constant 0 : i32
    return %c0_i32, %c0_i32_0 : i32, i32
  }
  func.func @transform_7(%arg0: i32) -> (i32, i32) {
    %c0_i32 = arith.constant 0 : i32
    %c0_i32_0 = arith.constant 0 : i32
    %c0_i32_1 = arith.constant 0 : i32
    return %c0_i32, %c0_i32_0 : i32, i32
  }
  func.func @transform_8(%arg0: i32) -> (i32, i32) {
    %c0_i32 = arith.constant 0 : i32
    %c0_i32_0 = arith.constant 0 : i32
    %c0_i32_1 = arith.constant 0 : i32
    return %c0_i32, %c0_i32_0 : i32, i32
  }
  func.func @transform_9(%arg0: i32) -> (i32, i32) {
    %c0_i32 = arith.constant 0 : i32
    %c0_i32_0 = arith.constant 0 : i32
    %c0_i32_1 = arith.constant 0 : i32
    return %c0_i32, %c0_i32_0 : i32, i32
  }
  func.func @transform_10(%arg0: i32) -> (i32, i32) {
    %c0_i32 = arith.constant 0 : i32
    %c0_i32_0 = arith.constant 0 : i32
    %c0_i32_1 = arith.constant 0 : i32
    return %c0_i32, %c0_i32_0 : i32, i32
  }
  func.func @transform_11(%arg0: i32) -> (i32, i32, i32) {
    %c0_i32 = arith.constant 0 : i32
    %c0_i32_0 = arith.constant 0 : i32
    %c0_i32_1 = arith.constant 0 : i32
    return %arg0, %c0_i32, %c0_i32_0 : i32, i32, i32
  }
}

</mosaic_0001>

<llo_original>
// kernel: _lambda_.1
$region0: #{_lambda_.1}
  #allocation0 [shape = 'u32[]', space=smem, size = 0x4, offset = 0x4, fixed_abs, tag = 'smem constant byte address 0x4 - core index']
  #allocation1 [shape = 'u32[72,128]{1,0:T(1,128)}', space=vmem, size = 0x9000, scoped, tag = 'internal scratch']
  %s0 = inlined_call_operand.hbm [shape: f32[2,16,32], index: 0, kind: input, shape index: {}]
  %s1 = inlined_call_operand.hbm [shape: f32[2,16,32], index: 1, kind: input, shape index: {}]
  %s2 = inlined_call_operand.hbm [shape: f32[2,8,64], index: 2, kind: input, shape index: {}]
  %s3 = inlined_call_operand.hbm [shape: f32[64,80], index: 3, kind: input, shape index: {}]
  %s4 = inlined_call_operand.hbm [shape: f32[64,2], index: 4, kind: input, shape index: {}]
  %s5 = inlined_call_operand.hbm [shape: f32[16,96], index: 5, kind: input, shape index: {}]
  %s6 = inlined_call_operand.hbm [shape: f32[8,1], index: 6, kind: input, shape index: {}]
  %s7 = inlined_call_operand.hbm [shape: f32[32,40], index: 7, kind: input, shape index: {}]
  %s8 = inlined_call_operand.hbm [shape: f32[32,2], index: 8, kind: input, shape index: {}]
  %s9 = inlined_call_operand.vmem [shape: f32[8,48], index: 9, kind: input, shape index: {}]
  %s10 = inlined_call_operand.hbm [shape: f32[4,1], index: 10, kind: input, shape index: {}]
  %s11 = inlined_call_operand.hbm [shape: f32[2,4,128], index: 11, kind: output, shape index: {}]
  %s12 = sld [smem:[#allocation0]]
  $region117: #{_lambda_.1} parent=0
    _
  %s14 = ssub.s32 1, %s12
  %s15 = scalar_select 0, %s14, %s12
  $region1: #{_lambda_.1} parent=0
    #allocation2 [shape = 'u8[16384]{0}', space=vmem, size = 0x4000, scoped, tag = 'input window, operand 0']
    #allocation3 [shape = 's32[2]{0}', space=sflag, size = 0x8, scoped, tag = 'scoped memory for _lambda_.1']
    #allocation4 [shape = 's32[2]{0}', space=sflag, size = 0x8, scoped, tag = 'scoped memory for _lambda_.1']
    #allocation5 [shape = 'u8[16384]{0}', space=vmem, size = 0x4000, scoped, tag = 'input window, operand 1']
    #allocation6 [shape = 's32[2]{0}', space=sflag, size = 0x8, scoped, tag = 'scoped memory for _lambda_.1']
    #allocation7 [shape = 'u8[8192]{0}', space=vmem, size = 0x2000, scoped, tag = 'input window, operand 2']
    #allocation8 [shape = 'u8[32768]{0}', space=vmem, size = 0x8000, scoped, tag = 'input window, operand 3, single buffered']
    #allocation9 [shape = 's32[1]{0}', space=sflag, size = 0x4, scoped, tag = 'scoped memory for _lambda_.1']
    #allocation10 [shape = 'u8[32768]{0}', space=vmem, size = 0x8000, scoped, tag = 'input window, operand 4, single buffered']
    #allocation11 [shape = 'u8[8192]{0}', space=vmem, size = 0x2000, scoped, tag = 'input window, operand 5, single buffered']
    #allocation12 [shape = 's32[1]{0}', space=sflag, size = 0x4, scoped, tag = 'scoped memory for _lambda_.1']
    #allocation13 [shape = 'u8[4096]{0}', space=vmem, size = 0x1000, scoped, tag = 'input window, operand 6, single buffered']
    #allocation14 [shape = 'u8[16384]{0}', space=vmem, size = 0x4000, scoped, tag = 'input window, operand 7, single buffered']
    #allocation15 [shape = 's32[1]{0}', space=sflag, size = 0x4, scoped, tag = 'scoped memory for _lambda_.1']
    #allocation16 [shape = 'u8[16384]{0}', space=vmem, size = 0x4000, scoped, tag = 'input window, operand 8, single buffered']
    #allocation17 [shape = 'u8[2048]{0}', space=vmem, size = 0x800, scoped, tag = 'input window, operand 10, single buffered']
    #allocation18 [shape = 's32[1]{0}', space=sflag, size = 0x4, scoped, tag = 'scoped memory for _lambda_.1']
    #allocation19 [shape = 'u8[4096]{0}', space=vmem, size = 0x1000, scoped, tag = 'output window, operand 0']
    %16 = vsyncpa [#allocation3], 0
    %s17 = scalar_lea.sflag [#allocation3], 1
    %18 = vsyncpa %s17, 0
    %19 = vsyncpa [#allocation6], 0
    %s20 = scalar_lea.sflag [#allocation6], 1
    %21 = vsyncpa %s20, 0
    %22 = vsyncpa [#allocation9], 0
    %23 = vsyncpa [#allocation12], 0
    %24 = vsyncpa [#allocation15], 0
    %25 = vsyncpa [#allocation18], 0
    %26 = vsyncpa [#allocation4], 0
    %s27 = scalar_lea.sflag [#allocation4], 1
    %28 = vsyncpa %s27, 0
    loop: start=0, step=1, limit=4
    $region2: #{_lambda_.1} parent=1 // loop_pre_header
      _
    $region3: #{_lambda_.1} parent=1 // loop_header
      %s30 = sphi 0, %s34
      %p31 = scmp.ge.s32.totalorder %s30, 4
      %s40 = sphi 0, %s42
      %s43 = sphi 0, %s40
      %s44 = sphi 0, %s43
      %s60 = sphi 0, %s44
      %s66 = sphi 0, %s68
      %s69 = sphi 0, %s66
      %s70 = sphi 0, %s69
      %s86 = sphi 0, %s70
      %s92 = sphi 0, %s94
      %s95 = sphi 0, %s92
      %s96 = sphi 0, %s95
      %s112 = sphi 0, %s96
      %s116 = sphi 0, %s116
      %s118 = sphi 0, %s116
      %s119 = sphi 0, %s118
      %s133 = sphi 0, %s119
      %s137 = sphi 0, %s137
      %s139 = sphi 0, %s137
      %s140 = sphi 0, %s139
      %s154 = sphi 0, %s140
      %s158 = sphi 0, %s158
      %s160 = sphi 0, %s158
      %s161 = sphi 0, %s160
      %s175 = sphi 0, %s161
      %s179 = sphi 0, %s179
      %s181 = sphi 0, %s179
      %s182 = sphi 0, %s181
      %s196 = sphi 0, %s182
      %s200 = sphi 0, %s200
      %s202 = sphi 0, %s200
      %s203 = sphi 0, %s202
      %s217 = sphi 0, %s203
      %s221 = sphi 0, %s221
      %s223 = sphi 0, %s221
      %s224 = sphi 0, %s223
      %s238 = sphi 0, %s224
      %s242 = sphi 0, %s242
      %s244 = sphi 0, %s242
      %s245 = sphi 0, %s244
      %s259 = sphi 0, %s245
      %s263 = sphi 0, %s263
      %s265 = sphi 0, %s263
      %s266 = sphi 0, %s265
      %s280 = sphi 0, %s266
      %s286 = sphi 0, %s288
      %s289 = sphi 0, %s286
      %s290 = sphi 0, %s289
      %s306 = sphi 0, %s290
    $region4: #{_lambda_.1} parent=1 // loop_header_branch
      %33 = sbr.rel (%p31) target = $region8
    $region5: #{_lambda_.1} parent=1 // loop_body
      %s35 = ssub.s32 %s30, 1
      %s36 = ssub.s32 %s30, 2
      %s37 = sadd.s32 %s30, 1
      %s38 = ssub.s32 %s30, %s37
      %p39 = scmp.eq.s32.totalorder %s38, 0
      %s41 = sadd.s32 %s40, 1
      %s42 = scalar_select %p39, %s40, %s41
      %p45 = pneg %p39
      %p46 = scmp.eq.s32.totalorder %s30, 1
      %p47 = por %p45, %p46
      %p48 = scmp.ne.s32.totalorder %s40, %s43
      %p49 = scmp.eq.s32.totalorder %s30, 0
      %p50 = por %p48, %p49
      %p51 = scmp.ne.s32.totalorder %s40, %s43
      %p52 = scmp.eq.s32.totalorder %s35, 1
      %p53 = por %p51, %p52
      %p54 = scmp.ne.s32.totalorder %s43, %s44
      %p55 = scmp.eq.s32.totalorder %s35, 0
      %p56 = por %p54, %p55
      %p57 = scmp.ne.s32.totalorder %s43, %s44
      %p58 = scmp.eq.s32.totalorder %s36, 1
      %p59 = por %p57, %p58
      %p61 = scmp.ne.s32.totalorder %s44, %s60
      %p62 = scmp.eq.s32.totalorder %s36, 0
      %p63 = por %p61, %p62
      %s64 = ssub.s32 %s30, %s37
      %p65 = scmp.eq.s32.totalorder %s64, 0
      %s67 = sadd.s32 %s66, 1
      %s68 = scalar_select %p65, %s66, %s67
      %p71 = pneg %p65
      %p72 = scmp.eq.s32.totalorder %s30, 1
      %p73 = por %p71, %p72
      %p74 = scmp.ne.s32.totalorder %s66, %s69
      %p75 = scmp.eq.s32.totalorder %s30, 0
      %p76 = por %p74, %p75
      %p77 = scmp.ne.s32.totalorder %s66, %s69
      %p78 = scmp.eq.s32.totalorder %s35, 1
      %p79 = por %p77, %p78
      %p80 = scmp.ne.s32.totalorder %s69, %s70
      %p81 = scmp.eq.s32.totalorder %s35, 0
      %p82 = por %p80, %p81
      %p83 = scmp.ne.s32.totalorder %s69, %s70
      %p84 = scmp.eq.s32.totalorder %s36, 1
      %p85 = por %p83, %p84
      %p87 = scmp.ne.s32.totalorder %s70, %s86
      %p88 = scmp.eq.s32.totalorder %s36, 0
      %p89 = por %p87, %p88
      %s90 = ssub.s32 %s30, %s37
      %p91 = scmp.eq.s32.totalorder %s90, 0
      %s93 = sadd.s32 %s92, 1
      %s94 = scalar_select %p91, %s92, %s93
      %p97 = pneg %p91
      %p98 = scmp.eq.s32.totalorder %s30, 1
      %p99 = por %p97, %p98
      %p100 = scmp.ne.s32.totalorder %s92, %s95
      %p101 = scmp.eq.s32.totalorder %s30, 0
      %p102 = por %p100, %p101
      %p103 = scmp.ne.s32.totalorder %s92, %s95
      %p104 = scmp.eq.s32.totalorder %s35, 1
      %p105 = por %p103, %p104
      %p106 = scmp.ne.s32.totalorder %s95, %s96
      %p107 = scmp.eq.s32.totalorder %s35, 0
      %p108 = por %p106, %p107
      %p109 = scmp.ne.s32.totalorder %s95, %s96
      %p110 = scmp.eq.s32.totalorder %s36, 1
      %p111 = por %p109, %p110
      %p113 = scmp.ne.s32.totalorder %s96, %s112
      %p114 = scmp.eq.s32.totalorder %s36, 0
      %p115 = por %p113, %p114
      %s117 = sadd.s32 %s116, 1
      %p120 = scmp.eq.s32.totalorder %s30, 1
      %p121 = scmp.ne.s32.totalorder %s116, %s118
      %p122 = scmp.eq.s32.totalorder %s30, 0
      %p123 = por %p121, %p122
      %p124 = scmp.ne.s32.totalorder %s116, %s118
      %p125 = scmp.eq.s32.totalorder %s35, 1
      %p126 = por %p124, %p125
      %p127 = scmp.ne.s32.totalorder %s118, %s119
      %p128 = scmp.eq.s32.totalorder %s35, 0
      %p129 = por %p127, %p128
      %p130 = scmp.ne.s32.totalorder %s118, %s119
      %p131 = scmp.eq.s32.totalorder %s36, 1
      %p132 = por %p130, %p131
      %p134 = scmp.ne.s32.totalorder %s119, %s133
      %p135 = scmp.eq.s32.totalorder %s36, 0
      %p136 = por %p134, %p135
      %s138 = sadd.s32 %s137, 1
      %p141 = scmp.eq.s32.totalorder %s30, 1
      %p142 = scmp.ne.s32.totalorder %s137, %s139
      %p143 = scmp.eq.s32.totalorder %s30, 0
      %p144 = por %p142, %p143
      %p145 = scmp.ne.s32.totalorder %s137, %s139
      %p146 = scmp.eq.s32.totalorder %s35, 1
      %p147 = por %p145, %p146
      %p148 = scmp.ne.s32.totalorder %s139, %s140
      %p149 = scmp.eq.s32.totalorder %s35, 0
      %p150 = por %p148, %p149
      %p151 = scmp.ne.s32.totalorder %s139, %s140
      %p152 = scmp.eq.s32.totalorder %s36, 1
      %p153 = por %p151, %p152
      %p155 = scmp.ne.s32.totalorder %s140, %s154
      %p156 = scmp.eq.s32.totalorder %s36, 0
      %p157 = por %p155, %p156
      %s159 = sadd.s32 %s158, 1
      %p162 = scmp.eq.s32.totalorder %s30, 1
      %p163 = scmp.ne.s32.totalorder %s158, %s160
      %p164 = scmp.eq.s32.totalorder %s30, 0
      %p165 = por %p163, %p164
      %p166 = scmp.ne.s32.totalorder %s158, %s160
      %p167 = scmp.eq.s32.totalorder %s35, 1
      %p168 = por %p166, %p167
      %p169 = scmp.ne.s32.totalorder %s160, %s161
      %p170 = scmp.eq.s32.totalorder %s35, 0
      %p171 = por %p169, %p170
      %p172 = scmp.ne.s32.totalorder %s160, %s161
      %p173 = scmp.eq.s32.totalorder %s36, 1
      %p174 = por %p172, %p173
      %p176 = scmp.ne.s32.totalorder %s161, %s175
      %p177 = scmp.eq.s32.totalorder %s36, 0
      %p178 = por %p176, %p177
      %s180 = sadd.s32 %s179, 1
      %p183 = scmp.eq.s32.totalorder %s30, 1
      %p184 = scmp.ne.s32.totalorder %s179, %s181
      %p185 = scmp.eq.s32.totalorder %s30, 0
      %p186 = por %p184, %p185
      %p187 = scmp.ne.s32.totalorder %s179, %s181
      %p188 = scmp.eq.s32.totalorder %s35, 1
      %p189 = por %p187, %p188
      %p190 = scmp.ne.s32.totalorder %s181, %s182
      %p191 = scmp.eq.s32.totalorder %s35, 0
      %p192 = por %p190, %p191
      %p193 = scmp.ne.s32.totalorder %s181, %s182
      %p194 = scmp.eq.s32.totalorder %s36, 1
      %p195 = por %p193, %p194
      %p197 = scmp.ne.s32.totalorder %s182, %s196
      %p198 = scmp.eq.s32.totalorder %s36, 0
      %p199 = por %p197, %p198
      %s201 = sadd.s32 %s200, 1
      %p204 = scmp.eq.s32.totalorder %s30, 1
      %p205 = scmp.ne.s32.totalorder %s200, %s202
      %p206 = scmp.eq.s32.totalorder %s30, 0
      %p207 = por %p205, %p206
      %p208 = scmp.ne.s32.totalorder %s200, %s202
      %p209 = scmp.eq.s32.totalorder %s35, 1
      %p210 = por %p208, %p209
      %p211 = scmp.ne.s32.totalorder %s202, %s203
      %p212 = scmp.eq.s32.totalorder %s35, 0
      %p213 = por %p211, %p212
      %p214 = scmp.ne.s32.totalorder %s202, %s203
      %p215 = scmp.eq.s32.totalorder %s36, 1
      %p216 = por %p214, %p215
      %p218 = scmp.ne.s32.totalorder %s203, %s217
      %p219 = scmp.eq.s32.totalorder %s36, 0
      %p220 = por %p218, %p219
      %s222 = sadd.s32 %s221, 1
      %p225 = scmp.eq.s32.totalorder %s30, 1
      %p226 = scmp.ne.s32.totalorder %s221, %s223
      %p227 = scmp.eq.s32.totalorder %s30, 0
      %p228 = por %p226, %p227
      %p229 = scmp.ne.s32.totalorder %s221, %s223
      %p230 = scmp.eq.s32.totalorder %s35, 1
      %p231 = por %p229, %p230
      %p232 = scmp.ne.s32.totalorder %s223, %s224
      %p233 = scmp.eq.s32.totalorder %s35, 0
      %p234 = por %p232, %p233
      %p235 = scmp.ne.s32.totalorder %s223, %s224
      %p236 = scmp.eq.s32.totalorder %s36, 1
      %p237 = por %p235, %p236
      %p239 = scmp.ne.s32.totalorder %s224, %s238
      %p240 = scmp.eq.s32.totalorder %s36, 0
      %p241 = por %p239, %p240
      %s243 = sadd.s32 %s242, 1
      %p246 = scmp.eq.s32.totalorder %s30, 1
      %p247 = scmp.ne.s32.totalorder %s242, %s244
      %p248 = scmp.eq.s32.totalorder %s30, 0
      %p249 = por %p247, %p248
      %p250 = scmp.ne.s32.totalorder %s242, %s244
      %p251 = scmp.eq.s32.totalorder %s35, 1
      %p252 = por %p250, %p251
      %p253 = scmp.ne.s32.totalorder %s244, %s245
      %p254 = scmp.eq.s32.totalorder %s35, 0
      %p255 = por %p253, %p254
      %p256 = scmp.ne.s32.totalorder %s244, %s245
      %p257 = scmp.eq.s32.totalorder %s36, 1
      %p258 = por %p256, %p257
      %p260 = scmp.ne.s32.totalorder %s245, %s259
      %p261 = scmp.eq.s32.totalorder %s36, 0
      %p262 = por %p260, %p261
      %s264 = sadd.s32 %s263, 1
      %p267 = scmp.eq.s32.totalorder %s30, 1
      %p268 = scmp.ne.s32.totalorder %s263, %s265
      %p269 = scmp.eq.s32.totalorder %s30, 0
      %p270 = por %p268, %p269
      %p271 = scmp.ne.s32.totalorder %s263, %s265
      %p272 = scmp.eq.s32.totalorder %s35, 1
      %p273 = por %p271, %p272
      %p274 = scmp.ne.s32.totalorder %s265, %s266
      %p275 = scmp.eq.s32.totalorder %s35, 0
      %p276 = por %p274, %p275
      %p277 = scmp.ne.s32.totalorder %s265, %s266
      %p278 = scmp.eq.s32.totalorder %s36, 1
      %p279 = por %p277, %p278
      %p281 = scmp.ne.s32.totalorder %s266, %s280
      %p282 = scmp.eq.s32.totalorder %s36, 0
      %p283 = por %p281, %p282
      %s284 = ssub.s32 %s30, %s37
      %p285 = scmp.eq.s32.totalorder %s284, 0
      %s287 = sadd.s32 %s286, 1
      %s288 = scalar_select %p285, %s286, %s287
      %p291 = pneg %p285
      %p292 = scmp.eq.s32.totalorder %s30, 1
      %p293 = por %p291, %p292
      %p294 = scmp.ne.s32.totalorder %s286, %s289
      %p295 = scmp.eq.s32.totalorder %s30, 0
      %p296 = por %p294, %p295
      %p297 = scmp.ne.s32.totalorder %s286, %s289
      %p298 = scmp.eq.s32.totalorder %s35, 1
      %p299 = por %p297, %p298
      %p300 = scmp.ne.s32.totalorder %s289, %s290
      %p301 = scmp.eq.s32.totalorder %s35, 0
      %p302 = por %p300, %p301
      %p303 = scmp.ne.s32.totalorder %s289, %s290
      %p304 = scmp.eq.s32.totalorder %s36, 1
      %p305 = por %p303, %p304
      %p307 = scmp.ne.s32.totalorder %s290, %s306
      %p308 = scmp.eq.s32.totalorder %s36, 0
      %p309 = por %p307, %p308
      %p310 = scmp.le.s32.totalorder 1, %s30
      %p311 = scmp.lt.s32.totalorder %s30, 3
      %p312 = pnand %p310, %p311
      %p313 = pneg %p312
      // Predicated region
      $region9: #{_lambda_.1} parent=5 // pred_check
        _
      $region10: #{_lambda_.1} parent=5 // pred_check_branch
        %315 = sbr.rel (%p312) target = $region12
      $region11: #{_lambda_.1} parent=5 // pred_region
        %s316 = ssub.s32 %s30, 1
        // Predicated region
        $region13: #{_lambda_.1} parent=11 // pred_check
          %p317 = pneg %p129
        $region14: #{_lambda_.1} parent=11 // pred_check_branch
          %319 = sbr.rel (%p317) target = $region16
        $region15: #{_lambda_.1} parent=11 // pred_region
          %321 = vsyncadd [#allocation9], 0
          %s322 = sshll.u32 %s3, 4
          %s323 = int_to_ptr.hbm [resolvable:$true] %s322
          %s324 = sshll.u32 [#allocation8], 4
          %s325 = int_to_ptr.vmem [resolvable:$true] %s324
          %330 = dma.hbm_to_vmem [thread:$0]  %s323, 1024, %s325, [#allocation9], 128, 128, 8
        $region16: #{_lambda_.1} parent=11 // pred_fallthru
          _
        // Predicated region
        $region17: #{_lambda_.1} parent=11 // pred_check
          %p331 = pneg %p150
        $region18: #{_lambda_.1} parent=11 // pred_check_branch
          %333 = sbr.rel (%p331) target = $region20
        $region19: #{_lambda_.1} parent=11 // pred_region
          %335 = vsyncadd [#allocation9], 0
          %s336 = sshll.u32 %s4, 4
          %s337 = int_to_ptr.hbm [resolvable:$true] %s336
          %s338 = sshll.u32 [#allocation10], 4
          %s339 = int_to_ptr.vmem [resolvable:$true] %s338
          %344 = dma.hbm_to_vmem [thread:$0]  %s337, 1024, %s339, [#allocation9], 128, 128, 8
        $region20: #{_lambda_.1} parent=11 // pred_fallthru
          _
        // Predicated region
        $region21: #{_lambda_.1} parent=11 // pred_check
          %p345 = pneg %p171
        $region22: #{_lambda_.1} parent=11 // pred_check_branch
          %347 = sbr.rel (%p345) target = $region24
        $region23: #{_lambda_.1} parent=11 // pred_region
          %349 = vsyncadd [#allocation12], 0
          %s350 = sshll.u32 %s5, 4
          %s351 = int_to_ptr.hbm [resolvable:$true] %s350
          %s352 = sshll.u32 [#allocation11], 4
          %s353 = int_to_ptr.vmem [resolvable:$true] %s352
          %358 = dma.hbm_to_vmem [thread:$0]  %s351, 256, %s353, [#allocation12], 128, 128, 8
        $region24: #{_lambda_.1} parent=11 // pred_fallthru
          _
        // Predicated region
        $region25: #{_lambda_.1} parent=11 // pred_check
          %p359 = pneg %p192
        $region26: #{_lambda_.1} parent=11 // pred_check_branch
          %361 = sbr.rel (%p359) target = $region28
        $region27: #{_lambda_.1} parent=11 // pred_region
          %363 = vsyncadd [#allocation12], 0
          %s365 = sshll.u32 %s6, 4
          %s366 = int_to_ptr.hbm [resolvable:$true] %s365
          %s367 = sshll.u32 [#allocation13], 4
          %s368 = int_to_ptr.vmem [resolvable:$true] %s367
          %370 = dma.hbm_to_vmem [thread:$0]  %s366, 128, %s368, [#allocation12]
        $region28: #{_lambda_.1} parent=11 // pred_fallthru
          _
        // Predicated region
        $region29: #{_lambda_.1} parent=11 // pred_check
          %p371 = pneg %p213
        $region30: #{_lambda_.1} parent=11 // pred_check_branch
          %373 = sbr.rel (%p371) target = $region32
        $region31: #{_lambda_.1} parent=11 // pred_region
          %375 = vsyncadd [#allocation15], 0
          %s376 = sshll.u32 %s7, 4
          %s377 = int_to_ptr.hbm [resolvable:$true] %s376
          %s378 = sshll.u32 [#allocation14], 4
          %s379 = int_to_ptr.vmem [resolvable:$true] %s378
          %384 = dma.hbm_to_vmem [thread:$0]  %s377, 512, %s379, [#allocation15], 128, 128, 8
        $region32: #{_lambda_.1} parent=11 // pred_fallthru
          _
        // Predicated region
        $region33: #{_lambda_.1} parent=11 // pred_check
          %p385 = pneg %p234
        $region34: #{_lambda_.1} parent=11 // pred_check_branch
          %387 = sbr.rel (%p385) target = $region36
        $region35: #{_lambda_.1} parent=11 // pred_region
          %389 = vsyncadd [#allocation15], 0
          %s390 = sshll.u32 %s8, 4
          %s391 = int_to_ptr.hbm [resolvable:$true] %s390
          %s392 = sshll.u32 [#allocation16], 4
          %s393 = int_to_ptr.vmem [resolvable:$true] %s392
          %398 = dma.hbm_to_vmem [thread:$0]  %s391, 512, %s393, [#allocation15], 128, 128, 8
        $region36: #{_lambda_.1} parent=11 // pred_fallthru
          _
        // Predicated region
        $region37: #{_lambda_.1} parent=11 // pred_check
          %p399 = pneg %p255
        $region38: #{_lambda_.1} parent=11 // pred_check_branch
          %401 = sbr.rel (%p399) target = $region40
        $region39: #{_lambda_.1} parent=11 // pred_region
          _
        $region40: #{_lambda_.1} parent=11 // pred_fallthru
          _
        // Predicated region
        $region41: #{_lambda_.1} parent=11 // pred_check
          %p402 = pneg %p276
        $region42: #{_lambda_.1} parent=11 // pred_check_branch
          %404 = sbr.rel (%p402) target = $region44
        $region43: #{_lambda_.1} parent=11 // pred_region
          %406 = vsyncadd [#allocation18], 0
          %s408 = sshll.u32 %s10, 4
          %s409 = int_to_ptr.hbm [resolvable:$true] %s408
          %s410 = sshll.u32 [#allocation17], 4
          %s411 = int_to_ptr.vmem [resolvable:$true] %s410
          %413 = dma.hbm_to_vmem [thread:$0]  %s409, 64, %s411, [#allocation18]
        $region44: #{_lambda_.1} parent=11 // pred_fallthru
          _
      $region12: #{_lambda_.1} parent=5 // pred_fallthru
        _
      %p414 = scmp.lt.s32.totalorder %s30, 2
      // Predicated region
      $region45: #{_lambda_.1} parent=5 // pred_check
        %p415 = pneg %p414
      $region46: #{_lambda_.1} parent=5 // pred_check_branch
        %417 = sbr.rel (%p415) target = $region48
      $region47: #{_lambda_.1} parent=5 // pred_region
        // Predicated region
        $region49: #{_lambda_.1} parent=47 // pred_check
          %p418 = pneg %p50
        $region50: #{_lambda_.1} parent=47 // pred_check_branch
          %420 = sbr.rel (%p418) target = $region52
        $region51: #{_lambda_.1} parent=47 // pred_region
          %s421 = sand.u32 %s40, 1
          %s422 = scalar_lea.sflag [#allocation3], %s421
          %s423 = sand.u32 %s40, 1
          %s424 = smul.addr %s423, 16
          %s425 = scalar_lea.vmem [#allocation2], %s424
          %427 = vsyncadd %s422, 0
          %s428 = smul.addr %s30, 2
          %s429 = smul.addr %s428, 8
          %s430 = scalar_lea.hbm %s0, %s429
          %s431 = sshll.u32 %s430, 4
          %s432 = int_to_ptr.hbm [resolvable:$true] %s431
          %s433 = sshll.u32 %s425, 4
          %s434 = int_to_ptr.vmem [resolvable:$true] %s433
          %439 = dma.hbm_to_vmem [thread:$0]  %s432, 256, %s434, %s422, 128, 128, 8
        $region52: #{_lambda_.1} parent=47 // pred_fallthru
          _
        // Predicated region
        $region53: #{_lambda_.1} parent=47 // pred_check
          %p440 = pneg %p76
        $region54: #{_lambda_.1} parent=47 // pred_check_branch
          %442 = sbr.rel (%p440) target = $region56
        $region55: #{_lambda_.1} parent=47 // pred_region
          %s443 = sand.u32 %s30, 1
          %s444 = scalar_lea.sflag [#allocation6], %s443
          %s445 = sand.u32 %s66, 1
          %s446 = smul.addr %s445, 16
          %s447 = scalar_lea.vmem [#allocation5], %s446
          %449 = vsyncadd %s444, 0
          %s450 = smul.addr %s30, 2
          %s451 = smul.addr %s450, 8
          %s452 = scalar_lea.hbm %s1, %s451
          %s453 = sshll.u32 %s452, 4
          %s454 = int_to_ptr.hbm [resolvable:$true] %s453
          %s455 = sshll.u32 %s447, 4
          %s456 = int_to_ptr.vmem [resolvable:$true] %s455
          %461 = dma.hbm_to_vmem [thread:$0]  %s454, 256, %s456, %s444, 128, 128, 8
        $region56: #{_lambda_.1} parent=47 // pred_fallthru
          _
        // Predicated region
        $region57: #{_lambda_.1} parent=47 // pred_check
          %p462 = pneg %p102
        $region58: #{_lambda_.1} parent=47 // pred_check_branch
          %464 = sbr.rel (%p462) target = $region60
        $region59: #{_lambda_.1} parent=47 // pred_region
          %s465 = sand.u32 %s30, 1
          %s466 = scalar_lea.sflag [#allocation6], %s465
          %s467 = sand.u32 %s92, 1
          %s468 = smul.addr %s467, 8
          %s469 = scalar_lea.vmem [#allocation7], %s468
          %471 = vsyncadd %s466, 0
          %s472 = smul.addr %s30, 8
          %s473 = scalar_lea.hbm %s2, %s472
          %s475 = sshll.u32 %s473, 4
          %s476 = int_to_ptr.hbm [resolvable:$true] %s475
          %s477 = sshll.u32 %s469, 4
          %s478 = int_to_ptr.vmem [resolvable:$true] %s477
          %480 = dma.hbm_to_vmem [thread:$0]  %s476, 128, %s478, %s466
        $region60: #{_lambda_.1} parent=47 // pred_fallthru
          _
      $region48: #{_lambda_.1} parent=5 // pred_fallthru
        _
      %p481 = scmp.le.s32.totalorder 1, %s30
      %p482 = scmp.lt.s32.totalorder %s30, 3
      %p483 = pnand %p481, %p482
      %p484 = pneg %p483
      // Predicated region
      $region61: #{_lambda_.1} parent=5 // pred_check
        _
      $region62: #{_lambda_.1} parent=5 // pred_check_branch
        %486 = sbr.rel (%p483) target = $region64
      $region63: #{_lambda_.1} parent=5 // pred_region
        %s487 = ssub.s32 %s30, 1
        %s488 = sand.u32 %s43, 1
        %s489 = scalar_lea.sflag [#allocation3], %s488
        %s490 = sand.u32 %s43, 1
        %s491 = smul.addr %s490, 16
        %s492 = scalar_lea.vmem [#allocation2], %s491
        // Predicated region
        $region65: #{_lambda_.1} parent=63 // pred_check
          %p493 = pneg %p56
        $region66: #{_lambda_.1} parent=63 // pred_check_branch
          %495 = sbr.rel (%p493) target = $region68
        $region67: #{_lambda_.1} parent=63 // pred_region
          %497 = dma.done %s489, 256
        $region68: #{_lambda_.1} parent=63 // pred_fallthru
          _
        %s498 = sand.u32 %s35, 1
        %s499 = scalar_lea.sflag [#allocation6], %s498
        %s500 = sand.u32 %s69, 1
        %s501 = smul.addr %s500, 16
        %s502 = scalar_lea.vmem [#allocation5], %s501
        // Predicated region
        $region69: #{_lambda_.1} parent=63 // pred_check
          %p503 = pneg %p82
        $region70: #{_lambda_.1} parent=63 // pred_check_branch
          %505 = sbr.rel (%p503) target = $region72
        $region71: #{_lambda_.1} parent=63 // pred_region
          %507 = dma.done %s499, 256
        $region72: #{_lambda_.1} parent=63 // pred_fallthru
          _
        %s508 = sand.u32 %s35, 1
        %s509 = scalar_lea.sflag [#allocation6], %s508
        %s510 = sand.u32 %s95, 1
        %s511 = smul.addr %s510, 8
        %s512 = scalar_lea.vmem [#allocation7], %s511
        // Predicated region
        $region73: #{_lambda_.1} parent=63 // pred_check
          %p513 = pneg %p108
        $region74: #{_lambda_.1} parent=63 // pred_check_branch
          %515 = sbr.rel (%p513) target = $region76
        $region75: #{_lambda_.1} parent=63 // pred_region
          %517 = dma.done %s509, 128
        $region76: #{_lambda_.1} parent=63 // pred_fallthru
          _
        // Predicated region
        $region77: #{_lambda_.1} parent=63 // pred_check
          %p518 = pneg %p129
        $region78: #{_lambda_.1} parent=63 // pred_check_branch
          %520 = sbr.rel (%p518) target = $region80
        $region79: #{_lambda_.1} parent=63 // pred_region
          %522 = dma.done [#allocation9], 1024
        $region80: #{_lambda_.1} parent=63 // pred_fallthru
          _
        // Predicated region
        $region81: #{_lambda_.1} parent=63 // pred_check
          %p523 = pneg %p150
        $region82: #{_lambda_.1} parent=63 // pred_check_branch
          %525 = sbr.rel (%p523) target = $region84
        $region83: #{_lambda_.1} parent=63 // pred_region
          %527 = dma.done [#allocation9], 1024
        $region84: #{_lambda_.1} parent=63 // pred_fallthru
          _
        // Predicated region
        $region85: #{_lambda_.1} parent=63 // pred_check
          %p528 = pneg %p171
        $region86: #{_lambda_.1} parent=63 // pred_check_branch
          %530 = sbr.rel (%p528) target = $region88
        $region87: #{_lambda_.1} parent=63 // pred_region
          %532 = dma.done [#allocation12], 256
        $region88: #{_lambda_.1} parent=63 // pred_fallthru
          _
        // Predicated region
        $region89: #{_lambda_.1} parent=63 // pred_check
          %p533 = pneg %p192
        $region90: #{_lambda_.1} parent=63 // pred_check_branch
          %535 = sbr.rel (%p533) target = $region92
        $region91: #{_lambda_.1} parent=63 // pred_region
          %537 = dma.done [#allocation12], 128
        $region92: #{_lambda_.1} parent=63 // pred_fallthru
          _
        // Predicated region
        $region93: #{_lambda_.1} parent=63 // pred_check
          %p538 = pneg %p213
        $region94: #{_lambda_.1} parent=63 // pred_check_branch
          %540 = sbr.rel (%p538) target = $region96
        $region95: #{_lambda_.1} parent=63 // pred_region
          %542 = dma.done [#allocation15], 512
        $region96: #{_lambda_.1} parent=63 // pred_fallthru
          _
        // Predicated region
        $region97: #{_lambda_.1} parent=63 // pred_check
          %p543 = pneg %p234
        $region98: #{_lambda_.1} parent=63 // pred_check_branch
          %545 = sbr.rel (%p543) target = $region100
        $region99: #{_lambda_.1} parent=63 // pred_region
          %547 = dma.done [#allocation15], 512
        $region100: #{_lambda_.1} parent=63 // pred_fallthru
          _
        // Predicated region
        $region101: #{_lambda_.1} parent=63 // pred_check
          %p548 = pneg %p276
        $region102: #{_lambda_.1} parent=63 // pred_check_branch
          %550 = sbr.rel (%p548) target = $region104
        $region103: #{_lambda_.1} parent=63 // pred_region
          %552 = dma.done [#allocation18], 64
        $region104: #{_lambda_.1} parent=63 // pred_fallthru
          _
        %s553 = sand.u32 %s43, 1
        %s554 = scalar_lea.sflag [#allocation3], %s553
        %s555 = sand.u32 %s43, 1
        %s556 = smul.addr %s555, 16
        %s557 = scalar_lea.vmem [#allocation2], %s556
        %p558 = pneg %p56
        %p559 = pneg %p53
        %s560 = sand.u32 %s35, 1
        %s561 = scalar_lea.sflag [#allocation6], %s560
        %s562 = sand.u32 %s69, 1
        %s563 = smul.addr %s562, 16
        %s564 = scalar_lea.vmem [#allocation5], %s563
        %p565 = pneg %p82
        %p566 = pneg %p79
        %s567 = sand.u32 %s35, 1
        %s568 = scalar_lea.sflag [#allocation6], %s567
        %s569 = sand.u32 %s95, 1
        %s570 = smul.addr %s569, 8
        %s571 = scalar_lea.vmem [#allocation7], %s570
        %p572 = pneg %p108
        %p573 = pneg %p105
        %p574 = pneg %p129
        %p575 = pneg %p126
        %p576 = pneg %p150
        %p577 = pneg %p147
        %p578 = pneg %p171
        %p579 = pneg %p168
        %p580 = pneg %p192
        %p581 = pneg %p189
        %p582 = pneg %p213
        %p583 = pneg %p210
        %p584 = pneg %p234
        %p585 = pneg %p231
        %p586 = pneg %p255
        %p587 = pneg %p252
        %p588 = pneg %p276
        %p589 = pneg %p273
        %p590 = pneg %p302
        %p591 = pneg %p299
        %s592 = sand.u32 %s289, 1
        %s593 = scalar_lea.sflag [#allocation4], %s592
        %s594 = sand.u32 %s289, 1
        %s595 = smul.addr %s594, 4
        %s596 = scalar_lea.vmem [#allocation19], %s595
        %v597 = vld [vmem:[%s492] sm:$0xff]
        %v598 = vld [vmem:[%s492 + $0x8] sm:$0xff]
        %v599 = vld [vmem:[#allocation8] sm:$0xff]
        %v600 = vld [vmem:[#allocation8 + $0x8] sm:$0xff]
        %v601 = vld [vmem:[#allocation8 + $0x10] sm:$0xff]
        %v602 = vld [vmem:[#allocation8 + $0x18] sm:$0xff]
        %v603 = vld [vmem:[#allocation8 + $0x20] sm:$0xff]
        %v604 = vld [vmem:[#allocation8 + $0x28] sm:$0xff]
        %v605 = vld [vmem:[#allocation8 + $0x30] sm:$0xff]
        %v606 = vld [vmem:[#allocation8 + $0x38] sm:$0xff]
        %v607 = vld [vmem:[#allocation10] sm:$0xff]
        %v608 = vld [vmem:[#allocation10 + $0x8] sm:$0xff]
        %v609 = vld [vmem:[#allocation10 + $0x10] sm:$0xff]
        %v610 = vld [vmem:[#allocation10 + $0x18] sm:$0xff]
        %v611 = vld [vmem:[#allocation10 + $0x20] sm:$0xff]
        %v612 = vld [vmem:[#allocation10 + $0x28] sm:$0xff]
        %v613 = vld [vmem:[#allocation10 + $0x30] sm:$0xff]
        %v614 = vld [vmem:[#allocation10 + $0x38] sm:$0xff]
        %v615 = vld [vmem:[#allocation11] sm:$0xff]
        %v616 = vld [vmem:[#allocation11 + $0x8] sm:$0xff]
        %v617 = vld [vmem:[#allocation13] sm:$0xff]
        %vm618 = vcmp.ge.f32.partialorder %v597, 0.0
        %vm619 = vcmp.ge.f32.partialorder %v598, 0.0
        %v620 = vmul.f32 %v597, 0.2
        %v621 = vmul.f32 %v598, 0.2
        %v622 = vsel %vm618, %v597, %v620
        %v623 = vsel %vm619, %v598, %v621
        %626 = vrot.lane.b32.xlu0 %v622, 1
        %v627 = vpop.permute.xlu0 %626
        %628 = vrot.lane.b32.xlu0 %v623, 1
        %v629 = vpop.permute.xlu0 %628
        %vm632 = vcmask 7168
        %v633 = vsel %vm632, %v622, %v627
        %v634 = vsel %vm632, %v623, %v629
        %635 = vrot.lane.b32.xlu0 %v622, 127
        %v636 = vpop.permute.xlu0 %635
        %637 = vrot.lane.b32.xlu0 %v623, 127
        %v638 = vpop.permute.xlu0 %637
        %vm641 = vcmask 252928
        %v642 = vsel %vm641, %v636, %v622
        %v643 = vsel %vm641, %v638, %v623
        %645 = vset.pattern.permute.xlu0 0
        %646 = vperm.xlu0 %645, %v607
        %v647 = vpop.permute.xlu0 %646
        %650 = vset.pattern.permute.xlu0 0
        %651 = vperm.xlu0 %650, %v608
        %v652 = vpop.permute.xlu0 %651
        %vm654 = vcmask 392192
        %v656 = vsel %vm654, %v599, 0
        %v659 = vsel %vm654, %v600, 0
        %661 = vmatpush.msra.mxu0 0.0
        %662 = vmatpush.msra.mxu0 0.0
        %663 = vmatpush.msra.mxu0 0.0
        %664 = vmatpush.msra.mxu0 0.0
        %665 = vmatpush.msra.mxu0 0.0
        %666 = vmatpush.msra.mxu0 0.0
        %667 = vmatpush.msra.mxu0 0.0
        %668 = vmatpush.msra.mxu0 0.0
        %669 = vmatpush.msra.mxu0 0.0
        %670 = vmatpush.msra.mxu0 0.0
        %v671 = vand.u32 %v643, 4294901760
        %672 = vmatpush.msra.mxu0 %v671
        %v673 = vand.u32 %v642, 4294901760
        %674 = vmatpush.msra.mxu0 %v673
        %v675 = vand.u32 %v623, 4294901760
        %676 = vmatpush.msra.mxu0 %v675
        %v677 = vand.u32 %v622, 4294901760
        %678 = vmatpush.msra.mxu0 %v677
        %v679 = vand.u32 %v634, 4294901760
        %680 = vmatpush.msra.mxu0 %v679
        %v681 = vand.u32 %v633, 4294901760
        %682 = vmatpush.msra.mxu0 %v681
        %v683 = vand.u32 %v656, 4294901760
        %v684 = vsub.f32 %v656, %v683
        %v685 = vand.u32 %v684, 4294901760
        %v686 = vsub.f32 %v684, %v685
        %v687 = vand.u32 %v686, 4294901760
        %688 = vmatmul.f32.gmra.mxu0 %v687
        %v689 = vpop.f32.mrf.mxu0
        %v690 = vadd.f32 %v647, %v689
        %v691 = vand.u32 %v659, 4294901760
        %v692 = vsub.f32 %v659, %v691
        %v693 = vand.u32 %v692, 4294901760
        %v694 = vsub.f32 %v692, %v693
        %v695 = vand.u32 %v694, 4294901760
        %696 = vmatmul.f32.gmra.mxu0 %v695
        %v697 = vpop.f32.mrf.mxu0
        %v698 = vadd.f32 %v652, %v697
        %699 = vdwg.mxu0
        %700 = vmatpush.msra.mxu0 0.0
        %701 = vmatpush.msra.mxu0 0.0
        %702 = vmatpush.msra.mxu0 0.0
        %703 = vmatpush.msra.mxu0 0.0
        %704 = vmatpush.msra.mxu0 0.0
        %705 = vmatpush.msra.mxu0 0.0
        %706 = vmatpush.msra.mxu0 0.0
        %707 = vmatpush.msra.mxu0 0.0
        %708 = vmatpush.msra.mxu0 0.0
        %709 = vmatpush.msra.mxu0 0.0
        %v710 = vand.u32 %v643, 4294901760
        %v711 = vsub.f32 %v643, %v710
        %v712 = vand.u32 %v711, 4294901760
        %v713 = vsub.f32 %v711, %v712
        %v714 = vand.u32 %v713, 4294901760
        %715 = vmatpush.msra.mxu0 %v714
        %v716 = vand.u32 %v642, 4294901760
        %v717 = vsub.f32 %v642, %v716
        %v718 = vand.u32 %v717, 4294901760
        %v719 = vsub.f32 %v717, %v718
        %v720 = vand.u32 %v719, 4294901760
        %721 = vmatpush.msra.mxu0 %v720
        %v722 = vand.u32 %v623, 4294901760
        %v723 = vsub.f32 %v623, %v722
        %v724 = vand.u32 %v723, 4294901760
        %v725 = vsub.f32 %v723, %v724
        %v726 = vand.u32 %v725, 4294901760
        %727 = vmatpush.msra.mxu0 %v726
        %v728 = vand.u32 %v622, 4294901760
        %v729 = vsub.f32 %v622, %v728
        %v730 = vand.u32 %v729, 4294901760
        %v731 = vsub.f32 %v729, %v730
        %v732 = vand.u32 %v731, 4294901760
        %733 = vmatpush.msra.mxu0 %v732
        %v734 = vand.u32 %v634, 4294901760
        %v735 = vsub.f32 %v634, %v734
        %v736 = vand.u32 %v735, 4294901760
        %v737 = vsub.f32 %v735, %v736
        %v738 = vand.u32 %v737, 4294901760
        %739 = vmatpush.msra.mxu0 %v738
        %v740 = vand.u32 %v633, 4294901760
        %v741 = vsub.f32 %v633, %v740
        %v742 = vand.u32 %v741, 4294901760
        %v743 = vsub.f32 %v741, %v742
        %v744 = vand.u32 %v743, 4294901760
        %745 = vmatpush.msra.mxu0 %v744
        %v746 = vand.u32 %v656, 4294901760
        %747 = vmatmul.f32.gmra.mxu0 %v746
        %v748 = vpop.f32.mrf.mxu0
        %v749 = vadd.f32 %v690, %v748
        %v750 = vand.u32 %v659, 4294901760
        %751 = vmatmul.f32.gmra.mxu0 %v750
        %v752 = vpop.f32.mrf.mxu0
        %v753 = vadd.f32 %v698, %v752
        %754 = vdwg.mxu0
        %755 = vmatpush.msra.mxu0 0.0
        %756 = vmatpush.msra.mxu0 0.0
        %757 = vmatpush.msra.mxu0 0.0
        %758 = vmatpush.msra.mxu0 0.0
        %759 = vmatpush.msra.mxu0 0.0
        %760 = vmatpush.msra.mxu0 0.0
        %761 = vmatpush.msra.mxu0 0.0
        %762 = vmatpush.msra.mxu0 0.0
        %763 = vmatpush.msra.mxu0 0.0
        %764 = vmatpush.msra.mxu0 0.0
        %v765 = vand.u32 %v643, 4294901760
        %v766 = vsub.f32 %v643, %v765
        %767 = vmatpush.msra.mxu0 %v766
        %v768 = vand.u32 %v642, 4294901760
        %v769 = vsub.f32 %v642, %v768
        %770 = vmatpush.msra.mxu0 %v769
        %v771 = vand.u32 %v623, 4294901760
        %v772 = vsub.f32 %v623, %v771
        %773 = vmatpush.msra.mxu0 %v772
        %v774 = vand.u32 %v622, 4294901760
        %v775 = vsub.f32 %v622, %v774
        %776 = vmatpush.msra.mxu0 %v775
        %v777 = vand.u32 %v634, 4294901760
        %v778 = vsub.f32 %v634, %v777
        %779 = vmatpush.msra.mxu0 %v778
        %v780 = vand.u32 %v633, 4294901760
        %v781 = vsub.f32 %v633, %v780
        %782 = vmatpush.msra.mxu0 %v781
        %v783 = vand.u32 %v656, 4294901760
        %v784 = vsub.f32 %v656, %v783
        %785 = vmatmul.f32.gmra.mxu0 %v784
        %v786 = vpop.f32.mrf.mxu0
        %v787 = vadd.f32 %v749, %v786
        %v788 = vand.u32 %v659, 4294901760
        %v789 = vsub.f32 %v659, %v788
        %790 = vmatmul.f32.gmra.mxu0 %v789
        %v791 = vpop.f32.mrf.mxu0
        %v792 = vadd.f32 %v753, %v791
        %793 = vdwg.mxu0
        %794 = vmatpush.msra.mxu0 0.0
        %795 = vmatpush.msra.mxu0 0.0
        %796 = vmatpush.msra.mxu0 0.0
        %797 = vmatpush.msra.mxu0 0.0
        %798 = vmatpush.msra.mxu0 0.0
        %799 = vmatpush.msra.mxu0 0.0
        %800 = vmatpush.msra.mxu0 0.0
        %801 = vmatpush.msra.mxu0 0.0
        %802 = vmatpush.msra.mxu0 0.0
        %803 = vmatpush.msra.mxu0 0.0
        %v804 = vand.u32 %v643, 4294901760
        %805 = vmatpush.msra.mxu0 %v804
        %v806 = vand.u32 %v642, 4294901760
        %807 = vmatpush.msra.mxu0 %v806
        %v808 = vand.u32 %v623, 4294901760
        %809 = vmatpush.msra.mxu0 %v808
        %v810 = vand.u32 %v622, 4294901760
        %811 = vmatpush.msra.mxu0 %v810
        %v812 = vand.u32 %v634, 4294901760
        %813 = vmatpush.msra.mxu0 %v812
        %v814 = vand.u32 %v633, 4294901760
        %815 = vmatpush.msra.mxu0 %v814
        %v816 = vand.u32 %v656, 4294901760
        %v817 = vsub.f32 %v656, %v816
        %v818 = vand.u32 %v817, 4294901760
        %819 = vmatmul.f32.gmra.mxu0 %v818
        %v820 = vpop.f32.mrf.mxu0
        %v821 = vadd.f32 %v787, %v820
        %v822 = vand.u32 %v659, 4294901760
        %v823 = vsub.f32 %v659, %v822
        %v824 = vand.u32 %v823, 4294901760
        %825 = vmatmul.f32.gmra.mxu0 %v824
        %v826 = vpop.f32.mrf.mxu0
        %v827 = vadd.f32 %v792, %v826
        %828 = vdwg.mxu0
        %829 = vmatpush.msra.mxu0 0.0
        %830 = vmatpush.msra.mxu0 0.0
        %831 = vmatpush.msra.mxu0 0.0
        %832 = vmatpush.msra.mxu0 0.0
        %833 = vmatpush.msra.mxu0 0.0
        %834 = vmatpush.msra.mxu0 0.0
        %835 = vmatpush.msra.mxu0 0.0
        %836 = vmatpush.msra.mxu0 0.0
        %837 = vmatpush.msra.mxu0 0.0
        %838 = vmatpush.msra.mxu0 0.0
        %v839 = vand.u32 %v643, 4294901760
        %v840 = vsub.f32 %v643, %v839
        %v841 = vand.u32 %v840, 4294901760
        %842 = vmatpush.msra.mxu0 %v841
        %v843 = vand.u32 %v642, 4294901760
        %v844 = vsub.f32 %v642, %v843
        %v845 = vand.u32 %v844, 4294901760
        %846 = vmatpush.msra.mxu0 %v845
        %v847 = vand.u32 %v623, 4294901760
        %v848 = vsub.f32 %v623, %v847
        %v849 = vand.u32 %v848, 4294901760
        %850 = vmatpush.msra.mxu0 %v849
        %v851 = vand.u32 %v622, 4294901760
        %v852 = vsub.f32 %v622, %v851
        %v853 = vand.u32 %v852, 4294901760
        %854 = vmatpush.msra.mxu0 %v853
        %v855 = vand.u32 %v634, 4294901760
        %v856 = vsub.f32 %v634, %v855
        %v857 = vand.u32 %v856, 4294901760
        %858 = vmatpush.msra.mxu0 %v857
        %v859 = vand.u32 %v633, 4294901760
        %v860 = vsub.f32 %v633, %v859
        %v861 = vand.u32 %v860, 4294901760
        %862 = vmatpush.msra.mxu0 %v861
        %v863 = vand.u32 %v656, 4294901760
        %864 = vmatmul.f32.gmra.mxu0 %v863
        %v865 = vpop.f32.mrf.mxu0
        %v866 = vadd.f32 %v821, %v865
        %v867 = vand.u32 %v659, 4294901760
        %868 = vmatmul.f32.gmra.mxu0 %v867
        %v869 = vpop.f32.mrf.mxu0
        %v870 = vadd.f32 %v827, %v869
        %871 = vdwg.mxu0
        %872 = vmatpush.msra.mxu0 0.0
        %873 = vmatpush.msra.mxu0 0.0
        %874 = vmatpush.msra.mxu0 0.0
        %875 = vmatpush.msra.mxu0 0.0
        %876 = vmatpush.msra.mxu0 0.0
        %877 = vmatpush.msra.mxu0 0.0
        %878 = vmatpush.msra.mxu0 0.0
        %879 = vmatpush.msra.mxu0 0.0
        %880 = vmatpush.msra.mxu0 0.0
        %881 = vmatpush.msra.mxu0 0.0
        %v882 = vand.u32 %v643, 4294901760
        %883 = vmatpush.msra.mxu0 %v882
        %v884 = vand.u32 %v642, 4294901760
        %885 = vmatpush.msra.mxu0 %v884
        %v886 = vand.u32 %v623, 4294901760
        %887 = vmatpush.msra.mxu0 %v886
        %v888 = vand.u32 %v622, 4294901760
        %889 = vmatpush.msra.mxu0 %v888
        %v890 = vand.u32 %v634, 4294901760
        %891 = vmatpush.msra.mxu0 %v890
        %v892 = vand.u32 %v633, 4294901760
        %893 = vmatpush.msra.mxu0 %v892
        %v894 = vand.u32 %v656, 4294901760
        %895 = vmatmul.f32.gmra.mxu0 %v894
        %v896 = vpop.f32.mrf.mxu0
        %v897 = vadd.f32 %v866, %v896
        %v898 = vand.u32 %v659, 4294901760
        %899 = vmatmul.f32.gmra.mxu0 %v898
        %v900 = vpop.f32.mrf.mxu0
        %v901 = vadd.f32 %v870, %v900
        %902 = vdwg.mxu0
        %vm903 = vcmp.ge.f32.partialorder %v897, 0.0
        %vm904 = vcmp.ge.f32.partialorder %v901, 0.0
        %v905 = vmul.f32 %v897, 0.2
        %v906 = vmul.f32 %v901, 0.2
        %v907 = vsel %vm903, %v897, %v905
        %v908 = vsel %vm904, %v901, %v906
        %909 = vset.pattern.permute.xlu0 1
        %910 = vperm.xlu0 %909, %v607
        %v911 = vpop.permute.xlu0 %910
        %913 = vset.pattern.permute.xlu0 1
        %914 = vperm.xlu0 %913, %v608
        %v915 = vpop.permute.xlu0 %914
        %917 = vrot.lane.b32.xlu0 %v599, 80
        %v918 = vpop.permute.xlu0 %917
        %919 = vrot.lane.b32.xlu0 %v600, 80
        %v920 = vpop.permute.xlu0 %919
        %vm921 = vcmask 261120
        %v922 = vsel %vm921, %v918, 0
        %v924 = vsel %vm921, %v920, 0
        %926 = vmatpush.msra.mxu0 0.0
        %927 = vmatpush.msra.mxu0 0.0
        %928 = vmatpush.msra.mxu0 0.0
        %929 = vmatpush.msra.mxu0 0.0
        %930 = vmatpush.msra.mxu0 0.0
        %931 = vmatpush.msra.mxu0 0.0
        %932 = vmatpush.msra.mxu0 0.0
        %933 = vmatpush.msra.mxu0 0.0
        %934 = vmatpush.msra.mxu0 0.0
        %935 = vmatpush.msra.mxu0 0.0
        %936 = vmatpush.msra.mxu0 0.0
        %937 = vmatpush.msra.mxu0 0.0
        %v938 = vand.u32 %v598, 4294901760
        %939 = vmatpush.msra.mxu0 %v938
        %v940 = vand.u32 %v597, 4294901760
        %941 = vmatpush.msra.mxu0 %v940
        %v942 = vand.u32 %v908, 4294901760
        %943 = vmatpush.msra.mxu0 %v942
        %v944 = vand.u32 %v907, 4294901760
        %945 = vmatpush.msra.mxu0 %v944
        %v946 = vand.u32 %v922, 4294901760
        %v947 = vsub.f32 %v922, %v946
        %v948 = vand.u32 %v947, 4294901760
        %v949 = vsub.f32 %v947, %v948
        %v950 = vand.u32 %v949, 4294901760
        %951 = vmatmul.f32.gmra.mxu0 %v950
        %v952 = vpop.f32.mrf.mxu0
        %v953 = vadd.f32 %v911, %v952
        %v954 = vand.u32 %v924, 4294901760
        %v955 = vsub.f32 %v924, %v954
        %v956 = vand.u32 %v955, 4294901760
        %v957 = vsub.f32 %v955, %v956
        %v958 = vand.u32 %v957, 4294901760
        %959 = vmatmul.f32.gmra.mxu0 %v958
        %v960 = vpop.f32.mrf.mxu0
        %v961 = vadd.f32 %v915, %v960
        %962 = vdwg.mxu0
        %963 = vmatpush.msra.mxu0 0.0
        %964 = vmatpush.msra.mxu0 0.0
        %965 = vmatpush.msra.mxu0 0.0
        %966 = vmatpush.msra.mxu0 0.0
        %967 = vmatpush.msra.mxu0 0.0
        %968 = vmatpush.msra.mxu0 0.0
        %969 = vmatpush.msra.mxu0 0.0
        %970 = vmatpush.msra.mxu0 0.0
        %971 = vmatpush.msra.mxu0 0.0
        %972 = vmatpush.msra.mxu0 0.0
        %973 = vmatpush.msra.mxu0 0.0
        %974 = vmatpush.msra.mxu0 0.0
        %v975 = vand.u32 %v598, 4294901760
        %v976 = vsub.f32 %v598, %v975
        %v977 = vand.u32 %v976, 4294901760
        %v978 = vsub.f32 %v976, %v977
        %v979 = vand.u32 %v978, 4294901760
        %980 = vmatpush.msra.mxu0 %v979
        %v981 = vand.u32 %v597, 4294901760
        %v982 = vsub.f32 %v597, %v981
        %v983 = vand.u32 %v982, 4294901760
        %v984 = vsub.f32 %v982, %v983
        %v985 = vand.u32 %v984, 4294901760
        %986 = vmatpush.msra.mxu0 %v985
        %v987 = vand.u32 %v908, 4294901760
        %v988 = vsub.f32 %v908, %v987
        %v989 = vand.u32 %v988, 4294901760
        %v990 = vsub.f32 %v988, %v989
        %v991 = vand.u32 %v990, 4294901760
        %992 = vmatpush.msra.mxu0 %v991
        %v993 = vand.u32 %v907, 4294901760
        %v994 = vsub.f32 %v907, %v993
        %v995 = vand.u32 %v994, 4294901760
        %v996 = vsub.f32 %v994, %v995
        %v997 = vand.u32 %v996, 4294901760
        %998 = vmatpush.msra.mxu0 %v997
        %v999 = vand.u32 %v922, 4294901760
        %1000 = vmatmul.f32.gmra.mxu0 %v999
        %v1001 = vpop.f32.mrf.mxu0
        %v1002 = vadd.f32 %v953, %v1001
        %v1003 = vand.u32 %v924, 4294901760
        %1004 = vmatmul.f32.gmra.mxu0 %v1003
        %v1005 = vpop.f32.mrf.mxu0
        %v1006 = vadd.f32 %v961, %v1005
        %1007 = vdwg.mxu0
        %1008 = vmatpush.msra.mxu0 0.0
        %1009 = vmatpush.msra.mxu0 0.0
        %1010 = vmatpush.msra.mxu0 0.0
        %1011 = vmatpush.msra.mxu0 0.0
        %1012 = vmatpush.msra.mxu0 0.0
        %1013 = vmatpush.msra.mxu0 0.0
        %1014 = vmatpush.msra.mxu0 0.0
        %1015 = vmatpush.msra.mxu0 0.0
        %1016 = vmatpush.msra.mxu0 0.0
        %1017 = vmatpush.msra.mxu0 0.0
        %1018 = vmatpush.msra.mxu0 0.0
        %1019 = vmatpush.msra.mxu0 0.0
        %v1020 = vand.u32 %v598, 4294901760
        %v1021 = vsub.f32 %v598, %v1020
        %1022 = vmatpush.msra.mxu0 %v1021
        %v1023 = vand.u32 %v597, 4294901760
        %v1024 = vsub.f32 %v597, %v1023
        %1025 = vmatpush.msra.mxu0 %v1024
        %v1026 = vand.u32 %v908, 4294901760
        %v1027 = vsub.f32 %v908, %v1026
        %1028 = vmatpush.msra.mxu0 %v1027
        %v1029 = vand.u32 %v907, 4294901760
        %v1030 = vsub.f32 %v907, %v1029
        %1031 = vmatpush.msra.mxu0 %v1030
        %v1032 = vand.u32 %v922, 4294901760
        %v1033 = vsub.f32 %v922, %v1032
        %1034 = vmatmul.f32.gmra.mxu0 %v1033
        %v1035 = vpop.f32.mrf.mxu0
        %v1036 = vadd.f32 %v1002, %v1035
        %v1037 = vand.u32 %v924, 4294901760
        %v1038 = vsub.f32 %v924, %v1037
        %1039 = vmatmul.f32.gmra.mxu0 %v1038
        %v1040 = vpop.f32.mrf.mxu0
        %v1041 = vadd.f32 %v1006, %v1040
        %1042 = vdwg.mxu0
        %1043 = vmatpush.msra.mxu0 0.0
        %1044 = vmatpush.msra.mxu0 0.0
        %1045 = vmatpush.msra.mxu0 0.0
        %1046 = vmatpush.msra.mxu0 0.0
        %1047 = vmatpush.msra.mxu0 0.0
        %1048 = vmatpush.msra.mxu0 0.0
        %1049 = vmatpush.msra.mxu0 0.0
        %1050 = vmatpush.msra.mxu0 0.0
        %1051 = vmatpush.msra.mxu0 0.0
        %1052 = vmatpush.msra.mxu0 0.0
        %1053 = vmatpush.msra.mxu0 0.0
        %1054 = vmatpush.msra.mxu0 0.0
        %v1055 = vand.u32 %v598, 4294901760
        %1056 = vmatpush.msra.mxu0 %v1055
        %v1057 = vand.u32 %v597, 4294901760
        %1058 = vmatpush.msra.mxu0 %v1057
        %v1059 = vand.u32 %v908, 4294901760
        %1060 = vmatpush.msra.mxu0 %v1059
        %v1061 = vand.u32 %v907, 4294901760
        %1062 = vmatpush.msra.mxu0 %v1061
        %v1063 = vand.u32 %v922, 4294901760
        %v1064 = vsub.f32 %v922, %v1063
        %v1065 = vand.u32 %v1064, 4294901760
        %1066 = vmatmul.f32.gmra.mxu0 %v1065
        %v1067 = vpop.f32.mrf.mxu0
        %v1068 = vadd.f32 %v1036, %v1067
        %v1069 = vand.u32 %v924, 4294901760
        %v1070 = vsub.f32 %v924, %v1069
        %v1071 = vand.u32 %v1070, 4294901760
        %1072 = vmatmul.f32.gmra.mxu0 %v1071
        %v1073 = vpop.f32.mrf.mxu0
        %v1074 = vadd.f32 %v1041, %v1073
        %1075 = vdwg.mxu0
        %1076 = vmatpush.msra.mxu0 0.0
        %1077 = vmatpush.msra.mxu0 0.0
        %1078 = vmatpush.msra.mxu0 0.0
        %1079 = vmatpush.msra.mxu0 0.0
        %1080 = vmatpush.msra.mxu0 0.0
        %1081 = vmatpush.msra.mxu0 0.0
        %1082 = vmatpush.msra.mxu0 0.0
        %1083 = vmatpush.msra.mxu0 0.0
        %1084 = vmatpush.msra.mxu0 0.0
        %1085 = vmatpush.msra.mxu0 0.0
        %1086 = vmatpush.msra.mxu0 0.0
        %1087 = vmatpush.msra.mxu0 0.0
        %v1088 = vand.u32 %v598, 4294901760
        %v1089 = vsub.f32 %v598, %v1088
        %v1090 = vand.u32 %v1089, 4294901760
        %1091 = vmatpush.msra.mxu0 %v1090
        %v1092 = vand.u32 %v597, 4294901760
        %v1093 = vsub.f32 %v597, %v1092
        %v1094 = vand.u32 %v1093, 4294901760
        %1095 = vmatpush.msra.mxu0 %v1094
        %v1096 = vand.u32 %v908, 4294901760
        %v1097 = vsub.f32 %v908, %v1096
        %v1098 = vand.u32 %v1097, 4294901760
        %1099 = vmatpush.msra.mxu0 %v1098
        %v1100 = vand.u32 %v907, 4294901760
        %v1101 = vsub.f32 %v907, %v1100
        %v1102 = vand.u32 %v1101, 4294901760
        %1103 = vmatpush.msra.mxu0 %v1102
        %v1104 = vand.u32 %v922, 4294901760
        %1105 = vmatmul.f32.gmra.mxu0 %v1104
        %v1106 = vpop.f32.mrf.mxu0
        %v1107 = vadd.f32 %v1068, %v1106
        %v1108 = vand.u32 %v924, 4294901760
        %1109 = vmatmul.f32.gmra.mxu0 %v1108
        %v1110 = vpop.f32.mrf.mxu0
        %v1111 = vadd.f32 %v1074, %v1110
        %1112 = vdwg.mxu0
        %1113 = vmatpush.msra.mxu0 0.0
        %1114 = vmatpush.msra.mxu0 0.0
        %1115 = vmatpush.msra.mxu0 0.0
        %1116 = vmatpush.msra.mxu0 0.0
        %1117 = vmatpush.msra.mxu0 0.0
        %1118 = vmatpush.msra.mxu0 0.0
        %1119 = vmatpush.msra.mxu0 0.0
        %1120 = vmatpush.msra.mxu0 0.0
        %1121 = vmatpush.msra.mxu0 0.0
        %1122 = vmatpush.msra.mxu0 0.0
        %1123 = vmatpush.msra.mxu0 0.0
        %1124 = vmatpush.msra.mxu0 0.0
        %v1125 = vand.u32 %v598, 4294901760
        %1126 = vmatpush.msra.mxu0 %v1125
        %v1127 = vand.u32 %v597, 4294901760
        %1128 = vmatpush.msra.mxu0 %v1127
        %v1129 = vand.u32 %v908, 4294901760
        %1130 = vmatpush.msra.mxu0 %v1129
        %v1131 = vand.u32 %v907, 4294901760
        %1132 = vmatpush.msra.mxu0 %v1131
        %v1133 = vand.u32 %v922, 4294901760
        %1134 = vmatmul.f32.gmra.mxu0 %v1133
        %v1135 = vpop.f32.mrf.mxu0
        %v1136 = vadd.f32 %v1107, %v1135
        %v1137 = vand.u32 %v924, 4294901760
        %1138 = vmatmul.f32.gmra.mxu0 %v1137
        %v1139 = vpop.f32.mrf.mxu0
        %v1140 = vadd.f32 %v1111, %v1139
        %1141 = vdwg.mxu0
        %vm1142 = vcmp.ge.f32.partialorder %v1136, 0.0
        %vm1143 = vcmp.ge.f32.partialorder %v1140, 0.0
        %v1144 = vmul.f32 %v1136, 0.2
        %v1145 = vmul.f32 %v1140, 0.2
        %v1146 = vsel %vm1142, %v1136, %v1144
        %v1147 = vsel %vm1143, %v1140, %v1145
        %1149 = vset.pattern.permute.xlu0 0
        %1150 = vperm.xlu0 %1149, %v1146
        %v1151 = vpop.permute.xlu0 %1150
        %1154 = vset.pattern.permute.xlu0 0
        %1155 = vperm.xlu0 %1154, %v1147
        %v1156 = vpop.permute.xlu0 %1155
        %1158 = vrot.lane.b32.xlu0 %v1146, 3
        %v1159 = vpop.permute.xlu0 %1158
        %1160 = vrot.lane.b32.xlu0 %v1147, 3
        %v1161 = vpop.permute.xlu0 %1160
        %vm1164 = vcmask 23552
        %v1165 = vsel %vm1164, %v1151, %v1159
        %v1166 = vsel %vm1164, %v1156, %v1161
        %1167 = vset.pattern.permute.xlu0 31
        %1168 = vperm.xlu0 %1167, %v1146
        %v1169 = vpop.permute.xlu0 %1168
        %1171 = vset.pattern.permute.xlu0 31
        %1172 = vperm.xlu0 %1171, %v1147
        %v1173 = vpop.permute.xlu0 %1172
        %1175 = vrot.lane.b32.xlu0 %v1146, 125
        %v1176 = vpop.permute.xlu0 %1175
        %1177 = vrot.lane.b32.xlu0 %v1147, 125
        %v1178 = vpop.permute.xlu0 %1177
        %vm1181 = vcmask 236544
        %v1182 = vsel %vm1181, %v1176, %v1169
        %v1183 = vsel %vm1181, %v1178, %v1173
        %1185 = vset.pattern.permute.xlu0 0
        %1186 = vperm.xlu0 %1185, %v609
        %v1187 = vpop.permute.xlu0 %1186
        %1190 = vset.pattern.permute.xlu0 0
        %1191 = vperm.xlu0 %1190, %v610
        %v1192 = vpop.permute.xlu0 %1191
        %v1195 = vsel %vm654, %v601, 0
        %v1198 = vsel %vm654, %v602, 0
        %1200 = vmatpush.msra.mxu0 0.0
        %1201 = vmatpush.msra.mxu0 0.0
        %1202 = vmatpush.msra.mxu0 0.0
        %1203 = vmatpush.msra.mxu0 0.0
        %1204 = vmatpush.msra.mxu0 0.0
        %1205 = vmatpush.msra.mxu0 0.0
        %1206 = vmatpush.msra.mxu0 0.0
        %1207 = vmatpush.msra.mxu0 0.0
        %1208 = vmatpush.msra.mxu0 0.0
        %1209 = vmatpush.msra.mxu0 0.0
        %v1210 = vand.u32 %v1183, 4294901760
        %1211 = vmatpush.msra.mxu0 %v1210
        %v1212 = vand.u32 %v1182, 4294901760
        %1213 = vmatpush.msra.mxu0 %v1212
        %v1214 = vand.u32 %v1147, 4294901760
        %1215 = vmatpush.msra.mxu0 %v1214
        %v1216 = vand.u32 %v1146, 4294901760
        %1217 = vmatpush.msra.mxu0 %v1216
        %v1218 = vand.u32 %v1166, 4294901760
        %1219 = vmatpush.msra.mxu0 %v1218
        %v1220 = vand.u32 %v1165, 4294901760
        %1221 = vmatpush.msra.mxu0 %v1220
        %v1222 = vand.u32 %v1195, 4294901760
        %v1223 = vsub.f32 %v1195, %v1222
        %v1224 = vand.u32 %v1223, 4294901760
        %v1225 = vsub.f32 %v1223, %v1224
        %v1226 = vand.u32 %v1225, 4294901760
        %1227 = vmatmul.f32.gmra.mxu0 %v1226
        %v1228 = vpop.f32.mrf.mxu0
        %v1229 = vadd.f32 %v1187, %v1228
        %v1230 = vand.u32 %v1198, 4294901760
        %v1231 = vsub.f32 %v1198, %v1230
        %v1232 = vand.u32 %v1231, 4294901760
        %v1233 = vsub.f32 %v1231, %v1232
        %v1234 = vand.u32 %v1233, 4294901760
        %1235 = vmatmul.f32.gmra.mxu0 %v1234
        %v1236 = vpop.f32.mrf.mxu0
        %v1237 = vadd.f32 %v1192, %v1236
        %1238 = vdwg.mxu0
        %1239 = vmatpush.msra.mxu0 0.0
        %1240 = vmatpush.msra.mxu0 0.0
        %1241 = vmatpush.msra.mxu0 0.0
        %1242 = vmatpush.msra.mxu0 0.0
        %1243 = vmatpush.msra.mxu0 0.0
        %1244 = vmatpush.msra.mxu0 0.0
        %1245 = vmatpush.msra.mxu0 0.0
        %1246 = vmatpush.msra.mxu0 0.0
        %1247 = vmatpush.msra.mxu0 0.0
        %1248 = vmatpush.msra.mxu0 0.0
        %v1249 = vand.u32 %v1183, 4294901760
        %v1250 = vsub.f32 %v1183, %v1249
        %v1251 = vand.u32 %v1250, 4294901760
        %v1252 = vsub.f32 %v1250, %v1251
        %v1253 = vand.u32 %v1252, 4294901760
        %1254 = vmatpush.msra.mxu0 %v1253
        %v1255 = vand.u32 %v1182, 4294901760
        %v1256 = vsub.f32 %v1182, %v1255
        %v1257 = vand.u32 %v1256, 4294901760
        %v1258 = vsub.f32 %v1256, %v1257
        %v1259 = vand.u32 %v1258, 4294901760
        %1260 = vmatpush.msra.mxu0 %v1259
        %v1261 = vand.u32 %v1147, 4294901760
        %v1262 = vsub.f32 %v1147, %v1261
        %v1263 = vand.u32 %v1262, 4294901760
        %v1264 = vsub.f32 %v1262, %v1263
        %v1265 = vand.u32 %v1264, 4294901760
        %1266 = vmatpush.msra.mxu0 %v1265
        %v1267 = vand.u32 %v1146, 4294901760
        %v1268 = vsub.f32 %v1146, %v1267
        %v1269 = vand.u32 %v1268, 4294901760
        %v1270 = vsub.f32 %v1268, %v1269
        %v1271 = vand.u32 %v1270, 4294901760
        %1272 = vmatpush.msra.mxu0 %v1271
        %v1273 = vand.u32 %v1166, 4294901760
        %v1274 = vsub.f32 %v1166, %v1273
        %v1275 = vand.u32 %v1274, 4294901760
        %v1276 = vsub.f32 %v1274, %v1275
        %v1277 = vand.u32 %v1276, 4294901760
        %1278 = vmatpush.msra.mxu0 %v1277
        %v1279 = vand.u32 %v1165, 4294901760
        %v1280 = vsub.f32 %v1165, %v1279
        %v1281 = vand.u32 %v1280, 4294901760
        %v1282 = vsub.f32 %v1280, %v1281
        %v1283 = vand.u32 %v1282, 4294901760
        %1284 = vmatpush.msra.mxu0 %v1283
        %v1285 = vand.u32 %v1195, 4294901760
        %1286 = vmatmul.f32.gmra.mxu0 %v1285
        %v1287 = vpop.f32.mrf.mxu0
        %v1288 = vadd.f32 %v1229, %v1287
        %v1289 = vand.u32 %v1198, 4294901760
        %1290 = vmatmul.f32.gmra.mxu0 %v1289
        %v1291 = vpop.f32.mrf.mxu0
        %v1292 = vadd.f32 %v1237, %v1291
        %1293 = vdwg.mxu0
        %1294 = vmatpush.msra.mxu0 0.0
        %1295 = vmatpush.msra.mxu0 0.0
        %1296 = vmatpush.msra.mxu0 0.0
        %1297 = vmatpush.msra.mxu0 0.0
        %1298 = vmatpush.msra.mxu0 0.0
        %1299 = vmatpush.msra.mxu0 0.0
        %1300 = vmatpush.msra.mxu0 0.0
        %1301 = vmatpush.msra.mxu0 0.0
        %1302 = vmatpush.msra.mxu0 0.0
        %1303 = vmatpush.msra.mxu0 0.0
        %v1304 = vand.u32 %v1183, 4294901760
        %v1305 = vsub.f32 %v1183, %v1304
        %1306 = vmatpush.msra.mxu0 %v1305
        %v1307 = vand.u32 %v1182, 4294901760
        %v1308 = vsub.f32 %v1182, %v1307
        %1309 = vmatpush.msra.mxu0 %v1308
        %v1310 = vand.u32 %v1147, 4294901760
        %v1311 = vsub.f32 %v1147, %v1310
        %1312 = vmatpush.msra.mxu0 %v1311
        %v1313 = vand.u32 %v1146, 4294901760
        %v1314 = vsub.f32 %v1146, %v1313
        %1315 = vmatpush.msra.mxu0 %v1314
        %v1316 = vand.u32 %v1166, 4294901760
        %v1317 = vsub.f32 %v1166, %v1316
        %1318 = vmatpush.msra.mxu0 %v1317
        %v1319 = vand.u32 %v1165, 4294901760
        %v1320 = vsub.f32 %v1165, %v1319
        %1321 = vmatpush.msra.mxu0 %v1320
        %v1322 = vand.u32 %v1195, 4294901760
        %v1323 = vsub.f32 %v1195, %v1322
        %1324 = vmatmul.f32.gmra.mxu0 %v1323
        %v1325 = vpop.f32.mrf.mxu0
        %v1326 = vadd.f32 %v1288, %v1325
        %v1327 = vand.u32 %v1198, 4294901760
        %v1328 = vsub.f32 %v1198, %v1327
        %1329 = vmatmul.f32.gmra.mxu0 %v1328
        %v1330 = vpop.f32.mrf.mxu0
        %v1331 = vadd.f32 %v1292, %v1330
        %1332 = vdwg.mxu0
        %1333 = vmatpush.msra.mxu0 0.0
        %1334 = vmatpush.msra.mxu0 0.0
        %1335 = vmatpush.msra.mxu0 0.0
        %1336 = vmatpush.msra.mxu0 0.0
        %1337 = vmatpush.msra.mxu0 0.0
        %1338 = vmatpush.msra.mxu0 0.0
        %1339 = vmatpush.msra.mxu0 0.0
        %1340 = vmatpush.msra.mxu0 0.0
        %1341 = vmatpush.msra.mxu0 0.0
        %1342 = vmatpush.msra.mxu0 0.0
        %v1343 = vand.u32 %v1183, 4294901760
        %1344 = vmatpush.msra.mxu0 %v1343
        %v1345 = vand.u32 %v1182, 4294901760
        %1346 = vmatpush.msra.mxu0 %v1345
        %v1347 = vand.u32 %v1147, 4294901760
        %1348 = vmatpush.msra.mxu0 %v1347
        %v1349 = vand.u32 %v1146, 4294901760
        %1350 = vmatpush.msra.mxu0 %v1349
        %v1351 = vand.u32 %v1166, 4294901760
        %1352 = vmatpush.msra.mxu0 %v1351
        %v1353 = vand.u32 %v1165, 4294901760
        %1354 = vmatpush.msra.mxu0 %v1353
        %v1355 = vand.u32 %v1195, 4294901760
        %v1356 = vsub.f32 %v1195, %v1355
        %v1357 = vand.u32 %v1356, 4294901760
        %1358 = vmatmul.f32.gmra.mxu0 %v1357
        %v1359 = vpop.f32.mrf.mxu0
        %v1360 = vadd.f32 %v1326, %v1359
        %v1361 = vand.u32 %v1198, 4294901760
        %v1362 = vsub.f32 %v1198, %v1361
        %v1363 = vand.u32 %v1362, 4294901760
        %1364 = vmatmul.f32.gmra.mxu0 %v1363
        %v1365 = vpop.f32.mrf.mxu0
        %v1366 = vadd.f32 %v1331, %v1365
        %1367 = vdwg.mxu0
        %1368 = vmatpush.msra.mxu0 0.0
        %1369 = vmatpush.msra.mxu0 0.0
        %1370 = vmatpush.msra.mxu0 0.0
        %1371 = vmatpush.msra.mxu0 0.0
        %1372 = vmatpush.msra.mxu0 0.0
        %1373 = vmatpush.msra.mxu0 0.0
        %1374 = vmatpush.msra.mxu0 0.0
        %1375 = vmatpush.msra.mxu0 0.0
        %1376 = vmatpush.msra.mxu0 0.0
        %1377 = vmatpush.msra.mxu0 0.0
        %v1378 = vand.u32 %v1183, 4294901760
        %v1379 = vsub.f32 %v1183, %v1378
        %v1380 = vand.u32 %v1379, 4294901760
        %1381 = vmatpush.msra.mxu0 %v1380
        %v1382 = vand.u32 %v1182, 4294901760
        %v1383 = vsub.f32 %v1182, %v1382
        %v1384 = vand.u32 %v1383, 4294901760
        %1385 = vmatpush.msra.mxu0 %v1384
        %v1386 = vand.u32 %v1147, 4294901760
        %v1387 = vsub.f32 %v1147, %v1386
        %v1388 = vand.u32 %v1387, 4294901760
        %1389 = vmatpush.msra.mxu0 %v1388
        %v1390 = vand.u32 %v1146, 4294901760
        %v1391 = vsub.f32 %v1146, %v1390
        %v1392 = vand.u32 %v1391, 4294901760
        %1393 = vmatpush.msra.mxu0 %v1392
        %v1394 = vand.u32 %v1166, 4294901760
        %v1395 = vsub.f32 %v1166, %v1394
        %v1396 = vand.u32 %v1395, 4294901760
        %1397 = vmatpush.msra.mxu0 %v1396
        %v1398 = vand.u32 %v1165, 4294901760
        %v1399 = vsub.f32 %v1165, %v1398
        %v1400 = vand.u32 %v1399, 4294901760
        %1401 = vmatpush.msra.mxu0 %v1400
        %v1402 = vand.u32 %v1195, 4294901760
        %1403 = vmatmul.f32.gmra.mxu0 %v1402
        %v1404 = vpop.f32.mrf.mxu0
        %v1405 = vadd.f32 %v1360, %v1404
        %v1406 = vand.u32 %v1198, 4294901760
        %1407 = vmatmul.f32.gmra.mxu0 %v1406
        %v1408 = vpop.f32.mrf.mxu0
        %v1409 = vadd.f32 %v1366, %v1408
        %1410 = vdwg.mxu0
        %1411 = vmatpush.msra.mxu0 0.0
        %1412 = vmatpush.msra.mxu0 0.0
        %1413 = vmatpush.msra.mxu0 0.0
        %1414 = vmatpush.msra.mxu0 0.0
        %1415 = vmatpush.msra.mxu0 0.0
        %1416 = vmatpush.msra.mxu0 0.0
        %1417 = vmatpush.msra.mxu0 0.0
        %1418 = vmatpush.msra.mxu0 0.0
        %1419 = vmatpush.msra.mxu0 0.0
        %1420 = vmatpush.msra.mxu0 0.0
        %v1421 = vand.u32 %v1183, 4294901760
        %1422 = vmatpush.msra.mxu0 %v1421
        %v1423 = vand.u32 %v1182, 4294901760
        %1424 = vmatpush.msra.mxu0 %v1423
        %v1425 = vand.u32 %v1147, 4294901760
        %1426 = vmatpush.msra.mxu0 %v1425
        %v1427 = vand.u32 %v1146, 4294901760
        %1428 = vmatpush.msra.mxu0 %v1427
        %v1429 = vand.u32 %v1166, 4294901760
        %1430 = vmatpush.msra.mxu0 %v1429
        %v1431 = vand.u32 %v1165, 4294901760
        %1432 = vmatpush.msra.mxu0 %v1431
        %v1433 = vand.u32 %v1195, 4294901760
        %1434 = vmatmul.f32.gmra.mxu0 %v1433
        %v1435 = vpop.f32.mrf.mxu0
        %v1436 = vadd.f32 %v1405, %v1435
        %v1437 = vand.u32 %v1198, 4294901760
        %1438 = vmatmul.f32.gmra.mxu0 %v1437
        %v1439 = vpop.f32.mrf.mxu0
        %v1440 = vadd.f32 %v1409, %v1439
        %1441 = vdwg.mxu0
        %vm1442 = vcmp.ge.f32.partialorder %v1436, 0.0
        %vm1443 = vcmp.ge.f32.partialorder %v1440, 0.0
        %v1444 = vmul.f32 %v1436, 0.2
        %v1445 = vmul.f32 %v1440, 0.2
        %v1446 = vsel %vm1442, %v1436, %v1444
        %v1447 = vsel %vm1443, %v1440, %v1445
        %1448 = vset.pattern.permute.xlu0 1
        %1449 = vperm.xlu0 %1448, %v609
        %v1450 = vpop.permute.xlu0 %1449
        %1452 = vset.pattern.permute.xlu0 1
        %1453 = vperm.xlu0 %1452, %v610
        %v1454 = vpop.permute.xlu0 %1453
        %1456 = vrot.lane.b32.xlu0 %v601, 80
        %v1457 = vpop.permute.xlu0 %1456
        %1458 = vrot.lane.b32.xlu0 %v602, 80
        %v1459 = vpop.permute.xlu0 %1458
        %v1460 = vsel %vm921, %v1457, 0
        %v1462 = vsel %vm921, %v1459, 0
        %1464 = vmatpush.msra.mxu0 0.0
        %1465 = vmatpush.msra.mxu0 0.0
        %1466 = vmatpush.msra.mxu0 0.0
        %1467 = vmatpush.msra.mxu0 0.0
        %1468 = vmatpush.msra.mxu0 0.0
        %1469 = vmatpush.msra.mxu0 0.0
        %1470 = vmatpush.msra.mxu0 0.0
        %1471 = vmatpush.msra.mxu0 0.0
        %1472 = vmatpush.msra.mxu0 0.0
        %1473 = vmatpush.msra.mxu0 0.0
        %1474 = vmatpush.msra.mxu0 0.0
        %1475 = vmatpush.msra.mxu0 0.0
        %v1476 = vand.u32 %v1140, 4294901760
        %1477 = vmatpush.msra.mxu0 %v1476
        %v1478 = vand.u32 %v1136, 4294901760
        %1479 = vmatpush.msra.mxu0 %v1478
        %v1480 = vand.u32 %v1447, 4294901760
        %1481 = vmatpush.msra.mxu0 %v1480
        %v1482 = vand.u32 %v1446, 4294901760
        %1483 = vmatpush.msra.mxu0 %v1482
        %v1484 = vand.u32 %v1460, 4294901760
        %v1485 = vsub.f32 %v1460, %v1484
        %v1486 = vand.u32 %v1485, 4294901760
        %v1487 = vsub.f32 %v1485, %v1486
        %v1488 = vand.u32 %v1487, 4294901760
        %1489 = vmatmul.f32.gmra.mxu0 %v1488
        %v1490 = vpop.f32.mrf.mxu0
        %v1491 = vadd.f32 %v1450, %v1490
        %v1492 = vand.u32 %v1462, 4294901760
        %v1493 = vsub.f32 %v1462, %v1492
        %v1494 = vand.u32 %v1493, 4294901760
        %v1495 = vsub.f32 %v1493, %v1494
        %v1496 = vand.u32 %v1495, 4294901760
        %1497 = vmatmul.f32.gmra.mxu0 %v1496
        %v1498 = vpop.f32.mrf.mxu0
        %v1499 = vadd.f32 %v1454, %v1498
        %1500 = vdwg.mxu0
        %1501 = vmatpush.msra.mxu0 0.0
        %1502 = vmatpush.msra.mxu0 0.0
        %1503 = vmatpush.msra.mxu0 0.0
        %1504 = vmatpush.msra.mxu0 0.0
        %1505 = vmatpush.msra.mxu0 0.0
        %1506 = vmatpush.msra.mxu0 0.0
        %1507 = vmatpush.msra.mxu0 0.0
        %1508 = vmatpush.msra.mxu0 0.0
        %1509 = vmatpush.msra.mxu0 0.0
        %1510 = vmatpush.msra.mxu0 0.0
        %1511 = vmatpush.msra.mxu0 0.0
        %1512 = vmatpush.msra.mxu0 0.0
        %v1513 = vand.u32 %v1140, 4294901760
        %v1514 = vsub.f32 %v1140, %v1513
        %v1515 = vand.u32 %v1514, 4294901760
        %v1516 = vsub.f32 %v1514, %v1515
        %v1517 = vand.u32 %v1516, 4294901760
        %1518 = vmatpush.msra.mxu0 %v1517
        %v1519 = vand.u32 %v1136, 4294901760
        %v1520 = vsub.f32 %v1136, %v1519
        %v1521 = vand.u32 %v1520, 4294901760
        %v1522 = vsub.f32 %v1520, %v1521
        %v1523 = vand.u32 %v1522, 4294901760
        %1524 = vmatpush.msra.mxu0 %v1523
        %v1525 = vand.u32 %v1447, 4294901760
        %v1526 = vsub.f32 %v1447, %v1525
        %v1527 = vand.u32 %v1526, 4294901760
        %v1528 = vsub.f32 %v1526, %v1527
        %v1529 = vand.u32 %v1528, 4294901760
        %1530 = vmatpush.msra.mxu0 %v1529
        %v1531 = vand.u32 %v1446, 4294901760
        %v1532 = vsub.f32 %v1446, %v1531
        %v1533 = vand.u32 %v1532, 4294901760
        %v1534 = vsub.f32 %v1532, %v1533
        %v1535 = vand.u32 %v1534, 4294901760
        %1536 = vmatpush.msra.mxu0 %v1535
        %v1537 = vand.u32 %v1460, 4294901760
        %1538 = vmatmul.f32.gmra.mxu0 %v1537
        %v1539 = vpop.f32.mrf.mxu0
        %v1540 = vadd.f32 %v1491, %v1539
        %v1541 = vand.u32 %v1462, 4294901760
        %1542 = vmatmul.f32.gmra.mxu0 %v1541
        %v1543 = vpop.f32.mrf.mxu0
        %v1544 = vadd.f32 %v1499, %v1543
        %1545 = vdwg.mxu0
        %1546 = vmatpush.msra.mxu0 0.0
        %1547 = vmatpush.msra.mxu0 0.0
        %1548 = vmatpush.msra.mxu0 0.0
        %1549 = vmatpush.msra.mxu0 0.0
        %1550 = vmatpush.msra.mxu0 0.0
        %1551 = vmatpush.msra.mxu0 0.0
        %1552 = vmatpush.msra.mxu0 0.0
        %1553 = vmatpush.msra.mxu0 0.0
        %1554 = vmatpush.msra.mxu0 0.0
        %1555 = vmatpush.msra.mxu0 0.0
        %1556 = vmatpush.msra.mxu0 0.0
        %1557 = vmatpush.msra.mxu0 0.0
        %v1558 = vand.u32 %v1140, 4294901760
        %v1559 = vsub.f32 %v1140, %v1558
        %1560 = vmatpush.msra.mxu0 %v1559
        %v1561 = vand.u32 %v1136, 4294901760
        %v1562 = vsub.f32 %v1136, %v1561
        %1563 = vmatpush.msra.mxu0 %v1562
        %v1564 = vand.u32 %v1447, 4294901760
        %v1565 = vsub.f32 %v1447, %v1564
        %1566 = vmatpush.msra.mxu0 %v1565
        %v1567 = vand.u32 %v1446, 4294901760
        %v1568 = vsub.f32 %v1446, %v1567
        %1569 = vmatpush.msra.mxu0 %v1568
        %v1570 = vand.u32 %v1460, 4294901760
        %v1571 = vsub.f32 %v1460, %v1570
        %1572 = vmatmul.f32.gmra.mxu0 %v1571
        %v1573 = vpop.f32.mrf.mxu0
        %v1574 = vadd.f32 %v1540, %v1573
        %v1575 = vand.u32 %v1462, 4294901760
        %v1576 = vsub.f32 %v1462, %v1575
        %1577 = vmatmul.f32.gmra.mxu0 %v1576
        %v1578 = vpop.f32.mrf.mxu0
        %v1579 = vadd.f32 %v1544, %v1578
        %1580 = vdwg.mxu0
        %1581 = vmatpush.msra.mxu0 0.0
        %1582 = vmatpush.msra.mxu0 0.0
        %1583 = vmatpush.msra.mxu0 0.0
        %1584 = vmatpush.msra.mxu0 0.0
        %1585 = vmatpush.msra.mxu0 0.0
        %1586 = vmatpush.msra.mxu0 0.0
        %1587 = vmatpush.msra.mxu0 0.0
        %1588 = vmatpush.msra.mxu0 0.0
        %1589 = vmatpush.msra.mxu0 0.0
        %1590 = vmatpush.msra.mxu0 0.0
        %1591 = vmatpush.msra.mxu0 0.0
        %1592 = vmatpush.msra.mxu0 0.0
        %v1593 = vand.u32 %v1140, 4294901760
        %1594 = vmatpush.msra.mxu0 %v1593
        %v1595 = vand.u32 %v1136, 4294901760
        %1596 = vmatpush.msra.mxu0 %v1595
        %v1597 = vand.u32 %v1447, 4294901760
        %1598 = vmatpush.msra.mxu0 %v1597
        %v1599 = vand.u32 %v1446, 4294901760
        %1600 = vmatpush.msra.mxu0 %v1599
        %v1601 = vand.u32 %v1460, 4294901760
        %v1602 = vsub.f32 %v1460, %v1601
        %v1603 = vand.u32 %v1602, 4294901760
        %1604 = vmatmul.f32.gmra.mxu0 %v1603
        %v1605 = vpop.f32.mrf.mxu0
        %v1606 = vadd.f32 %v1574, %v1605
        %v1607 = vand.u32 %v1462, 4294901760
        %v1608 = vsub.f32 %v1462, %v1607
        %v1609 = vand.u32 %v1608, 4294901760
        %1610 = vmatmul.f32.gmra.mxu0 %v1609
        %v1611 = vpop.f32.mrf.mxu0
        %v1612 = vadd.f32 %v1579, %v1611
        %1613 = vdwg.mxu0
        %1614 = vmatpush.msra.mxu0 0.0
        %1615 = vmatpush.msra.mxu0 0.0
        %1616 = vmatpush.msra.mxu0 0.0
        %1617 = vmatpush.msra.mxu0 0.0
        %1618 = vmatpush.msra.mxu0 0.0
        %1619 = vmatpush.msra.mxu0 0.0
        %1620 = vmatpush.msra.mxu0 0.0
        %1621 = vmatpush.msra.mxu0 0.0
        %1622 = vmatpush.msra.mxu0 0.0
        %1623 = vmatpush.msra.mxu0 0.0
        %1624 = vmatpush.msra.mxu0 0.0
        %1625 = vmatpush.msra.mxu0 0.0
        %v1626 = vand.u32 %v1140, 4294901760
        %v1627 = vsub.f32 %v1140, %v1626
        %v1628 = vand.u32 %v1627, 4294901760
        %1629 = vmatpush.msra.mxu0 %v1628
        %v1630 = vand.u32 %v1136, 4294901760
        %v1631 = vsub.f32 %v1136, %v1630
        %v1632 = vand.u32 %v1631, 4294901760
        %1633 = vmatpush.msra.mxu0 %v1632
        %v1634 = vand.u32 %v1447, 4294901760
        %v1635 = vsub.f32 %v1447, %v1634
        %v1636 = vand.u32 %v1635, 4294901760
        %1637 = vmatpush.msra.mxu0 %v1636
        %v1638 = vand.u32 %v1446, 4294901760
        %v1639 = vsub.f32 %v1446, %v1638
        %v1640 = vand.u32 %v1639, 4294901760
        %1641 = vmatpush.msra.mxu0 %v1640
        %v1642 = vand.u32 %v1460, 4294901760
        %1643 = vmatmul.f32.gmra.mxu0 %v1642
        %v1644 = vpop.f32.mrf.mxu0
        %v1645 = vadd.f32 %v1606, %v1644
        %v1646 = vand.u32 %v1462, 4294901760
        %1647 = vmatmul.f32.gmra.mxu0 %v1646
        %v1648 = vpop.f32.mrf.mxu0
        %v1649 = vadd.f32 %v1612, %v1648
        %1650 = vdwg.mxu0
        %1651 = vmatpush.msra.mxu0 0.0
        %1652 = vmatpush.msra.mxu0 0.0
        %1653 = vmatpush.msra.mxu0 0.0
        %1654 = vmatpush.msra.mxu0 0.0
        %1655 = vmatpush.msra.mxu0 0.0
        %1656 = vmatpush.msra.mxu0 0.0
        %1657 = vmatpush.msra.mxu0 0.0
        %1658 = vmatpush.msra.mxu0 0.0
        %1659 = vmatpush.msra.mxu0 0.0
        %1660 = vmatpush.msra.mxu0 0.0
        %1661 = vmatpush.msra.mxu0 0.0
        %1662 = vmatpush.msra.mxu0 0.0
        %v1663 = vand.u32 %v1140, 4294901760
        %1664 = vmatpush.msra.mxu0 %v1663
        %v1665 = vand.u32 %v1136, 4294901760
        %1666 = vmatpush.msra.mxu0 %v1665
        %v1667 = vand.u32 %v1447, 4294901760
        %1668 = vmatpush.msra.mxu0 %v1667
        %v1669 = vand.u32 %v1446, 4294901760
        %1670 = vmatpush.msra.mxu0 %v1669
        %v1671 = vand.u32 %v1460, 4294901760
        %1672 = vmatmul.f32.gmra.mxu0 %v1671
        %v1673 = vpop.f32.mrf.mxu0
        %v1674 = vadd.f32 %v1645, %v1673
        %v1675 = vand.u32 %v1462, 4294901760
        %1676 = vmatmul.f32.gmra.mxu0 %v1675
        %v1677 = vpop.f32.mrf.mxu0
        %v1678 = vadd.f32 %v1649, %v1677
        %1679 = vdwg.mxu0
        %vm1680 = vcmp.ge.f32.partialorder %v1674, 0.0
        %vm1681 = vcmp.ge.f32.partialorder %v1678, 0.0
        %v1682 = vmul.f32 %v1674, 0.2
        %v1683 = vmul.f32 %v1678, 0.2
        %v1684 = vsel %vm1680, %v1674, %v1682
        %v1685 = vsel %vm1681, %v1678, %v1683
        %1687 = vset.pattern.permute.xlu0 0
        %1688 = vperm.xlu0 %1687, %v1684
        %v1689 = vpop.permute.xlu0 %1688
        %1692 = vset.pattern.permute.xlu0 0
        %1693 = vperm.xlu0 %1692, %v1685
        %v1694 = vpop.permute.xlu0 %1693
        %1696 = vrot.lane.b32.xlu0 %v1684, 9
        %v1697 = vpop.permute.xlu0 %1696
        %1698 = vrot.lane.b32.xlu0 %v1685, 9
        %v1699 = vpop.permute.xlu0 %1698
        %vm1702 = vcmask 72704
        %v1703 = vsel %vm1702, %v1689, %v1697
        %v1704 = vsel %vm1702, %v1694, %v1699
        %1705 = vset.pattern.permute.xlu0 31
        %1706 = vperm.xlu0 %1705, %v1684
        %v1707 = vpop.permute.xlu0 %1706
        %1709 = vset.pattern.permute.xlu0 31
        %1710 = vperm.xlu0 %1709, %v1685
        %v1711 = vpop.permute.xlu0 %1710
        %1713 = vrot.lane.b32.xlu0 %v1684, 119
        %v1714 = vpop.permute.xlu0 %1713
        %1715 = vrot.lane.b32.xlu0 %v1685, 119
        %v1716 = vpop.permute.xlu0 %1715
        %vm1719 = vcmask 187392
        %v1720 = vsel %vm1719, %v1714, %v1707
        %v1721 = vsel %vm1719, %v1716, %v1711
        %1723 = vset.pattern.permute.xlu0 0
        %1724 = vperm.xlu0 %1723, %v611
        %v1725 = vpop.permute.xlu0 %1724
        %1728 = vset.pattern.permute.xlu0 0
        %1729 = vperm.xlu0 %1728, %v612
        %v1730 = vpop.permute.xlu0 %1729
        %v1733 = vsel %vm654, %v603, 0
        %v1736 = vsel %vm654, %v604, 0
        %1738 = vmatpush.msra.mxu0 0.0
        %1739 = vmatpush.msra.mxu0 0.0
        %1740 = vmatpush.msra.mxu0 0.0
        %1741 = vmatpush.msra.mxu0 0.0
        %1742 = vmatpush.msra.mxu0 0.0
        %1743 = vmatpush.msra.mxu0 0.0
        %1744 = vmatpush.msra.mxu0 0.0
        %1745 = vmatpush.msra.mxu0 0.0
        %1746 = vmatpush.msra.mxu0 0.0
        %1747 = vmatpush.msra.mxu0 0.0
        %v1748 = vand.u32 %v1721, 4294901760
        %1749 = vmatpush.msra.mxu0 %v1748
        %v1750 = vand.u32 %v1720, 4294901760
        %1751 = vmatpush.msra.mxu0 %v1750
        %v1752 = vand.u32 %v1685, 4294901760
        %1753 = vmatpush.msra.mxu0 %v1752
        %v1754 = vand.u32 %v1684, 4294901760
        %1755 = vmatpush.msra.mxu0 %v1754
        %v1756 = vand.u32 %v1704, 4294901760
        %1757 = vmatpush.msra.mxu0 %v1756
        %v1758 = vand.u32 %v1703, 4294901760
        %1759 = vmatpush.msra.mxu0 %v1758
        %v1760 = vand.u32 %v1733, 4294901760
        %v1761 = vsub.f32 %v1733, %v1760
        %v1762 = vand.u32 %v1761, 4294901760
        %v1763 = vsub.f32 %v1761, %v1762
        %v1764 = vand.u32 %v1763, 4294901760
        %1765 = vmatmul.f32.gmra.mxu0 %v1764
        %v1766 = vpop.f32.mrf.mxu0
        %v1767 = vadd.f32 %v1725, %v1766
        %v1768 = vand.u32 %v1736, 4294901760
        %v1769 = vsub.f32 %v1736, %v1768
        %v1770 = vand.u32 %v1769, 4294901760
        %v1771 = vsub.f32 %v1769, %v1770
        %v1772 = vand.u32 %v1771, 4294901760
        %1773 = vmatmul.f32.gmra.mxu0 %v1772
        %v1774 = vpop.f32.mrf.mxu0
        %v1775 = vadd.f32 %v1730, %v1774
        %1776 = vdwg.mxu0
        %1777 = vmatpush.msra.mxu0 0.0
        %1778 = vmatpush.msra.mxu0 0.0
        %1779 = vmatpush.msra.mxu0 0.0
        %1780 = vmatpush.msra.mxu0 0.0
        %1781 = vmatpush.msra.mxu0 0.0
        %1782 = vmatpush.msra.mxu0 0.0
        %1783 = vmatpush.msra.mxu0 0.0
        %1784 = vmatpush.msra.mxu0 0.0
        %1785 = vmatpush.msra.mxu0 0.0
        %1786 = vmatpush.msra.mxu0 0.0
        %v1787 = vand.u32 %v1721, 4294901760
        %v1788 = vsub.f32 %v1721, %v1787
        %v1789 = vand.u32 %v1788, 4294901760
        %v1790 = vsub.f32 %v1788, %v1789
        %v1791 = vand.u32 %v1790, 4294901760
        %1792 = vmatpush.msra.mxu0 %v1791
        %v1793 = vand.u32 %v1720, 4294901760
        %v1794 = vsub.f32 %v1720, %v1793
        %v1795 = vand.u32 %v1794, 4294901760
        %v1796 = vsub.f32 %v1794, %v1795
        %v1797 = vand.u32 %v1796, 4294901760
        %1798 = vmatpush.msra.mxu0 %v1797
        %v1799 = vand.u32 %v1685, 4294901760
        %v1800 = vsub.f32 %v1685, %v1799
        %v1801 = vand.u32 %v1800, 4294901760
        %v1802 = vsub.f32 %v1800, %v1801
        %v1803 = vand.u32 %v1802, 4294901760
        %1804 = vmatpush.msra.mxu0 %v1803
        %v1805 = vand.u32 %v1684, 4294901760
        %v1806 = vsub.f32 %v1684, %v1805
        %v1807 = vand.u32 %v1806, 4294901760
        %v1808 = vsub.f32 %v1806, %v1807
        %v1809 = vand.u32 %v1808, 4294901760
        %1810 = vmatpush.msra.mxu0 %v1809
        %v1811 = vand.u32 %v1704, 4294901760
        %v1812 = vsub.f32 %v1704, %v1811
        %v1813 = vand.u32 %v1812, 4294901760
        %v1814 = vsub.f32 %v1812, %v1813
        %v1815 = vand.u32 %v1814, 4294901760
        %1816 = vmatpush.msra.mxu0 %v1815
        %v1817 = vand.u32 %v1703, 4294901760
        %v1818 = vsub.f32 %v1703, %v1817
        %v1819 = vand.u32 %v1818, 4294901760
        %v1820 = vsub.f32 %v1818, %v1819
        %v1821 = vand.u32 %v1820, 4294901760
        %1822 = vmatpush.msra.mxu0 %v1821
        %v1823 = vand.u32 %v1733, 4294901760
        %1824 = vmatmul.f32.gmra.mxu0 %v1823
        %v1825 = vpop.f32.mrf.mxu0
        %v1826 = vadd.f32 %v1767, %v1825
        %v1827 = vand.u32 %v1736, 4294901760
        %1828 = vmatmul.f32.gmra.mxu0 %v1827
        %v1829 = vpop.f32.mrf.mxu0
        %v1830 = vadd.f32 %v1775, %v1829
        %1831 = vdwg.mxu0
        %1832 = vmatpush.msra.mxu0 0.0
        %1833 = vmatpush.msra.mxu0 0.0
        %1834 = vmatpush.msra.mxu0 0.0
        %1835 = vmatpush.msra.mxu0 0.0
        %1836 = vmatpush.msra.mxu0 0.0
        %1837 = vmatpush.msra.mxu0 0.0
        %1838 = vmatpush.msra.mxu0 0.0
        %1839 = vmatpush.msra.mxu0 0.0
        %1840 = vmatpush.msra.mxu0 0.0
        %1841 = vmatpush.msra.mxu0 0.0
        %v1842 = vand.u32 %v1721, 4294901760
        %v1843 = vsub.f32 %v1721, %v1842
        %1844 = vmatpush.msra.mxu0 %v1843
        %v1845 = vand.u32 %v1720, 4294901760
        %v1846 = vsub.f32 %v1720, %v1845
        %1847 = vmatpush.msra.mxu0 %v1846
        %v1848 = vand.u32 %v1685, 4294901760
        %v1849 = vsub.f32 %v1685, %v1848
        %1850 = vmatpush.msra.mxu0 %v1849
        %v1851 = vand.u32 %v1684, 4294901760
        %v1852 = vsub.f32 %v1684, %v1851
        %1853 = vmatpush.msra.mxu0 %v1852
        %v1854 = vand.u32 %v1704, 4294901760
        %v1855 = vsub.f32 %v1704, %v1854
        %1856 = vmatpush.msra.mxu0 %v1855
        %v1857 = vand.u32 %v1703, 4294901760
        %v1858 = vsub.f32 %v1703, %v1857
        %1859 = vmatpush.msra.mxu0 %v1858
        %v1860 = vand.u32 %v1733, 4294901760
        %v1861 = vsub.f32 %v1733, %v1860
        %1862 = vmatmul.f32.gmra.mxu0 %v1861
        %v1863 = vpop.f32.mrf.mxu0
        %v1864 = vadd.f32 %v1826, %v1863
        %v1865 = vand.u32 %v1736, 4294901760
        %v1866 = vsub.f32 %v1736, %v1865
        %1867 = vmatmul.f32.gmra.mxu0 %v1866
        %v1868 = vpop.f32.mrf.mxu0
        %v1869 = vadd.f32 %v1830, %v1868
        %1870 = vdwg.mxu0
        %1871 = vmatpush.msra.mxu0 0.0
        %1872 = vmatpush.msra.mxu0 0.0
        %1873 = vmatpush.msra.mxu0 0.0
        %1874 = vmatpush.msra.mxu0 0.0
        %1875 = vmatpush.msra.mxu0 0.0
        %1876 = vmatpush.msra.mxu0 0.0
        %1877 = vmatpush.msra.mxu0 0.0
        %1878 = vmatpush.msra.mxu0 0.0
        %1879 = vmatpush.msra.mxu0 0.0
        %1880 = vmatpush.msra.mxu0 0.0
        %v1881 = vand.u32 %v1721, 4294901760
        %1882 = vmatpush.msra.mxu0 %v1881
        %v1883 = vand.u32 %v1720, 4294901760
        %1884 = vmatpush.msra.mxu0 %v1883
        %v1885 = vand.u32 %v1685, 4294901760
        %1886 = vmatpush.msra.mxu0 %v1885
        %v1887 = vand.u32 %v1684, 4294901760
        %1888 = vmatpush.msra.mxu0 %v1887
        %v1889 = vand.u32 %v1704, 4294901760
        %1890 = vmatpush.msra.mxu0 %v1889
        %v1891 = vand.u32 %v1703, 4294901760
        %1892 = vmatpush.msra.mxu0 %v1891
        %v1893 = vand.u32 %v1733, 4294901760
        %v1894 = vsub.f32 %v1733, %v1893
        %v1895 = vand.u32 %v1894, 4294901760
        %1896 = vmatmul.f32.gmra.mxu0 %v1895
        %v1897 = vpop.f32.mrf.mxu0
        %v1898 = vadd.f32 %v1864, %v1897
        %v1899 = vand.u32 %v1736, 4294901760
        %v1900 = vsub.f32 %v1736, %v1899
        %v1901 = vand.u32 %v1900, 4294901760
        %1902 = vmatmul.f32.gmra.mxu0 %v1901
        %v1903 = vpop.f32.mrf.mxu0
        %v1904 = vadd.f32 %v1869, %v1903
        %1905 = vdwg.mxu0
        %1906 = vmatpush.msra.mxu0 0.0
        %1907 = vmatpush.msra.mxu0 0.0
        %1908 = vmatpush.msra.mxu0 0.0
        %1909 = vmatpush.msra.mxu0 0.0
        %1910 = vmatpush.msra.mxu0 0.0
        %1911 = vmatpush.msra.mxu0 0.0
        %1912 = vmatpush.msra.mxu0 0.0
        %1913 = vmatpush.msra.mxu0 0.0
        %1914 = vmatpush.msra.mxu0 0.0
        %1915 = vmatpush.msra.mxu0 0.0
        %v1916 = vand.u32 %v1721, 4294901760
        %v1917 = vsub.f32 %v1721, %v1916
        %v1918 = vand.u32 %v1917, 4294901760
        %1919 = vmatpush.msra.mxu0 %v1918
        %v1920 = vand.u32 %v1720, 4294901760
        %v1921 = vsub.f32 %v1720, %v1920
        %v1922 = vand.u32 %v1921, 4294901760
        %1923 = vmatpush.msra.mxu0 %v1922
        %v1924 = vand.u32 %v1685, 4294901760
        %v1925 = vsub.f32 %v1685, %v1924
        %v1926 = vand.u32 %v1925, 4294901760
        %1927 = vmatpush.msra.mxu0 %v1926
        %v1928 = vand.u32 %v1684, 4294901760
        %v1929 = vsub.f32 %v1684, %v1928
        %v1930 = vand.u32 %v1929, 4294901760
        %1931 = vmatpush.msra.mxu0 %v1930
        %v1932 = vand.u32 %v1704, 4294901760
        %v1933 = vsub.f32 %v1704, %v1932
        %v1934 = vand.u32 %v1933, 4294901760
        %1935 = vmatpush.msra.mxu0 %v1934
        %v1936 = vand.u32 %v1703, 4294901760
        %v1937 = vsub.f32 %v1703, %v1936
        %v1938 = vand.u32 %v1937, 4294901760
        %1939 = vmatpush.msra.mxu0 %v1938
        %v1940 = vand.u32 %v1733, 4294901760
        %1941 = vmatmul.f32.gmra.mxu0 %v1940
        %v1942 = vpop.f32.mrf.mxu0
        %v1943 = vadd.f32 %v1898, %v1942
        %v1944 = vand.u32 %v1736, 4294901760
        %1945 = vmatmul.f32.gmra.mxu0 %v1944
        %v1946 = vpop.f32.mrf.mxu0
        %v1947 = vadd.f32 %v1904, %v1946
        %1948 = vdwg.mxu0
        %1949 = vmatpush.msra.mxu0 0.0
        %1950 = vmatpush.msra.mxu0 0.0
        %1951 = vmatpush.msra.mxu0 0.0
        %1952 = vmatpush.msra.mxu0 0.0
        %1953 = vmatpush.msra.mxu0 0.0
        %1954 = vmatpush.msra.mxu0 0.0
        %1955 = vmatpush.msra.mxu0 0.0
        %1956 = vmatpush.msra.mxu0 0.0
        %1957 = vmatpush.msra.mxu0 0.0
        %1958 = vmatpush.msra.mxu0 0.0
        %v1959 = vand.u32 %v1721, 4294901760
        %1960 = vmatpush.msra.mxu0 %v1959
        %v1961 = vand.u32 %v1720, 4294901760
        %1962 = vmatpush.msra.mxu0 %v1961
        %v1963 = vand.u32 %v1685, 4294901760
        %1964 = vmatpush.msra.mxu0 %v1963
        %v1965 = vand.u32 %v1684, 4294901760
        %1966 = vmatpush.msra.mxu0 %v1965
        %v1967 = vand.u32 %v1704, 4294901760
        %1968 = vmatpush.msra.mxu0 %v1967
        %v1969 = vand.u32 %v1703, 4294901760
        %1970 = vmatpush.msra.mxu0 %v1969
        %v1971 = vand.u32 %v1733, 4294901760
        %1972 = vmatmul.f32.gmra.mxu0 %v1971
        %v1973 = vpop.f32.mrf.mxu0
        %v1974 = vadd.f32 %v1943, %v1973
        %v1975 = vand.u32 %v1736, 4294901760
        %1976 = vmatmul.f32.gmra.mxu0 %v1975
        %v1977 = vpop.f32.mrf.mxu0
        %v1978 = vadd.f32 %v1947, %v1977
        %1979 = vdwg.mxu0
        %vm1980 = vcmp.ge.f32.partialorder %v1974, 0.0
        %vm1981 = vcmp.ge.f32.partialorder %v1978, 0.0
        %v1982 = vmul.f32 %v1974, 0.2
        %v1983 = vmul.f32 %v1978, 0.2
        %v1984 = vsel %vm1980, %v1974, %v1982
        %v1985 = vsel %vm1981, %v1978, %v1983
        %1986 = vset.pattern.permute.xlu0 1
        %1987 = vperm.xlu0 %1986, %v611
        %v1988 = vpop.permute.xlu0 %1987
        %1990 = vset.pattern.permute.xlu0 1
        %1991 = vperm.xlu0 %1990, %v612
        %v1992 = vpop.permute.xlu0 %1991
        %1994 = vrot.lane.b32.xlu0 %v603, 80
        %v1995 = vpop.permute.xlu0 %1994
        %1996 = vrot.lane.b32.xlu0 %v604, 80
        %v1997 = vpop.permute.xlu0 %1996
        %v1998 = vsel %vm921, %v1995, 0
        %v2000 = vsel %vm921, %v1997, 0
        %2002 = vmatpush.msra.mxu0 0.0
        %2003 = vmatpush.msra.mxu0 0.0
        %2004 = vmatpush.msra.mxu0 0.0
        %2005 = vmatpush.msra.mxu0 0.0
        %2006 = vmatpush.msra.mxu0 0.0
        %2007 = vmatpush.msra.mxu0 0.0
        %2008 = vmatpush.msra.mxu0 0.0
        %2009 = vmatpush.msra.mxu0 0.0
        %2010 = vmatpush.msra.mxu0 0.0
        %2011 = vmatpush.msra.mxu0 0.0
        %2012 = vmatpush.msra.mxu0 0.0
        %2013 = vmatpush.msra.mxu0 0.0
        %v2014 = vand.u32 %v1678, 4294901760
        %2015 = vmatpush.msra.mxu0 %v2014
        %v2016 = vand.u32 %v1674, 4294901760
        %2017 = vmatpush.msra.mxu0 %v2016
        %v2018 = vand.u32 %v1985, 4294901760
        %2019 = vmatpush.msra.mxu0 %v2018
        %v2020 = vand.u32 %v1984, 4294901760
        %2021 = vmatpush.msra.mxu0 %v2020
        %v2022 = vand.u32 %v1998, 4294901760
        %v2023 = vsub.f32 %v1998, %v2022
        %v2024 = vand.u32 %v2023, 4294901760
        %v2025 = vsub.f32 %v2023, %v2024
        %v2026 = vand.u32 %v2025, 4294901760
        %2027 = vmatmul.f32.gmra.mxu0 %v2026
        %v2028 = vpop.f32.mrf.mxu0
        %v2029 = vadd.f32 %v1988, %v2028
        %v2030 = vand.u32 %v2000, 4294901760
        %v2031 = vsub.f32 %v2000, %v2030
        %v2032 = vand.u32 %v2031, 4294901760
        %v2033 = vsub.f32 %v2031, %v2032
        %v2034 = vand.u32 %v2033, 4294901760
        %2035 = vmatmul.f32.gmra.mxu0 %v2034
        %v2036 = vpop.f32.mrf.mxu0
        %v2037 = vadd.f32 %v1992, %v2036
        %2038 = vdwg.mxu0
        %2039 = vmatpush.msra.mxu0 0.0
        %2040 = vmatpush.msra.mxu0 0.0
        %2041 = vmatpush.msra.mxu0 0.0
        %2042 = vmatpush.msra.mxu0 0.0
        %2043 = vmatpush.msra.mxu0 0.0
        %2044 = vmatpush.msra.mxu0 0.0
        %2045 = vmatpush.msra.mxu0 0.0
        %2046 = vmatpush.msra.mxu0 0.0
        %2047 = vmatpush.msra.mxu0 0.0
        %2048 = vmatpush.msra.mxu0 0.0
        %2049 = vmatpush.msra.mxu0 0.0
        %2050 = vmatpush.msra.mxu0 0.0
        %v2051 = vand.u32 %v1678, 4294901760
        %v2052 = vsub.f32 %v1678, %v2051
        %v2053 = vand.u32 %v2052, 4294901760
        %v2054 = vsub.f32 %v2052, %v2053
        %v2055 = vand.u32 %v2054, 4294901760
        %2056 = vmatpush.msra.mxu0 %v2055
        %v2057 = vand.u32 %v1674, 4294901760
        %v2058 = vsub.f32 %v1674, %v2057
        %v2059 = vand.u32 %v2058, 4294901760
        %v2060 = vsub.f32 %v2058, %v2059
        %v2061 = vand.u32 %v2060, 4294901760
        %2062 = vmatpush.msra.mxu0 %v2061
        %v2063 = vand.u32 %v1985, 4294901760
        %v2064 = vsub.f32 %v1985, %v2063
        %v2065 = vand.u32 %v2064, 4294901760
        %v2066 = vsub.f32 %v2064, %v2065
        %v2067 = vand.u32 %v2066, 4294901760
        %2068 = vmatpush.msra.mxu0 %v2067
        %v2069 = vand.u32 %v1984, 4294901760
        %v2070 = vsub.f32 %v1984, %v2069
        %v2071 = vand.u32 %v2070, 4294901760
        %v2072 = vsub.f32 %v2070, %v2071
        %v2073 = vand.u32 %v2072, 4294901760
        %2074 = vmatpush.msra.mxu0 %v2073
        %v2075 = vand.u32 %v1998, 4294901760
        %2076 = vmatmul.f32.gmra.mxu0 %v2075
        %v2077 = vpop.f32.mrf.mxu0
        %v2078 = vadd.f32 %v2029, %v2077
        %v2079 = vand.u32 %v2000, 4294901760
        %2080 = vmatmul.f32.gmra.mxu0 %v2079
        %v2081 = vpop.f32.mrf.mxu0
        %v2082 = vadd.f32 %v2037, %v2081
        %2083 = vdwg.mxu0
        %2084 = vmatpush.msra.mxu0 0.0
        %2085 = vmatpush.msra.mxu0 0.0
        %2086 = vmatpush.msra.mxu0 0.0
        %2087 = vmatpush.msra.mxu0 0.0
        %2088 = vmatpush.msra.mxu0 0.0
        %2089 = vmatpush.msra.mxu0 0.0
        %2090 = vmatpush.msra.mxu0 0.0
        %2091 = vmatpush.msra.mxu0 0.0
        %2092 = vmatpush.msra.mxu0 0.0
        %2093 = vmatpush.msra.mxu0 0.0
        %2094 = vmatpush.msra.mxu0 0.0
        %2095 = vmatpush.msra.mxu0 0.0
        %v2096 = vand.u32 %v1678, 4294901760
        %v2097 = vsub.f32 %v1678, %v2096
        %2098 = vmatpush.msra.mxu0 %v2097
        %v2099 = vand.u32 %v1674, 4294901760
        %v2100 = vsub.f32 %v1674, %v2099
        %2101 = vmatpush.msra.mxu0 %v2100
        %v2102 = vand.u32 %v1985, 4294901760
        %v2103 = vsub.f32 %v1985, %v2102
        %2104 = vmatpush.msra.mxu0 %v2103
        %v2105 = vand.u32 %v1984, 4294901760
        %v2106 = vsub.f32 %v1984, %v2105
        %2107 = vmatpush.msra.mxu0 %v2106
        %v2108 = vand.u32 %v1998, 4294901760
        %v2109 = vsub.f32 %v1998, %v2108
        %2110 = vmatmul.f32.gmra.mxu0 %v2109
        %v2111 = vpop.f32.mrf.mxu0
        %v2112 = vadd.f32 %v2078, %v2111
        %v2113 = vand.u32 %v2000, 4294901760
        %v2114 = vsub.f32 %v2000, %v2113
        %2115 = vmatmul.f32.gmra.mxu0 %v2114
        %v2116 = vpop.f32.mrf.mxu0
        %v2117 = vadd.f32 %v2082, %v2116
        %2118 = vdwg.mxu0
        %2119 = vmatpush.msra.mxu0 0.0
        %2120 = vmatpush.msra.mxu0 0.0
        %2121 = vmatpush.msra.mxu0 0.0
        %2122 = vmatpush.msra.mxu0 0.0
        %2123 = vmatpush.msra.mxu0 0.0
        %2124 = vmatpush.msra.mxu0 0.0
        %2125 = vmatpush.msra.mxu0 0.0
        %2126 = vmatpush.msra.mxu0 0.0
        %2127 = vmatpush.msra.mxu0 0.0
        %2128 = vmatpush.msra.mxu0 0.0
        %2129 = vmatpush.msra.mxu0 0.0
        %2130 = vmatpush.msra.mxu0 0.0
        %v2131 = vand.u32 %v1678, 4294901760
        %2132 = vmatpush.msra.mxu0 %v2131
        %v2133 = vand.u32 %v1674, 4294901760
        %2134 = vmatpush.msra.mxu0 %v2133
        %v2135 = vand.u32 %v1985, 4294901760
        %2136 = vmatpush.msra.mxu0 %v2135
        %v2137 = vand.u32 %v1984, 4294901760
        %2138 = vmatpush.msra.mxu0 %v2137
        %v2139 = vand.u32 %v1998, 4294901760
        %v2140 = vsub.f32 %v1998, %v2139
        %v2141 = vand.u32 %v2140, 4294901760
        %2142 = vmatmul.f32.gmra.mxu0 %v2141
        %v2143 = vpop.f32.mrf.mxu0
        %v2144 = vadd.f32 %v2112, %v2143
        %v2145 = vand.u32 %v2000, 4294901760
        %v2146 = vsub.f32 %v2000, %v2145
        %v2147 = vand.u32 %v2146, 4294901760
        %2148 = vmatmul.f32.gmra.mxu0 %v2147
        %v2149 = vpop.f32.mrf.mxu0
        %v2150 = vadd.f32 %v2117, %v2149
        %2151 = vdwg.mxu0
        %2152 = vmatpush.msra.mxu0 0.0
        %2153 = vmatpush.msra.mxu0 0.0
        %2154 = vmatpush.msra.mxu0 0.0
        %2155 = vmatpush.msra.mxu0 0.0
        %2156 = vmatpush.msra.mxu0 0.0
        %2157 = vmatpush.msra.mxu0 0.0
        %2158 = vmatpush.msra.mxu0 0.0
        %2159 = vmatpush.msra.mxu0 0.0
        %2160 = vmatpush.msra.mxu0 0.0
        %2161 = vmatpush.msra.mxu0 0.0
        %2162 = vmatpush.msra.mxu0 0.0
        %2163 = vmatpush.msra.mxu0 0.0
        %v2164 = vand.u32 %v1678, 4294901760
        %v2165 = vsub.f32 %v1678, %v2164
        %v2166 = vand.u32 %v2165, 4294901760
        %2167 = vmatpush.msra.mxu0 %v2166
        %v2168 = vand.u32 %v1674, 4294901760
        %v2169 = vsub.f32 %v1674, %v2168
        %v2170 = vand.u32 %v2169, 4294901760
        %2171 = vmatpush.msra.mxu0 %v2170
        %v2172 = vand.u32 %v1985, 4294901760
        %v2173 = vsub.f32 %v1985, %v2172
        %v2174 = vand.u32 %v2173, 4294901760
        %2175 = vmatpush.msra.mxu0 %v2174
        %v2176 = vand.u32 %v1984, 4294901760
        %v2177 = vsub.f32 %v1984, %v2176
        %v2178 = vand.u32 %v2177, 4294901760
        %2179 = vmatpush.msra.mxu0 %v2178
        %v2180 = vand.u32 %v1998, 4294901760
        %2181 = vmatmul.f32.gmra.mxu0 %v2180
        %v2182 = vpop.f32.mrf.mxu0
        %v2183 = vadd.f32 %v2144, %v2182
        %v2184 = vand.u32 %v2000, 4294901760
        %2185 = vmatmul.f32.gmra.mxu0 %v2184
        %v2186 = vpop.f32.mrf.mxu0
        %v2187 = vadd.f32 %v2150, %v2186
        %2188 = vdwg.mxu0
        %2189 = vmatpush.msra.mxu0 0.0
        %2190 = vmatpush.msra.mxu0 0.0
        %2191 = vmatpush.msra.mxu0 0.0
        %2192 = vmatpush.msra.mxu0 0.0
        %2193 = vmatpush.msra.mxu0 0.0
        %2194 = vmatpush.msra.mxu0 0.0
        %2195 = vmatpush.msra.mxu0 0.0
        %2196 = vmatpush.msra.mxu0 0.0
        %2197 = vmatpush.msra.mxu0 0.0
        %2198 = vmatpush.msra.mxu0 0.0
        %2199 = vmatpush.msra.mxu0 0.0
        %2200 = vmatpush.msra.mxu0 0.0
        %v2201 = vand.u32 %v1678, 4294901760
        %2202 = vmatpush.msra.mxu0 %v2201
        %v2203 = vand.u32 %v1674, 4294901760
        %2204 = vmatpush.msra.mxu0 %v2203
        %v2205 = vand.u32 %v1985, 4294901760
        %2206 = vmatpush.msra.mxu0 %v2205
        %v2207 = vand.u32 %v1984, 4294901760
        %2208 = vmatpush.msra.mxu0 %v2207
        %v2209 = vand.u32 %v1998, 4294901760
        %2210 = vmatmul.f32.gmra.mxu0 %v2209
        %v2211 = vpop.f32.mrf.mxu0
        %v2212 = vadd.f32 %v2183, %v2211
        %v2213 = vand.u32 %v2000, 4294901760
        %2214 = vmatmul.f32.gmra.mxu0 %v2213
        %v2215 = vpop.f32.mrf.mxu0
        %v2216 = vadd.f32 %v2187, %v2215
        %2217 = vdwg.mxu0
        %vm2218 = vcmp.ge.f32.partialorder %v2212, 0.0
        %vm2219 = vcmp.ge.f32.partialorder %v2216, 0.0
        %v2220 = vmul.f32 %v2212, 0.2
        %v2221 = vmul.f32 %v2216, 0.2
        %v2222 = vsel %vm2218, %v2212, %v2220
        %v2223 = vsel %vm2219, %v2216, %v2221
        %2225 = vset.pattern.permute.xlu0 0
        %2226 = vperm.xlu0 %2225, %v2222
        %v2227 = vpop.permute.xlu0 %2226
        %2230 = vset.pattern.permute.xlu0 0
        %2231 = vperm.xlu0 %2230, %v2223
        %v2232 = vpop.permute.xlu0 %2231
        %2234 = vrot.lane.b32.xlu0 %v2222, 27
        %v2235 = vpop.permute.xlu0 %2234
        %2236 = vrot.lane.b32.xlu0 %v2223, 27
        %v2237 = vpop.permute.xlu0 %2236
        %vm2240 = vcmask 220160
        %v2241 = vsel %vm2240, %v2227, %v2235
        %v2242 = vsel %vm2240, %v2232, %v2237
        %2243 = vset.pattern.permute.xlu0 31
        %2244 = vperm.xlu0 %2243, %v2222
        %v2245 = vpop.permute.xlu0 %2244
        %2247 = vset.pattern.permute.xlu0 31
        %2248 = vperm.xlu0 %2247, %v2223
        %v2249 = vpop.permute.xlu0 %2248
        %2251 = vrot.lane.b32.xlu0 %v2222, 101
        %v2252 = vpop.permute.xlu0 %2251
        %2253 = vrot.lane.b32.xlu0 %v2223, 101
        %v2254 = vpop.permute.xlu0 %2253
        %vm2257 = vcmask 39936
        %v2258 = vsel %vm2257, %v2252, %v2245
        %v2259 = vsel %vm2257, %v2254, %v2249
        %2261 = vset.pattern.permute.xlu0 0
        %2262 = vperm.xlu0 %2261, %v613
        %v2263 = vpop.permute.xlu0 %2262
        %2266 = vset.pattern.permute.xlu0 0
        %2267 = vperm.xlu0 %2266, %v614
        %v2268 = vpop.permute.xlu0 %2267
        %v2271 = vsel %vm654, %v605, 0
        %v2274 = vsel %vm654, %v606, 0
        %2276 = vmatpush.msra.mxu0 0.0
        %2277 = vmatpush.msra.mxu0 0.0
        %2278 = vmatpush.msra.mxu0 0.0
        %2279 = vmatpush.msra.mxu0 0.0
        %2280 = vmatpush.msra.mxu0 0.0
        %2281 = vmatpush.msra.mxu0 0.0
        %2282 = vmatpush.msra.mxu0 0.0
        %2283 = vmatpush.msra.mxu0 0.0
        %2284 = vmatpush.msra.mxu0 0.0
        %2285 = vmatpush.msra.mxu0 0.0
        %v2286 = vand.u32 %v2259, 4294901760
        %2287 = vmatpush.msra.mxu0 %v2286
        %v2288 = vand.u32 %v2258, 4294901760
        %2289 = vmatpush.msra.mxu0 %v2288
        %v2290 = vand.u32 %v2223, 4294901760
        %2291 = vmatpush.msra.mxu0 %v2290
        %v2292 = vand.u32 %v2222, 4294901760
        %2293 = vmatpush.msra.mxu0 %v2292
        %v2294 = vand.u32 %v2242, 4294901760
        %2295 = vmatpush.msra.mxu0 %v2294
        %v2296 = vand.u32 %v2241, 4294901760
        %2297 = vmatpush.msra.mxu0 %v2296
        %v2298 = vand.u32 %v2271, 4294901760
        %v2299 = vsub.f32 %v2271, %v2298
        %v2300 = vand.u32 %v2299, 4294901760
        %v2301 = vsub.f32 %v2299, %v2300
        %v2302 = vand.u32 %v2301, 4294901760
        %2303 = vmatmul.f32.gmra.mxu0 %v2302
        %v2304 = vpop.f32.mrf.mxu0
        %v2305 = vadd.f32 %v2263, %v2304
        %v2306 = vand.u32 %v2274, 4294901760
        %v2307 = vsub.f32 %v2274, %v2306
        %v2308 = vand.u32 %v2307, 4294901760
        %v2309 = vsub.f32 %v2307, %v2308
        %v2310 = vand.u32 %v2309, 4294901760
        %2311 = vmatmul.f32.gmra.mxu0 %v2310
        %v2312 = vpop.f32.mrf.mxu0
        %v2313 = vadd.f32 %v2268, %v2312
        %2314 = vdwg.mxu0
        %2315 = vmatpush.msra.mxu0 0.0
        %2316 = vmatpush.msra.mxu0 0.0
        %2317 = vmatpush.msra.mxu0 0.0
        %2318 = vmatpush.msra.mxu0 0.0
        %2319 = vmatpush.msra.mxu0 0.0
        %2320 = vmatpush.msra.mxu0 0.0
        %2321 = vmatpush.msra.mxu0 0.0
        %2322 = vmatpush.msra.mxu0 0.0
        %2323 = vmatpush.msra.mxu0 0.0
        %2324 = vmatpush.msra.mxu0 0.0
        %v2325 = vand.u32 %v2259, 4294901760
        %v2326 = vsub.f32 %v2259, %v2325
        %v2327 = vand.u32 %v2326, 4294901760
        %v2328 = vsub.f32 %v2326, %v2327
        %v2329 = vand.u32 %v2328, 4294901760
        %2330 = vmatpush.msra.mxu0 %v2329
        %v2331 = vand.u32 %v2258, 4294901760
        %v2332 = vsub.f32 %v2258, %v2331
        %v2333 = vand.u32 %v2332, 4294901760
        %v2334 = vsub.f32 %v2332, %v2333
        %v2335 = vand.u32 %v2334, 4294901760
        %2336 = vmatpush.msra.mxu0 %v2335
        %v2337 = vand.u32 %v2223, 4294901760
        %v2338 = vsub.f32 %v2223, %v2337
        %v2339 = vand.u32 %v2338, 4294901760
        %v2340 = vsub.f32 %v2338, %v2339
        %v2341 = vand.u32 %v2340, 4294901760
        %2342 = vmatpush.msra.mxu0 %v2341
        %v2343 = vand.u32 %v2222, 4294901760
        %v2344 = vsub.f32 %v2222, %v2343
        %v2345 = vand.u32 %v2344, 4294901760
        %v2346 = vsub.f32 %v2344, %v2345
        %v2347 = vand.u32 %v2346, 4294901760
        %2348 = vmatpush.msra.mxu0 %v2347
        %v2349 = vand.u32 %v2242, 4294901760
        %v2350 = vsub.f32 %v2242, %v2349
        %v2351 = vand.u32 %v2350, 4294901760
        %v2352 = vsub.f32 %v2350, %v2351
        %v2353 = vand.u32 %v2352, 4294901760
        %2354 = vmatpush.msra.mxu0 %v2353
        %v2355 = vand.u32 %v2241, 4294901760
        %v2356 = vsub.f32 %v2241, %v2355
        %v2357 = vand.u32 %v2356, 4294901760
        %v2358 = vsub.f32 %v2356, %v2357
        %v2359 = vand.u32 %v2358, 4294901760
        %2360 = vmatpush.msra.mxu0 %v2359
        %v2361 = vand.u32 %v2271, 4294901760
        %2362 = vmatmul.f32.gmra.mxu0 %v2361
        %v2363 = vpop.f32.mrf.mxu0
        %v2364 = vadd.f32 %v2305, %v2363
        %v2365 = vand.u32 %v2274, 4294901760
        %2366 = vmatmul.f32.gmra.mxu0 %v2365
        %v2367 = vpop.f32.mrf.mxu0
        %v2368 = vadd.f32 %v2313, %v2367
        %2369 = vdwg.mxu0
        %2370 = vmatpush.msra.mxu0 0.0
        %2371 = vmatpush.msra.mxu0 0.0
        %2372 = vmatpush.msra.mxu0 0.0
        %2373 = vmatpush.msra.mxu0 0.0
        %2374 = vmatpush.msra.mxu0 0.0
        %2375 = vmatpush.msra.mxu0 0.0
        %2376 = vmatpush.msra.mxu0 0.0
        %2377 = vmatpush.msra.mxu0 0.0
        %2378 = vmatpush.msra.mxu0 0.0
        %2379 = vmatpush.msra.mxu0 0.0
        %v2380 = vand.u32 %v2259, 4294901760
        %v2381 = vsub.f32 %v2259, %v2380
        %2382 = vmatpush.msra.mxu0 %v2381
        %v2383 = vand.u32 %v2258, 4294901760
        %v2384 = vsub.f32 %v2258, %v2383
        %2385 = vmatpush.msra.mxu0 %v2384
        %v2386 = vand.u32 %v2223, 4294901760
        %v2387 = vsub.f32 %v2223, %v2386
        %2388 = vmatpush.msra.mxu0 %v2387
        %v2389 = vand.u32 %v2222, 4294901760
        %v2390 = vsub.f32 %v2222, %v2389
        %2391 = vmatpush.msra.mxu0 %v2390
        %v2392 = vand.u32 %v2242, 4294901760
        %v2393 = vsub.f32 %v2242, %v2392
        %2394 = vmatpush.msra.mxu0 %v2393
        %v2395 = vand.u32 %v2241, 4294901760
        %v2396 = vsub.f32 %v2241, %v2395
        %2397 = vmatpush.msra.mxu0 %v2396
        %v2398 = vand.u32 %v2271, 4294901760
        %v2399 = vsub.f32 %v2271, %v2398
        %2400 = vmatmul.f32.gmra.mxu0 %v2399
        %v2401 = vpop.f32.mrf.mxu0
        %v2402 = vadd.f32 %v2364, %v2401
        %v2403 = vand.u32 %v2274, 4294901760
        %v2404 = vsub.f32 %v2274, %v2403
        %2405 = vmatmul.f32.gmra.mxu0 %v2404
        %v2406 = vpop.f32.mrf.mxu0
        %v2407 = vadd.f32 %v2368, %v2406
        %2408 = vdwg.mxu0
        %2409 = vmatpush.msra.mxu0 0.0
        %2410 = vmatpush.msra.mxu0 0.0
        %2411 = vmatpush.msra.mxu0 0.0
        %2412 = vmatpush.msra.mxu0 0.0
        %2413 = vmatpush.msra.mxu0 0.0
        %2414 = vmatpush.msra.mxu0 0.0
        %2415 = vmatpush.msra.mxu0 0.0
        %2416 = vmatpush.msra.mxu0 0.0
        %2417 = vmatpush.msra.mxu0 0.0
        %2418 = vmatpush.msra.mxu0 0.0
        %v2419 = vand.u32 %v2259, 4294901760
        %2420 = vmatpush.msra.mxu0 %v2419
        %v2421 = vand.u32 %v2258, 4294901760
        %2422 = vmatpush.msra.mxu0 %v2421
        %v2423 = vand.u32 %v2223, 4294901760
        %2424 = vmatpush.msra.mxu0 %v2423
        %v2425 = vand.u32 %v2222, 4294901760
        %2426 = vmatpush.msra.mxu0 %v2425
        %v2427 = vand.u32 %v2242, 4294901760
        %2428 = vmatpush.msra.mxu0 %v2427
        %v2429 = vand.u32 %v2241, 4294901760
        %2430 = vmatpush.msra.mxu0 %v2429
        %v2431 = vand.u32 %v2271, 4294901760
        %v2432 = vsub.f32 %v2271, %v2431
        %v2433 = vand.u32 %v2432, 4294901760
        %2434 = vmatmul.f32.gmra.mxu0 %v2433
        %v2435 = vpop.f32.mrf.mxu0
        %v2436 = vadd.f32 %v2402, %v2435
        %v2437 = vand.u32 %v2274, 4294901760
        %v2438 = vsub.f32 %v2274, %v2437
        %v2439 = vand.u32 %v2438, 4294901760
        %2440 = vmatmul.f32.gmra.mxu0 %v2439
        %v2441 = vpop.f32.mrf.mxu0
        %v2442 = vadd.f32 %v2407, %v2441
        %2443 = vdwg.mxu0
        %2444 = vmatpush.msra.mxu0 0.0
        %2445 = vmatpush.msra.mxu0 0.0
        %2446 = vmatpush.msra.mxu0 0.0
        %2447 = vmatpush.msra.mxu0 0.0
        %2448 = vmatpush.msra.mxu0 0.0
        %2449 = vmatpush.msra.mxu0 0.0
        %2450 = vmatpush.msra.mxu0 0.0
        %2451 = vmatpush.msra.mxu0 0.0
        %2452 = vmatpush.msra.mxu0 0.0
        %2453 = vmatpush.msra.mxu0 0.0
        %v2454 = vand.u32 %v2259, 4294901760
        %v2455 = vsub.f32 %v2259, %v2454
        %v2456 = vand.u32 %v2455, 4294901760
        %2457 = vmatpush.msra.mxu0 %v2456
        %v2458 = vand.u32 %v2258, 4294901760
        %v2459 = vsub.f32 %v2258, %v2458
        %v2460 = vand.u32 %v2459, 4294901760
        %2461 = vmatpush.msra.mxu0 %v2460
        %v2462 = vand.u32 %v2223, 4294901760
        %v2463 = vsub.f32 %v2223, %v2462
        %v2464 = vand.u32 %v2463, 4294901760
        %2465 = vmatpush.msra.mxu0 %v2464
        %v2466 = vand.u32 %v2222, 4294901760
        %v2467 = vsub.f32 %v2222, %v2466
        %v2468 = vand.u32 %v2467, 4294901760
        %2469 = vmatpush.msra.mxu0 %v2468
        %v2470 = vand.u32 %v2242, 4294901760
        %v2471 = vsub.f32 %v2242, %v2470
        %v2472 = vand.u32 %v2471, 4294901760
        %2473 = vmatpush.msra.mxu0 %v2472
        %v2474 = vand.u32 %v2241, 4294901760
        %v2475 = vsub.f32 %v2241, %v2474
        %v2476 = vand.u32 %v2475, 4294901760
        %2477 = vmatpush.msra.mxu0 %v2476
        %v2478 = vand.u32 %v2271, 4294901760
        %2479 = vmatmul.f32.gmra.mxu0 %v2478
        %v2480 = vpop.f32.mrf.mxu0
        %v2481 = vadd.f32 %v2436, %v2480
        %v2482 = vand.u32 %v2274, 4294901760
        %2483 = vmatmul.f32.gmra.mxu0 %v2482
        %v2484 = vpop.f32.mrf.mxu0
        %v2485 = vadd.f32 %v2442, %v2484
        %2486 = vdwg.mxu0
        %2487 = vmatpush.msra.mxu0 0.0
        %2488 = vmatpush.msra.mxu0 0.0
        %2489 = vmatpush.msra.mxu0 0.0
        %2490 = vmatpush.msra.mxu0 0.0
        %2491 = vmatpush.msra.mxu0 0.0
        %2492 = vmatpush.msra.mxu0 0.0
        %2493 = vmatpush.msra.mxu0 0.0
        %2494 = vmatpush.msra.mxu0 0.0
        %2495 = vmatpush.msra.mxu0 0.0
        %2496 = vmatpush.msra.mxu0 0.0
        %v2497 = vand.u32 %v2259, 4294901760
        %2498 = vmatpush.msra.mxu0 %v2497
        %v2499 = vand.u32 %v2258, 4294901760
        %2500 = vmatpush.msra.mxu0 %v2499
        %v2501 = vand.u32 %v2223, 4294901760
        %2502 = vmatpush.msra.mxu0 %v2501
        %v2503 = vand.u32 %v2222, 4294901760
        %2504 = vmatpush.msra.mxu0 %v2503
        %v2505 = vand.u32 %v2242, 4294901760
        %2506 = vmatpush.msra.mxu0 %v2505
        %v2507 = vand.u32 %v2241, 4294901760
        %2508 = vmatpush.msra.mxu0 %v2507
        %v2509 = vand.u32 %v2271, 4294901760
        %2510 = vmatmul.f32.gmra.mxu0 %v2509
        %v2511 = vpop.f32.mrf.mxu0
        %v2512 = vadd.f32 %v2481, %v2511
        %v2513 = vand.u32 %v2274, 4294901760
        %2514 = vmatmul.f32.gmra.mxu0 %v2513
        %v2515 = vpop.f32.mrf.mxu0
        %v2516 = vadd.f32 %v2485, %v2515
        %2517 = vdwg.mxu0
        %vm2518 = vcmp.ge.f32.partialorder %v2512, 0.0
        %vm2519 = vcmp.ge.f32.partialorder %v2516, 0.0
        %v2520 = vmul.f32 %v2512, 0.2
        %v2521 = vmul.f32 %v2516, 0.2
        %v2522 = vsel %vm2518, %v2512, %v2520
        %v2523 = vsel %vm2519, %v2516, %v2521
        %2524 = vset.pattern.permute.xlu0 1
        %2525 = vperm.xlu0 %2524, %v613
        %v2526 = vpop.permute.xlu0 %2525
        %2528 = vset.pattern.permute.xlu0 1
        %2529 = vperm.xlu0 %2528, %v614
        %v2530 = vpop.permute.xlu0 %2529
        %2532 = vrot.lane.b32.xlu0 %v605, 80
        %v2533 = vpop.permute.xlu0 %2532
        %2534 = vrot.lane.b32.xlu0 %v606, 80
        %v2535 = vpop.permute.xlu0 %2534
        %v2536 = vsel %vm921, %v2533, 0
        %v2538 = vsel %vm921, %v2535, 0
        %2540 = vmatpush.msra.mxu0 0.0
        %2541 = vmatpush.msra.mxu0 0.0
        %2542 = vmatpush.msra.mxu0 0.0
        %2543 = vmatpush.msra.mxu0 0.0
        %2544 = vmatpush.msra.mxu0 0.0
        %2545 = vmatpush.msra.mxu0 0.0
        %2546 = vmatpush.msra.mxu0 0.0
        %2547 = vmatpush.msra.mxu0 0.0
        %2548 = vmatpush.msra.mxu0 0.0
        %2549 = vmatpush.msra.mxu0 0.0
        %2550 = vmatpush.msra.mxu0 0.0
        %2551 = vmatpush.msra.mxu0 0.0
        %v2552 = vand.u32 %v2216, 4294901760
        %2553 = vmatpush.msra.mxu0 %v2552
        %v2554 = vand.u32 %v2212, 4294901760
        %2555 = vmatpush.msra.mxu0 %v2554
        %v2556 = vand.u32 %v2523, 4294901760
        %2557 = vmatpush.msra.mxu0 %v2556
        %v2558 = vand.u32 %v2522, 4294901760
        %2559 = vmatpush.msra.mxu0 %v2558
        %v2560 = vand.u32 %v2536, 4294901760
        %v2561 = vsub.f32 %v2536, %v2560
        %v2562 = vand.u32 %v2561, 4294901760
        %v2563 = vsub.f32 %v2561, %v2562
        %v2564 = vand.u32 %v2563, 4294901760
        %2565 = vmatmul.f32.gmra.mxu0 %v2564
        %v2566 = vpop.f32.mrf.mxu0
        %v2567 = vadd.f32 %v2526, %v2566
        %v2568 = vand.u32 %v2538, 4294901760
        %v2569 = vsub.f32 %v2538, %v2568
        %v2570 = vand.u32 %v2569, 4294901760
        %v2571 = vsub.f32 %v2569, %v2570
        %v2572 = vand.u32 %v2571, 4294901760
        %2573 = vmatmul.f32.gmra.mxu0 %v2572
        %v2574 = vpop.f32.mrf.mxu0
        %v2575 = vadd.f32 %v2530, %v2574
        %2576 = vdwg.mxu0
        %2577 = vmatpush.msra.mxu0 0.0
        %2578 = vmatpush.msra.mxu0 0.0
        %2579 = vmatpush.msra.mxu0 0.0
        %2580 = vmatpush.msra.mxu0 0.0
        %2581 = vmatpush.msra.mxu0 0.0
        %2582 = vmatpush.msra.mxu0 0.0
        %2583 = vmatpush.msra.mxu0 0.0
        %2584 = vmatpush.msra.mxu0 0.0
        %2585 = vmatpush.msra.mxu0 0.0
        %2586 = vmatpush.msra.mxu0 0.0
        %2587 = vmatpush.msra.mxu0 0.0
        %2588 = vmatpush.msra.mxu0 0.0
        %v2589 = vand.u32 %v2216, 4294901760
        %v2590 = vsub.f32 %v2216, %v2589
        %v2591 = vand.u32 %v2590, 4294901760
        %v2592 = vsub.f32 %v2590, %v2591
        %v2593 = vand.u32 %v2592, 4294901760
        %2594 = vmatpush.msra.mxu0 %v2593
        %v2595 = vand.u32 %v2212, 4294901760
        %v2596 = vsub.f32 %v2212, %v2595
        %v2597 = vand.u32 %v2596, 4294901760
        %v2598 = vsub.f32 %v2596, %v2597
        %v2599 = vand.u32 %v2598, 4294901760
        %2600 = vmatpush.msra.mxu0 %v2599
        %v2601 = vand.u32 %v2523, 4294901760
        %v2602 = vsub.f32 %v2523, %v2601
        %v2603 = vand.u32 %v2602, 4294901760
        %v2604 = vsub.f32 %v2602, %v2603
        %v2605 = vand.u32 %v2604, 4294901760
        %2606 = vmatpush.msra.mxu0 %v2605
        %v2607 = vand.u32 %v2522, 4294901760
        %v2608 = vsub.f32 %v2522, %v2607
        %v2609 = vand.u32 %v2608, 4294901760
        %v2610 = vsub.f32 %v2608, %v2609
        %v2611 = vand.u32 %v2610, 4294901760
        %2612 = vmatpush.msra.mxu0 %v2611
        %v2613 = vand.u32 %v2536, 4294901760
        %2614 = vmatmul.f32.gmra.mxu0 %v2613
        %v2615 = vpop.f32.mrf.mxu0
        %v2616 = vadd.f32 %v2567, %v2615
        %v2617 = vand.u32 %v2538, 4294901760
        %2618 = vmatmul.f32.gmra.mxu0 %v2617
        %v2619 = vpop.f32.mrf.mxu0
        %v2620 = vadd.f32 %v2575, %v2619
        %2621 = vdwg.mxu0
        %2622 = vmatpush.msra.mxu0 0.0
        %2623 = vmatpush.msra.mxu0 0.0
        %2624 = vmatpush.msra.mxu0 0.0
        %2625 = vmatpush.msra.mxu0 0.0
        %2626 = vmatpush.msra.mxu0 0.0
        %2627 = vmatpush.msra.mxu0 0.0
        %2628 = vmatpush.msra.mxu0 0.0
        %2629 = vmatpush.msra.mxu0 0.0
        %2630 = vmatpush.msra.mxu0 0.0
        %2631 = vmatpush.msra.mxu0 0.0
        %2632 = vmatpush.msra.mxu0 0.0
        %2633 = vmatpush.msra.mxu0 0.0
        %v2634 = vand.u32 %v2216, 4294901760
        %v2635 = vsub.f32 %v2216, %v2634
        %2636 = vmatpush.msra.mxu0 %v2635
        %v2637 = vand.u32 %v2212, 4294901760
        %v2638 = vsub.f32 %v2212, %v2637
        %2639 = vmatpush.msra.mxu0 %v2638
        %v2640 = vand.u32 %v2523, 4294901760
        %v2641 = vsub.f32 %v2523, %v2640
        %2642 = vmatpush.msra.mxu0 %v2641
        %v2643 = vand.u32 %v2522, 4294901760
        %v2644 = vsub.f32 %v2522, %v2643
        %2645 = vmatpush.msra.mxu0 %v2644
        %v2646 = vand.u32 %v2536, 4294901760
        %v2647 = vsub.f32 %v2536, %v2646
        %2648 = vmatmul.f32.gmra.mxu0 %v2647
        %v2649 = vpop.f32.mrf.mxu0
        %v2650 = vadd.f32 %v2616, %v2649
        %v2651 = vand.u32 %v2538, 4294901760
        %v2652 = vsub.f32 %v2538, %v2651
        %2653 = vmatmul.f32.gmra.mxu0 %v2652
        %v2654 = vpop.f32.mrf.mxu0
        %v2655 = vadd.f32 %v2620, %v2654
        %2656 = vdwg.mxu0
        %2657 = vmatpush.msra.mxu0 0.0
        %2658 = vmatpush.msra.mxu0 0.0
        %2659 = vmatpush.msra.mxu0 0.0
        %2660 = vmatpush.msra.mxu0 0.0
        %2661 = vmatpush.msra.mxu0 0.0
        %2662 = vmatpush.msra.mxu0 0.0
        %2663 = vmatpush.msra.mxu0 0.0
        %2664 = vmatpush.msra.mxu0 0.0
        %2665 = vmatpush.msra.mxu0 0.0
        %2666 = vmatpush.msra.mxu0 0.0
        %2667 = vmatpush.msra.mxu0 0.0
        %2668 = vmatpush.msra.mxu0 0.0
        %v2669 = vand.u32 %v2216, 4294901760
        %2670 = vmatpush.msra.mxu0 %v2669
        %v2671 = vand.u32 %v2212, 4294901760
        %2672 = vmatpush.msra.mxu0 %v2671
        %v2673 = vand.u32 %v2523, 4294901760
        %2674 = vmatpush.msra.mxu0 %v2673
        %v2675 = vand.u32 %v2522, 4294901760
        %2676 = vmatpush.msra.mxu0 %v2675
        %v2677 = vand.u32 %v2536, 4294901760
        %v2678 = vsub.f32 %v2536, %v2677
        %v2679 = vand.u32 %v2678, 4294901760
        %2680 = vmatmul.f32.gmra.mxu0 %v2679
        %v2681 = vpop.f32.mrf.mxu0
        %v2682 = vadd.f32 %v2650, %v2681
        %v2683 = vand.u32 %v2538, 4294901760
        %v2684 = vsub.f32 %v2538, %v2683
        %v2685 = vand.u32 %v2684, 4294901760
        %2686 = vmatmul.f32.gmra.mxu0 %v2685
        %v2687 = vpop.f32.mrf.mxu0
        %v2688 = vadd.f32 %v2655, %v2687
        %2689 = vdwg.mxu0
        %2690 = vmatpush.msra.mxu0 0.0
        %2691 = vmatpush.msra.mxu0 0.0
        %2692 = vmatpush.msra.mxu0 0.0
        %2693 = vmatpush.msra.mxu0 0.0
        %2694 = vmatpush.msra.mxu0 0.0
        %2695 = vmatpush.msra.mxu0 0.0
        %2696 = vmatpush.msra.mxu0 0.0
        %2697 = vmatpush.msra.mxu0 0.0
        %2698 = vmatpush.msra.mxu0 0.0
        %2699 = vmatpush.msra.mxu0 0.0
        %2700 = vmatpush.msra.mxu0 0.0
        %2701 = vmatpush.msra.mxu0 0.0
        %v2702 = vand.u32 %v2216, 4294901760
        %v2703 = vsub.f32 %v2216, %v2702
        %v2704 = vand.u32 %v2703, 4294901760
        %2705 = vmatpush.msra.mxu0 %v2704
        %v2706 = vand.u32 %v2212, 4294901760
        %v2707 = vsub.f32 %v2212, %v2706
        %v2708 = vand.u32 %v2707, 4294901760
        %2709 = vmatpush.msra.mxu0 %v2708
        %v2710 = vand.u32 %v2523, 4294901760
        %v2711 = vsub.f32 %v2523, %v2710
        %v2712 = vand.u32 %v2711, 4294901760
        %2713 = vmatpush.msra.mxu0 %v2712
        %v2714 = vand.u32 %v2522, 4294901760
        %v2715 = vsub.f32 %v2522, %v2714
        %v2716 = vand.u32 %v2715, 4294901760
        %2717 = vmatpush.msra.mxu0 %v2716
        %v2718 = vand.u32 %v2536, 4294901760
        %2719 = vmatmul.f32.gmra.mxu0 %v2718
        %v2720 = vpop.f32.mrf.mxu0
        %v2721 = vadd.f32 %v2682, %v2720
        %v2722 = vand.u32 %v2538, 4294901760
        %2723 = vmatmul.f32.gmra.mxu0 %v2722
        %v2724 = vpop.f32.mrf.mxu0
        %v2725 = vadd.f32 %v2688, %v2724
        %2726 = vdwg.mxu0
        %2727 = vmatpush.msra.mxu0 0.0
        %2728 = vmatpush.msra.mxu0 0.0
        %2729 = vmatpush.msra.mxu0 0.0
        %2730 = vmatpush.msra.mxu0 0.0
        %2731 = vmatpush.msra.mxu0 0.0
        %2732 = vmatpush.msra.mxu0 0.0
        %2733 = vmatpush.msra.mxu0 0.0
        %2734 = vmatpush.msra.mxu0 0.0
        %2735 = vmatpush.msra.mxu0 0.0
        %2736 = vmatpush.msra.mxu0 0.0
        %2737 = vmatpush.msra.mxu0 0.0
        %2738 = vmatpush.msra.mxu0 0.0
        %v2739 = vand.u32 %v2216, 4294901760
        %2740 = vmatpush.msra.mxu0 %v2739
        %v2741 = vand.u32 %v2212, 4294901760
        %2742 = vmatpush.msra.mxu0 %v2741
        %v2743 = vand.u32 %v2523, 4294901760
        %2744 = vmatpush.msra.mxu0 %v2743
        %v2745 = vand.u32 %v2522, 4294901760
        %2746 = vmatpush.msra.mxu0 %v2745
        %v2747 = vand.u32 %v2536, 4294901760
        %2748 = vmatmul.f32.gmra.mxu0 %v2747
        %v2749 = vpop.f32.mrf.mxu0
        %v2750 = vadd.f32 %v2721, %v2749
        %v2751 = vand.u32 %v2538, 4294901760
        %2752 = vmatmul.f32.gmra.mxu0 %v2751
        %v2753 = vpop.f32.mrf.mxu0
        %v2754 = vadd.f32 %v2725, %v2753
        %2755 = vdwg.mxu0
        %v2756 = vld [vmem:[%s502] sm:$0xff]
        %v2757 = vld [vmem:[%s502 + $0x8] sm:$0xff]
        %vm2758 = vcmp.ge.f32.partialorder %v2750, 0.0
        %vm2759 = vcmp.ge.f32.partialorder %v2754, 0.0
        %v2760 = vmul.f32 %v2750, 0.2
        %v2761 = vmul.f32 %v2754, 0.2
        %v2762 = vsel %vm2758, %v2750, %v2760
        %v2763 = vsel %vm2759, %v2754, %v2761
        %2768 = vrot.lane.b32.xlu0 %v2762, 1
        %v2769 = vpop.permute.xlu0 %2768
        %2770 = vrot.lane.b32.xlu0 %v2763, 1
        %v2771 = vpop.permute.xlu0 %2770
        %2772 = vrot.lane.b32.xlu0 %v2756, 1
        %v2773 = vpop.permute.xlu0 %2772
        %2774 = vrot.lane.b32.xlu0 %v2757, 1
        %v2775 = vpop.permute.xlu0 %2774
        %v2780 = vsel %vm632, 0.0, %v2769
        %v2781 = vsel %vm632, 0.0, %v2771
        %v2782 = vsel %vm632, 0.0, %v2773
        %v2783 = vsel %vm632, 0.0, %v2775
        %2784 = vrot.lane.b32.xlu0 %v2762, 127
        %v2785 = vpop.permute.xlu0 %2784
        %2786 = vrot.lane.b32.xlu0 %v2763, 127
        %v2787 = vpop.permute.xlu0 %2786
        %2788 = vrot.lane.b32.xlu0 %v2756, 127
        %v2789 = vpop.permute.xlu0 %2788
        %2790 = vrot.lane.b32.xlu0 %v2757, 127
        %v2791 = vpop.permute.xlu0 %2790
        %v2796 = vsel %vm641, %v2785, 0.0
        %v2797 = vsel %vm641, %v2787, 0.0
        %v2798 = vsel %vm641, %v2789, 0.0
        %v2799 = vsel %vm641, %v2791, 0.0
        %vm2800 = vcmask 785408
        %v2802 = vsel %vm2800, %v615, 0
        %v2805 = vsel %vm2800, %v616, 0
        %2807 = vmatpush.msra.mxu0 0.0
        %2808 = vmatpush.msra.mxu0 0.0
        %2809 = vmatpush.msra.mxu0 0.0
        %2810 = vmatpush.msra.mxu0 0.0
        %v2811 = vand.u32 %v2799, 4294901760
        %2812 = vmatpush.msra.mxu0 %v2811
        %v2813 = vand.u32 %v2798, 4294901760
        %2814 = vmatpush.msra.mxu0 %v2813
        %v2815 = vand.u32 %v2797, 4294901760
        %2816 = vmatpush.msra.mxu0 %v2815
        %v2817 = vand.u32 %v2796, 4294901760
        %2818 = vmatpush.msra.mxu0 %v2817
        %v2819 = vand.u32 %v2757, 4294901760
        %2820 = vmatpush.msra.mxu0 %v2819
        %v2821 = vand.u32 %v2756, 4294901760
        %2822 = vmatpush.msra.mxu0 %v2821
        %v2823 = vand.u32 %v2763, 4294901760
        %2824 = vmatpush.msra.mxu0 %v2823
        %v2825 = vand.u32 %v2762, 4294901760
        %2826 = vmatpush.msra.mxu0 %v2825
        %v2827 = vand.u32 %v2783, 4294901760
        %2828 = vmatpush.msra.mxu0 %v2827
        %v2829 = vand.u32 %v2782, 4294901760
        %2830 = vmatpush.msra.mxu0 %v2829
        %v2831 = vand.u32 %v2781, 4294901760
        %2832 = vmatpush.msra.mxu0 %v2831
        %v2833 = vand.u32 %v2780, 4294901760
        %2834 = vmatpush.msra.mxu0 %v2833
        %v2835 = vand.u32 %v2802, 4294901760
        %v2836 = vsub.f32 %v2802, %v2835
        %v2837 = vand.u32 %v2836, 4294901760
        %v2838 = vsub.f32 %v2836, %v2837
        %v2839 = vand.u32 %v2838, 4294901760
        %2840 = vmatmul.f32.gmra.mxu0 %v2839
        %v2841 = vpop.f32.mrf.mxu0
        %v2842 = vadd.f32 0.0, %v2841
        %v2843 = vand.u32 %v2805, 4294901760
        %v2844 = vsub.f32 %v2805, %v2843
        %v2845 = vand.u32 %v2844, 4294901760
        %v2846 = vsub.f32 %v2844, %v2845
        %v2847 = vand.u32 %v2846, 4294901760
        %2848 = vmatmul.f32.gmra.mxu0 %v2847
        %v2849 = vpop.f32.mrf.mxu0
        %v2850 = vadd.f32 0.0, %v2849
        %2851 = vdwg.mxu0
        %2852 = vmatpush.msra.mxu0 0.0
        %2853 = vmatpush.msra.mxu0 0.0
        %2854 = vmatpush.msra.mxu0 0.0
        %2855 = vmatpush.msra.mxu0 0.0
        %v2856 = vand.u32 %v2799, 4294901760
        %v2857 = vsub.f32 %v2799, %v2856
        %v2858 = vand.u32 %v2857, 4294901760
        %v2859 = vsub.f32 %v2857, %v2858
        %v2860 = vand.u32 %v2859, 4294901760
        %2861 = vmatpush.msra.mxu0 %v2860
        %v2862 = vand.u32 %v2798, 4294901760
        %v2863 = vsub.f32 %v2798, %v2862
        %v2864 = vand.u32 %v2863, 4294901760
        %v2865 = vsub.f32 %v2863, %v2864
        %v2866 = vand.u32 %v2865, 4294901760
        %2867 = vmatpush.msra.mxu0 %v2866
        %v2868 = vand.u32 %v2797, 4294901760
        %v2869 = vsub.f32 %v2797, %v2868
        %v2870 = vand.u32 %v2869, 4294901760
        %v2871 = vsub.f32 %v2869, %v2870
        %v2872 = vand.u32 %v2871, 4294901760
        %2873 = vmatpush.msra.mxu0 %v2872
        %v2874 = vand.u32 %v2796, 4294901760
        %v2875 = vsub.f32 %v2796, %v2874
        %v2876 = vand.u32 %v2875, 4294901760
        %v2877 = vsub.f32 %v2875, %v2876
        %v2878 = vand.u32 %v2877, 4294901760
        %2879 = vmatpush.msra.mxu0 %v2878
        %v2880 = vand.u32 %v2757, 4294901760
        %v2881 = vsub.f32 %v2757, %v2880
        %v2882 = vand.u32 %v2881, 4294901760
        %v2883 = vsub.f32 %v2881, %v2882
        %v2884 = vand.u32 %v2883, 4294901760
        %2885 = vmatpush.msra.mxu0 %v2884
        %v2886 = vand.u32 %v2756, 4294901760
        %v2887 = vsub.f32 %v2756, %v2886
        %v2888 = vand.u32 %v2887, 4294901760
        %v2889 = vsub.f32 %v2887, %v2888
        %v2890 = vand.u32 %v2889, 4294901760
        %2891 = vmatpush.msra.mxu0 %v2890
        %v2892 = vand.u32 %v2763, 4294901760
        %v2893 = vsub.f32 %v2763, %v2892
        %v2894 = vand.u32 %v2893, 4294901760
        %v2895 = vsub.f32 %v2893, %v2894
        %v2896 = vand.u32 %v2895, 4294901760
        %2897 = vmatpush.msra.mxu0 %v2896
        %v2898 = vand.u32 %v2762, 4294901760
        %v2899 = vsub.f32 %v2762, %v2898
        %v2900 = vand.u32 %v2899, 4294901760
        %v2901 = vsub.f32 %v2899, %v2900
        %v2902 = vand.u32 %v2901, 4294901760
        %2903 = vmatpush.msra.mxu0 %v2902
        %v2904 = vand.u32 %v2783, 4294901760
        %v2905 = vsub.f32 %v2783, %v2904
        %v2906 = vand.u32 %v2905, 4294901760
        %v2907 = vsub.f32 %v2905, %v2906
        %v2908 = vand.u32 %v2907, 4294901760
        %2909 = vmatpush.msra.mxu0 %v2908
        %v2910 = vand.u32 %v2782, 4294901760
        %v2911 = vsub.f32 %v2782, %v2910
        %v2912 = vand.u32 %v2911, 4294901760
        %v2913 = vsub.f32 %v2911, %v2912
        %v2914 = vand.u32 %v2913, 4294901760
        %2915 = vmatpush.msra.mxu0 %v2914
        %v2916 = vand.u32 %v2781, 4294901760
        %v2917 = vsub.f32 %v2781, %v2916
        %v2918 = vand.u32 %v2917, 4294901760
        %v2919 = vsub.f32 %v2917, %v2918
        %v2920 = vand.u32 %v2919, 4294901760
        %2921 = vmatpush.msra.mxu0 %v2920
        %v2922 = vand.u32 %v2780, 4294901760
        %v2923 = vsub.f32 %v2780, %v2922
        %v2924 = vand.u32 %v2923, 4294901760
        %v2925 = vsub.f32 %v2923, %v2924
        %v2926 = vand.u32 %v2925, 4294901760
        %2927 = vmatpush.msra.mxu0 %v2926
        %v2928 = vand.u32 %v2802, 4294901760
        %2929 = vmatmul.f32.gmra.mxu0 %v2928
        %v2930 = vpop.f32.mrf.mxu0
        %v2931 = vadd.f32 %v2842, %v2930
        %v2932 = vand.u32 %v2805, 4294901760
        %2933 = vmatmul.f32.gmra.mxu0 %v2932
        %v2934 = vpop.f32.mrf.mxu0
        %v2935 = vadd.f32 %v2850, %v2934
        %2936 = vdwg.mxu0
        %2937 = vmatpush.msra.mxu0 0.0
        %2938 = vmatpush.msra.mxu0 0.0
        %2939 = vmatpush.msra.mxu0 0.0
        %2940 = vmatpush.msra.mxu0 0.0
        %v2941 = vand.u32 %v2799, 4294901760
        %v2942 = vsub.f32 %v2799, %v2941
        %2943 = vmatpush.msra.mxu0 %v2942
        %v2944 = vand.u32 %v2798, 4294901760
        %v2945 = vsub.f32 %v2798, %v2944
        %2946 = vmatpush.msra.mxu0 %v2945
        %v2947 = vand.u32 %v2797, 4294901760
        %v2948 = vsub.f32 %v2797, %v2947
        %2949 = vmatpush.msra.mxu0 %v2948
        %v2950 = vand.u32 %v2796, 4294901760
        %v2951 = vsub.f32 %v2796, %v2950
        %2952 = vmatpush.msra.mxu0 %v2951
        %v2953 = vand.u32 %v2757, 4294901760
        %v2954 = vsub.f32 %v2757, %v2953
        %2955 = vmatpush.msra.mxu0 %v2954
        %v2956 = vand.u32 %v2756, 4294901760
        %v2957 = vsub.f32 %v2756, %v2956
        %2958 = vmatpush.msra.mxu0 %v2957
        %v2959 = vand.u32 %v2763, 4294901760
        %v2960 = vsub.f32 %v2763, %v2959
        %2961 = vmatpush.msra.mxu0 %v2960
        %v2962 = vand.u32 %v2762, 4294901760
        %v2963 = vsub.f32 %v2762, %v2962
        %2964 = vmatpush.msra.mxu0 %v2963
        %v2965 = vand.u32 %v2783, 4294901760
        %v2966 = vsub.f32 %v2783, %v2965
        %2967 = vmatpush.msra.mxu0 %v2966
        %v2968 = vand.u32 %v2782, 4294901760
        %v2969 = vsub.f32 %v2782, %v2968
        %2970 = vmatpush.msra.mxu0 %v2969
        %v2971 = vand.u32 %v2781, 4294901760
        %v2972 = vsub.f32 %v2781, %v2971
        %2973 = vmatpush.msra.mxu0 %v2972
        %v2974 = vand.u32 %v2780, 4294901760
        %v2975 = vsub.f32 %v2780, %v2974
        %2976 = vmatpush.msra.mxu0 %v2975
        %v2977 = vand.u32 %v2802, 4294901760
        %v2978 = vsub.f32 %v2802, %v2977
        %2979 = vmatmul.f32.gmra.mxu0 %v2978
        %v2980 = vpop.f32.mrf.mxu0
        %v2981 = vadd.f32 %v2931, %v2980
        %v2982 = vand.u32 %v2805, 4294901760
        %v2983 = vsub.f32 %v2805, %v2982
        %2984 = vmatmul.f32.gmra.mxu0 %v2983
        %v2985 = vpop.f32.mrf.mxu0
        %v2986 = vadd.f32 %v2935, %v2985
        %2987 = vdwg.mxu0
        %2988 = vmatpush.msra.mxu0 0.0
        %2989 = vmatpush.msra.mxu0 0.0
        %2990 = vmatpush.msra.mxu0 0.0
        %2991 = vmatpush.msra.mxu0 0.0
        %v2992 = vand.u32 %v2799, 4294901760
        %2993 = vmatpush.msra.mxu0 %v2992
        %v2994 = vand.u32 %v2798, 4294901760
        %2995 = vmatpush.msra.mxu0 %v2994
        %v2996 = vand.u32 %v2797, 4294901760
        %2997 = vmatpush.msra.mxu0 %v2996
        %v2998 = vand.u32 %v2796, 4294901760
        %2999 = vmatpush.msra.mxu0 %v2998
        %v3000 = vand.u32 %v2757, 4294901760
        %3001 = vmatpush.msra.mxu0 %v3000
        %v3002 = vand.u32 %v2756, 4294901760
        %3003 = vmatpush.msra.mxu0 %v3002
        %v3004 = vand.u32 %v2763, 4294901760
        %3005 = vmatpush.msra.mxu0 %v3004
        %v3006 = vand.u32 %v2762, 4294901760
        %3007 = vmatpush.msra.mxu0 %v3006
        %v3008 = vand.u32 %v2783, 4294901760
        %3009 = vmatpush.msra.mxu0 %v3008
        %v3010 = vand.u32 %v2782, 4294901760
        %3011 = vmatpush.msra.mxu0 %v3010
        %v3012 = vand.u32 %v2781, 4294901760
        %3013 = vmatpush.msra.mxu0 %v3012
        %v3014 = vand.u32 %v2780, 4294901760
        %3015 = vmatpush.msra.mxu0 %v3014
        %v3016 = vand.u32 %v2802, 4294901760
        %v3017 = vsub.f32 %v2802, %v3016
        %v3018 = vand.u32 %v3017, 4294901760
        %3019 = vmatmul.f32.gmra.mxu0 %v3018
        %v3020 = vpop.f32.mrf.mxu0
        %v3021 = vadd.f32 %v2981, %v3020
        %v3022 = vand.u32 %v2805, 4294901760
        %v3023 = vsub.f32 %v2805, %v3022
        %v3024 = vand.u32 %v3023, 4294901760
        %3025 = vmatmul.f32.gmra.mxu0 %v3024
        %v3026 = vpop.f32.mrf.mxu0
        %v3027 = vadd.f32 %v2986, %v3026
        %3028 = vdwg.mxu0
        %3029 = vmatpush.msra.mxu0 0.0
        %3030 = vmatpush.msra.mxu0 0.0
        %3031 = vmatpush.msra.mxu0 0.0
        %3032 = vmatpush.msra.mxu0 0.0
        %v3033 = vand.u32 %v2799, 4294901760
        %v3034 = vsub.f32 %v2799, %v3033
        %v3035 = vand.u32 %v3034, 4294901760
        %3036 = vmatpush.msra.mxu0 %v3035
        %v3037 = vand.u32 %v2798, 4294901760
        %v3038 = vsub.f32 %v2798, %v3037
        %v3039 = vand.u32 %v3038, 4294901760
        %3040 = vmatpush.msra.mxu0 %v3039
        %v3041 = vand.u32 %v2797, 4294901760
        %v3042 = vsub.f32 %v2797, %v3041
        %v3043 = vand.u32 %v3042, 4294901760
        %3044 = vmatpush.msra.mxu0 %v3043
        %v3045 = vand.u32 %v2796, 4294901760
        %v3046 = vsub.f32 %v2796, %v3045
        %v3047 = vand.u32 %v3046, 4294901760
        %3048 = vmatpush.msra.mxu0 %v3047
        %v3049 = vand.u32 %v2757, 4294901760
        %v3050 = vsub.f32 %v2757, %v3049
        %v3051 = vand.u32 %v3050, 4294901760
        %3052 = vmatpush.msra.mxu0 %v3051
        %v3053 = vand.u32 %v2756, 4294901760
        %v3054 = vsub.f32 %v2756, %v3053
        %v3055 = vand.u32 %v3054, 4294901760
        %3056 = vmatpush.msra.mxu0 %v3055
        %v3057 = vand.u32 %v2763, 4294901760
        %v3058 = vsub.f32 %v2763, %v3057
        %v3059 = vand.u32 %v3058, 4294901760
        %3060 = vmatpush.msra.mxu0 %v3059
        %v3061 = vand.u32 %v2762, 4294901760
        %v3062 = vsub.f32 %v2762, %v3061
        %v3063 = vand.u32 %v3062, 4294901760
        %3064 = vmatpush.msra.mxu0 %v3063
        %v3065 = vand.u32 %v2783, 4294901760
        %v3066 = vsub.f32 %v2783, %v3065
        %v3067 = vand.u32 %v3066, 4294901760
        %3068 = vmatpush.msra.mxu0 %v3067
        %v3069 = vand.u32 %v2782, 4294901760
        %v3070 = vsub.f32 %v2782, %v3069
        %v3071 = vand.u32 %v3070, 4294901760
        %3072 = vmatpush.msra.mxu0 %v3071
        %v3073 = vand.u32 %v2781, 4294901760
        %v3074 = vsub.f32 %v2781, %v3073
        %v3075 = vand.u32 %v3074, 4294901760
        %3076 = vmatpush.msra.mxu0 %v3075
        %v3077 = vand.u32 %v2780, 4294901760
        %v3078 = vsub.f32 %v2780, %v3077
        %v3079 = vand.u32 %v3078, 4294901760
        %3080 = vmatpush.msra.mxu0 %v3079
        %v3081 = vand.u32 %v2802, 4294901760
        %3082 = vmatmul.f32.gmra.mxu0 %v3081
        %v3083 = vpop.f32.mrf.mxu0
        %v3084 = vadd.f32 %v3021, %v3083
        %v3085 = vand.u32 %v2805, 4294901760
        %3086 = vmatmul.f32.gmra.mxu0 %v3085
        %v3087 = vpop.f32.mrf.mxu0
        %v3088 = vadd.f32 %v3027, %v3087
        %3089 = vdwg.mxu0
        %3090 = vmatpush.msra.mxu0 0.0
        %3091 = vmatpush.msra.mxu0 0.0
        %3092 = vmatpush.msra.mxu0 0.0
        %3093 = vmatpush.msra.mxu0 0.0
        %v3094 = vand.u32 %v2799, 4294901760
        %3095 = vmatpush.msra.mxu0 %v3094
        %v3096 = vand.u32 %v2798, 4294901760
        %3097 = vmatpush.msra.mxu0 %v3096
        %v3098 = vand.u32 %v2797, 4294901760
        %3099 = vmatpush.msra.mxu0 %v3098
        %v3100 = vand.u32 %v2796, 4294901760
        %3101 = vmatpush.msra.mxu0 %v3100
        %v3102 = vand.u32 %v2757, 4294901760
        %3103 = vmatpush.msra.mxu0 %v3102
        %v3104 = vand.u32 %v2756, 4294901760
        %3105 = vmatpush.msra.mxu0 %v3104
        %v3106 = vand.u32 %v2763, 4294901760
        %3107 = vmatpush.msra.mxu0 %v3106
        %v3108 = vand.u32 %v2762, 4294901760
        %3109 = vmatpush.msra.mxu0 %v3108
        %v3110 = vand.u32 %v2783, 4294901760
        %3111 = vmatpush.msra.mxu0 %v3110
        %v3112 = vand.u32 %v2782, 4294901760
        %3113 = vmatpush.msra.mxu0 %v3112
        %v3114 = vand.u32 %v2781, 4294901760
        %3115 = vmatpush.msra.mxu0 %v3114
        %v3116 = vand.u32 %v2780, 4294901760
        %3117 = vmatpush.msra.mxu0 %v3116
        %v3118 = vand.u32 %v2802, 4294901760
        %3119 = vmatmul.f32.gmra.mxu0 %v3118
        %v3120 = vpop.f32.mrf.mxu0
        %v3121 = vadd.f32 %v3084, %v3120
        %v3122 = vand.u32 %v2805, 4294901760
        %3123 = vmatmul.f32.gmra.mxu0 %v3122
        %v3124 = vpop.f32.mrf.mxu0
        %v3125 = vadd.f32 %v3088, %v3124
        %3126 = vdwg.mxu0
        %3128 = vrot.lane.b32.xlu0 %v3125, 32
        %v3129 = vpop.permute.xlu0 %3128
        %v3131 = vsel %vm921, %v3121, %v3129
        %v3132 = vlaneseq
        %v3133 = vshrl.u32 %v3132, 7
        %v3134 = vadd.s32 %v3133, 8
        %v3135 = vadd.s32 %v3133, 16
        %v3136 = vadd.s32 %v3133, 24
        %v3137 = vmul.u32 %v3133, 2
        %v3138 = vmul.u32 %v3134, 2
        %v3139 = vmul.u32 %v3135, 2
        %v3140 = vmul.u32 %v3136, 2
        %v3141 = vadd.s32 %v3137, 1
        %v3142 = vadd.s32 %v3138, 1
        %v3143 = vadd.s32 %v3139, 1
        %v3144 = vadd.s32 %v3140, 1
        %v3145 = vlaneseq
        %v3146 = vand.u32 %v3145, 127
        %3147 = vset.pattern.permute.xlu0 0
        %3148 = vperm.xlu0 %3147, %v3137
        %v3149 = vpop.permute.xlu0 %3148
        %3150 = vset.pattern.permute.xlu0 0
        %3151 = vperm.xlu0 %3150, %v3138
        %v3152 = vpop.permute.xlu0 %3151
        %3153 = vset.pattern.permute.xlu0 0
        %3154 = vperm.xlu0 %3153, %v3139
        %v3155 = vpop.permute.xlu0 %3154
        %3156 = vset.pattern.permute.xlu0 0
        %3157 = vperm.xlu0 %3156, %v3140
        %v3158 = vpop.permute.xlu0 %3157
        %3159 = vset.pattern.permute.xlu0 0
        %3160 = vperm.xlu0 %3159, %v3141
        %v3161 = vpop.permute.xlu0 %3160
        %3162 = vset.pattern.permute.xlu0 0
        %3163 = vperm.xlu0 %3162, %v3142
        %v3164 = vpop.permute.xlu0 %3163
        %3165 = vset.pattern.permute.xlu0 0
        %3166 = vperm.xlu0 %3165, %v3143
        %v3167 = vpop.permute.xlu0 %3166
        %3168 = vset.pattern.permute.xlu0 0
        %3169 = vperm.xlu0 %3168, %v3144
        %v3170 = vpop.permute.xlu0 %3169
        %vm3171 = vcmp.eq.s32.totalorder %v3146, %v3149
        %vm3172 = vcmp.eq.s32.totalorder %v3146, %v3152
        %vm3173 = vcmp.eq.s32.totalorder %v3146, %v3155
        %vm3174 = vcmp.eq.s32.totalorder %v3146, %v3158
        %vm3175 = vcmp.eq.s32.totalorder %v3146, %v3161
        %vm3176 = vcmp.eq.s32.totalorder %v3146, %v3164
        %vm3177 = vcmp.eq.s32.totalorder %v3146, %v3167
        %vm3178 = vcmp.eq.s32.totalorder %v3146, %v3170
        %v3179 = vsel %vm3171, 1, 0
        %v3180 = vsel %vm3172, 1, 0
        %v3181 = vsel %vm3173, 1, 0
        %v3182 = vsel %vm3174, 1, 0
        %v3183 = vsel %vm3175, 1, 0
        %v3184 = vsel %vm3176, 1, 0
        %v3185 = vsel %vm3177, 1, 0
        %v3186 = vsel %vm3178, 1, 0
        %v3187 = vcvt.s32.f32 %v3179
        %v3188 = vcvt.s32.f32 %v3180
        %v3189 = vcvt.s32.f32 %v3181
        %v3190 = vcvt.s32.f32 %v3182
        %v3191 = vcvt.s32.f32 %v3183
        %v3192 = vcvt.s32.f32 %v3184
        %v3193 = vcvt.s32.f32 %v3185
        %v3194 = vcvt.s32.f32 %v3186
        %3196 = vset.pattern.permute.xlu0 0
        %3197 = vperm.xlu0 %3196, %v617
        %v3198 = vpop.permute.xlu0 %3197
        %vm3200 = vcmask 523264
        %v3202 = vsel %vm3200, %v3131, 0
        %3204 = vmatpush.msra.mxu0 0.0
        %3205 = vmatpush.msra.mxu0 0.0
        %3206 = vmatpush.msra.mxu0 0.0
        %3207 = vmatpush.msra.mxu0 0.0
        %3208 = vmatpush.msra.mxu0 0.0
        %3209 = vmatpush.msra.mxu0 0.0
        %3210 = vmatpush.msra.mxu0 0.0
        %3211 = vmatpush.msra.mxu0 0.0
        %v3212 = vand.u32 %v3194, 4294901760
        %3213 = vmatpush.msra.mxu0 %v3212
        %v3214 = vand.u32 %v3193, 4294901760
        %3215 = vmatpush.msra.mxu0 %v3214
        %v3216 = vand.u32 %v3192, 4294901760
        %3217 = vmatpush.msra.mxu0 %v3216
        %v3218 = vand.u32 %v3191, 4294901760
        %3219 = vmatpush.msra.mxu0 %v3218
        %v3220 = vand.u32 %v3190, 4294901760
        %3221 = vmatpush.msra.mxu0 %v3220
        %v3222 = vand.u32 %v3189, 4294901760
        %3223 = vmatpush.msra.mxu0 %v3222
        %v3224 = vand.u32 %v3188, 4294901760
        %3225 = vmatpush.msra.mxu0 %v3224
        %v3226 = vand.u32 %v3187, 4294901760
        %3227 = vmatpush.msra.mxu0 %v3226
        %v3228 = vand.u32 %v3202, 4294901760
        %v3229 = vsub.f32 %v3202, %v3228
        %v3230 = vand.u32 %v3229, 4294901760
        %v3231 = vsub.f32 %v3229, %v3230
        %v3232 = vand.u32 %v3231, 4294901760
        %3233 = vmatmul.f32.gmra.mxu0 %v3232
        %v3234 = vpop.f32.mrf.mxu0
        %v3235 = vadd.f32 %v3198, %v3234
        %3236 = vdwg.mxu0
        %3237 = vmatpush.msra.mxu0 0.0
        %3238 = vmatpush.msra.mxu0 0.0
        %3239 = vmatpush.msra.mxu0 0.0
        %3240 = vmatpush.msra.mxu0 0.0
        %3241 = vmatpush.msra.mxu0 0.0
        %3242 = vmatpush.msra.mxu0 0.0
        %3243 = vmatpush.msra.mxu0 0.0
        %3244 = vmatpush.msra.mxu0 0.0
        %v3245 = vand.u32 %v3194, 4294901760
        %v3246 = vsub.f32 %v3194, %v3245
        %v3247 = vand.u32 %v3246, 4294901760
        %v3248 = vsub.f32 %v3246, %v3247
        %v3249 = vand.u32 %v3248, 4294901760
        %3250 = vmatpush.msra.mxu0 %v3249
        %v3251 = vand.u32 %v3193, 4294901760
        %v3252 = vsub.f32 %v3193, %v3251
        %v3253 = vand.u32 %v3252, 4294901760
        %v3254 = vsub.f32 %v3252, %v3253
        %v3255 = vand.u32 %v3254, 4294901760
        %3256 = vmatpush.msra.mxu0 %v3255
        %v3257 = vand.u32 %v3192, 4294901760
        %v3258 = vsub.f32 %v3192, %v3257
        %v3259 = vand.u32 %v3258, 4294901760
        %v3260 = vsub.f32 %v3258, %v3259
        %v3261 = vand.u32 %v3260, 4294901760
        %3262 = vmatpush.msra.mxu0 %v3261
        %v3263 = vand.u32 %v3191, 4294901760
        %v3264 = vsub.f32 %v3191, %v3263
        %v3265 = vand.u32 %v3264, 4294901760
        %v3266 = vsub.f32 %v3264, %v3265
        %v3267 = vand.u32 %v3266, 4294901760
        %3268 = vmatpush.msra.mxu0 %v3267
        %v3269 = vand.u32 %v3190, 4294901760
        %v3270 = vsub.f32 %v3190, %v3269
        %v3271 = vand.u32 %v3270, 4294901760
        %v3272 = vsub.f32 %v3270, %v3271
        %v3273 = vand.u32 %v3272, 4294901760
        %3274 = vmatpush.msra.mxu0 %v3273
        %v3275 = vand.u32 %v3189, 4294901760
        %v3276 = vsub.f32 %v3189, %v3275
        %v3277 = vand.u32 %v3276, 4294901760
        %v3278 = vsub.f32 %v3276, %v3277
        %v3279 = vand.u32 %v3278, 4294901760
        %3280 = vmatpush.msra.mxu0 %v3279
        %v3281 = vand.u32 %v3188, 4294901760
        %v3282 = vsub.f32 %v3188, %v3281
        %v3283 = vand.u32 %v3282, 4294901760
        %v3284 = vsub.f32 %v3282, %v3283
        %v3285 = vand.u32 %v3284, 4294901760
        %3286 = vmatpush.msra.mxu0 %v3285
        %v3287 = vand.u32 %v3187, 4294901760
        %v3288 = vsub.f32 %v3187, %v3287
        %v3289 = vand.u32 %v3288, 4294901760
        %v3290 = vsub.f32 %v3288, %v3289
        %v3291 = vand.u32 %v3290, 4294901760
        %3292 = vmatpush.msra.mxu0 %v3291
        %v3293 = vand.u32 %v3202, 4294901760
        %3294 = vmatmul.f32.gmra.mxu0 %v3293
        %v3295 = vpop.f32.mrf.mxu0
        %v3296 = vadd.f32 %v3235, %v3295
        %3297 = vdwg.mxu0
        %3298 = vmatpush.msra.mxu0 0.0
        %3299 = vmatpush.msra.mxu0 0.0
        %3300 = vmatpush.msra.mxu0 0.0
        %3301 = vmatpush.msra.mxu0 0.0
        %3302 = vmatpush.msra.mxu0 0.0
        %3303 = vmatpush.msra.mxu0 0.0
        %3304 = vmatpush.msra.mxu0 0.0
        %3305 = vmatpush.msra.mxu0 0.0
        %v3306 = vand.u32 %v3194, 4294901760
        %v3307 = vsub.f32 %v3194, %v3306
        %3308 = vmatpush.msra.mxu0 %v3307
        %v3309 = vand.u32 %v3193, 4294901760
        %v3310 = vsub.f32 %v3193, %v3309
        %3311 = vmatpush.msra.mxu0 %v3310
        %v3312 = vand.u32 %v3192, 4294901760
        %v3313 = vsub.f32 %v3192, %v3312
        %3314 = vmatpush.msra.mxu0 %v3313
        %v3315 = vand.u32 %v3191, 4294901760
        %v3316 = vsub.f32 %v3191, %v3315
        %3317 = vmatpush.msra.mxu0 %v3316
        %v3318 = vand.u32 %v3190, 4294901760
        %v3319 = vsub.f32 %v3190, %v3318
        %3320 = vmatpush.msra.mxu0 %v3319
        %v3321 = vand.u32 %v3189, 4294901760
        %v3322 = vsub.f32 %v3189, %v3321
        %3323 = vmatpush.msra.mxu0 %v3322
        %v3324 = vand.u32 %v3188, 4294901760
        %v3325 = vsub.f32 %v3188, %v3324
        %3326 = vmatpush.msra.mxu0 %v3325
        %v3327 = vand.u32 %v3187, 4294901760
        %v3328 = vsub.f32 %v3187, %v3327
        %3329 = vmatpush.msra.mxu0 %v3328
        %v3330 = vand.u32 %v3202, 4294901760
        %v3331 = vsub.f32 %v3202, %v3330
        %3332 = vmatmul.f32.gmra.mxu0 %v3331
        %v3333 = vpop.f32.mrf.mxu0
        %v3334 = vadd.f32 %v3296, %v3333
        %3335 = vdwg.mxu0
        %3336 = vmatpush.msra.mxu0 0.0
        %3337 = vmatpush.msra.mxu0 0.0
        %3338 = vmatpush.msra.mxu0 0.0
        %3339 = vmatpush.msra.mxu0 0.0
        %3340 = vmatpush.msra.mxu0 0.0
        %3341 = vmatpush.msra.mxu0 0.0
        %3342 = vmatpush.msra.mxu0 0.0
        %3343 = vmatpush.msra.mxu0 0.0
        %v3344 = vand.u32 %v3194, 4294901760
        %3345 = vmatpush.msra.mxu0 %v3344
        %v3346 = vand.u32 %v3193, 4294901760
        %3347 = vmatpush.msra.mxu0 %v3346
        %v3348 = vand.u32 %v3192, 4294901760
        %3349 = vmatpush.msra.mxu0 %v3348
        %v3350 = vand.u32 %v3191, 4294901760
        %3351 = vmatpush.msra.mxu0 %v3350
        %v3352 = vand.u32 %v3190, 4294901760
        %3353 = vmatpush.msra.mxu0 %v3352
        %v3354 = vand.u32 %v3189, 4294901760
        %3355 = vmatpush.msra.mxu0 %v3354
        %v3356 = vand.u32 %v3188, 4294901760
        %3357 = vmatpush.msra.mxu0 %v3356
        %v3358 = vand.u32 %v3187, 4294901760
        %3359 = vmatpush.msra.mxu0 %v3358
        %v3360 = vand.u32 %v3202, 4294901760
        %v3361 = vsub.f32 %v3202, %v3360
        %v3362 = vand.u32 %v3361, 4294901760
        %3363 = vmatmul.f32.gmra.mxu0 %v3362
        %v3364 = vpop.f32.mrf.mxu0
        %v3365 = vadd.f32 %v3334, %v3364
        %3366 = vdwg.mxu0
        %3367 = vmatpush.msra.mxu0 0.0
        %3368 = vmatpush.msra.mxu0 0.0
        %3369 = vmatpush.msra.mxu0 0.0
        %3370 = vmatpush.msra.mxu0 0.0
        %3371 = vmatpush.msra.mxu0 0.0
        %3372 = vmatpush.msra.mxu0 0.0
        %3373 = vmatpush.msra.mxu0 0.0
        %3374 = vmatpush.msra.mxu0 0.0
        %v3375 = vand.u32 %v3194, 4294901760
        %v3376 = vsub.f32 %v3194, %v3375
        %v3377 = vand.u32 %v3376, 4294901760
        %3378 = vmatpush.msra.mxu0 %v3377
        %v3379 = vand.u32 %v3193, 4294901760
        %v3380 = vsub.f32 %v3193, %v3379
        %v3381 = vand.u32 %v3380, 4294901760
        %3382 = vmatpush.msra.mxu0 %v3381
        %v3383 = vand.u32 %v3192, 4294901760
        %v3384 = vsub.f32 %v3192, %v3383
        %v3385 = vand.u32 %v3384, 4294901760
        %3386 = vmatpush.msra.mxu0 %v3385
        %v3387 = vand.u32 %v3191, 4294901760
        %v3388 = vsub.f32 %v3191, %v3387
        %v3389 = vand.u32 %v3388, 4294901760
        %3390 = vmatpush.msra.mxu0 %v3389
        %v3391 = vand.u32 %v3190, 4294901760
        %v3392 = vsub.f32 %v3190, %v3391
        %v3393 = vand.u32 %v3392, 4294901760
        %3394 = vmatpush.msra.mxu0 %v3393
        %v3395 = vand.u32 %v3189, 4294901760
        %v3396 = vsub.f32 %v3189, %v3395
        %v3397 = vand.u32 %v3396, 4294901760
        %3398 = vmatpush.msra.mxu0 %v3397
        %v3399 = vand.u32 %v3188, 4294901760
        %v3400 = vsub.f32 %v3188, %v3399
        %v3401 = vand.u32 %v3400, 4294901760
        %3402 = vmatpush.msra.mxu0 %v3401
        %v3403 = vand.u32 %v3187, 4294901760
        %v3404 = vsub.f32 %v3187, %v3403
        %v3405 = vand.u32 %v3404, 4294901760
        %3406 = vmatpush.msra.mxu0 %v3405
        %v3407 = vand.u32 %v3202, 4294901760
        %3408 = vmatmul.f32.gmra.mxu0 %v3407
        %v3409 = vpop.f32.mrf.mxu0
        %v3410 = vadd.f32 %v3365, %v3409
        %3411 = vdwg.mxu0
        %3412 = vmatpush.msra.mxu0 0.0
        %3413 = vmatpush.msra.mxu0 0.0
        %3414 = vmatpush.msra.mxu0 0.0
        %3415 = vmatpush.msra.mxu0 0.0
        %3416 = vmatpush.msra.mxu0 0.0
        %3417 = vmatpush.msra.mxu0 0.0
        %3418 = vmatpush.msra.mxu0 0.0
        %3419 = vmatpush.msra.mxu0 0.0
        %v3420 = vand.u32 %v3194, 4294901760
        %3421 = vmatpush.msra.mxu0 %v3420
        %v3422 = vand.u32 %v3193, 4294901760
        %3423 = vmatpush.msra.mxu0 %v3422
        %v3424 = vand.u32 %v3192, 4294901760
        %3425 = vmatpush.msra.mxu0 %v3424
        %v3426 = vand.u32 %v3191, 4294901760
        %3427 = vmatpush.msra.mxu0 %v3426
        %v3428 = vand.u32 %v3190, 4294901760
        %3429 = vmatpush.msra.mxu0 %v3428
        %v3430 = vand.u32 %v3189, 4294901760
        %3431 = vmatpush.msra.mxu0 %v3430
        %v3432 = vand.u32 %v3188, 4294901760
        %3433 = vmatpush.msra.mxu0 %v3432
        %v3434 = vand.u32 %v3187, 4294901760
        %3435 = vmatpush.msra.mxu0 %v3434
        %v3436 = vand.u32 %v3202, 4294901760
        %3437 = vmatmul.f32.gmra.mxu0 %v3436
        %v3438 = vpop.f32.mrf.mxu0
        %v3439 = vadd.f32 %v3410, %v3438
        %3440 = vdwg.mxu0
        %v3441 = vld [vmem:[#allocation14] sm:$0xff]
        %v3442 = vld [vmem:[#allocation14 + $0x8] sm:$0xff]
        %v3443 = vld [vmem:[#allocation14 + $0x10] sm:$0xff]
        %v3444 = vld [vmem:[#allocation14 + $0x18] sm:$0xff]
        %v3445 = vld [vmem:[#allocation16] sm:$0xff]
        %v3446 = vld [vmem:[#allocation16 + $0x8] sm:$0xff]
        %v3447 = vld [vmem:[#allocation16 + $0x10] sm:$0xff]
        %v3448 = vld [vmem:[#allocation16 + $0x18] sm:$0xff]
        %v3449 = vld [vmem:[%s9] sm:$0xff]
        %v3450 = vld [vmem:[#allocation17] sm:$0xf]
        %vm3451 = vcmp.ge.f32.partialorder %v3439, 0.0
        %v3452 = vmul.f32 %v3439, 0.2
        %v3453 = vsel %vm3451, %v3439, %v3452
        %3455 = vrot.lane.b32.xlu0 %v3453, 1
        %v3456 = vpop.permute.xlu0 %3455
        %v3458 = vsel %vm632, %v3453, %v3456
        %3459 = vrot.lane.b32.xlu0 %v3453, 127
        %v3460 = vpop.permute.xlu0 %3459
        %vm3462 = vcmask 515072
        %v3463 = vsel %vm3462, %v3460, %v3453
        %3465 = vset.pattern.permute.xlu0 0
        %3466 = vperm.xlu0 %3465, %v3445
        %v3467 = vpop.permute.xlu0 %3466
        %vm3469 = vcmask 195584
        %v3471 = vsel %vm3469, %v3441, 0
        %3473 = vmatpush.msra.mxu0 0.0
        %3474 = vmatpush.msra.mxu0 0.0
        %3475 = vmatpush.msra.mxu0 0.0
        %3476 = vmatpush.msra.mxu0 0.0
        %3477 = vmatpush.msra.mxu0 0.0
        %3478 = vmatpush.msra.mxu0 0.0
        %3479 = vmatpush.msra.mxu0 0.0
        %3480 = vmatpush.msra.mxu0 0.0
        %3481 = vmatpush.msra.mxu0 0.0
        %3482 = vmatpush.msra.mxu0 0.0
        %3483 = vmatpush.msra.mxu0 0.0
        %3484 = vmatpush.msra.mxu0 0.0
        %3485 = vmatpush.msra.mxu0 0.0
        %v3486 = vand.u32 %v3463, 4294901760
        %3487 = vmatpush.msra.mxu0 %v3486
        %v3488 = vand.u32 %v3453, 4294901760
        %3489 = vmatpush.msra.mxu0 %v3488
        %v3490 = vand.u32 %v3458, 4294901760
        %3491 = vmatpush.msra.mxu0 %v3490
        %v3492 = vand.u32 %v3471, 4294901760
        %v3493 = vsub.f32 %v3471, %v3492
        %v3494 = vand.u32 %v3493, 4294901760
        %v3495 = vsub.f32 %v3493, %v3494
        %v3496 = vand.u32 %v3495, 4294901760
        %3497 = vmatmul.f32.gmra.mxu0 %v3496
        %v3498 = vpop.f32.mrf.mxu0
        %v3499 = vadd.f32 %v3467, %v3498
        %3500 = vdwg.mxu0
        %3501 = vmatpush.msra.mxu0 0.0
        %3502 = vmatpush.msra.mxu0 0.0
        %3503 = vmatpush.msra.mxu0 0.0
        %3504 = vmatpush.msra.mxu0 0.0
        %3505 = vmatpush.msra.mxu0 0.0
        %3506 = vmatpush.msra.mxu0 0.0
        %3507 = vmatpush.msra.mxu0 0.0
        %3508 = vmatpush.msra.mxu0 0.0
        %3509 = vmatpush.msra.mxu0 0.0
        %3510 = vmatpush.msra.mxu0 0.0
        %3511 = vmatpush.msra.mxu0 0.0
        %3512 = vmatpush.msra.mxu0 0.0
        %3513 = vmatpush.msra.mxu0 0.0
        %v3514 = vand.u32 %v3463, 4294901760
        %v3515 = vsub.f32 %v3463, %v3514
        %v3516 = vand.u32 %v3515, 4294901760
        %v3517 = vsub.f32 %v3515, %v3516
        %v3518 = vand.u32 %v3517, 4294901760
        %3519 = vmatpush.msra.mxu0 %v3518
        %v3520 = vand.u32 %v3453, 4294901760
        %v3521 = vsub.f32 %v3453, %v3520
        %v3522 = vand.u32 %v3521, 4294901760
        %v3523 = vsub.f32 %v3521, %v3522
        %v3524 = vand.u32 %v3523, 4294901760
        %3525 = vmatpush.msra.mxu0 %v3524
        %v3526 = vand.u32 %v3458, 4294901760
        %v3527 = vsub.f32 %v3458, %v3526
        %v3528 = vand.u32 %v3527, 4294901760
        %v3529 = vsub.f32 %v3527, %v3528
        %v3530 = vand.u32 %v3529, 4294901760
        %3531 = vmatpush.msra.mxu0 %v3530
        %v3532 = vand.u32 %v3471, 4294901760
        %3533 = vmatmul.f32.gmra.mxu0 %v3532
        %v3534 = vpop.f32.mrf.mxu0
        %v3535 = vadd.f32 %v3499, %v3534
        %3536 = vdwg.mxu0
        %3537 = vmatpush.msra.mxu0 0.0
        %3538 = vmatpush.msra.mxu0 0.0
        %3539 = vmatpush.msra.mxu0 0.0
        %3540 = vmatpush.msra.mxu0 0.0
        %3541 = vmatpush.msra.mxu0 0.0
        %3542 = vmatpush.msra.mxu0 0.0
        %3543 = vmatpush.msra.mxu0 0.0
        %3544 = vmatpush.msra.mxu0 0.0
        %3545 = vmatpush.msra.mxu0 0.0
        %3546 = vmatpush.msra.mxu0 0.0
        %3547 = vmatpush.msra.mxu0 0.0
        %3548 = vmatpush.msra.mxu0 0.0
        %3549 = vmatpush.msra.mxu0 0.0
        %v3550 = vand.u32 %v3463, 4294901760
        %v3551 = vsub.f32 %v3463, %v3550
        %3552 = vmatpush.msra.mxu0 %v3551
        %v3553 = vand.u32 %v3453, 4294901760
        %v3554 = vsub.f32 %v3453, %v3553
        %3555 = vmatpush.msra.mxu0 %v3554
        %v3556 = vand.u32 %v3458, 4294901760
        %v3557 = vsub.f32 %v3458, %v3556
        %3558 = vmatpush.msra.mxu0 %v3557
        %v3559 = vand.u32 %v3471, 4294901760
        %v3560 = vsub.f32 %v3471, %v3559
        %3561 = vmatmul.f32.gmra.mxu0 %v3560
        %v3562 = vpop.f32.mrf.mxu0
        %v3563 = vadd.f32 %v3535, %v3562
        %3564 = vdwg.mxu0
        %3565 = vmatpush.msra.mxu0 0.0
        %3566 = vmatpush.msra.mxu0 0.0
        %3567 = vmatpush.msra.mxu0 0.0
        %3568 = vmatpush.msra.mxu0 0.0
        %3569 = vmatpush.msra.mxu0 0.0
        %3570 = vmatpush.msra.mxu0 0.0
        %3571 = vmatpush.msra.mxu0 0.0
        %3572 = vmatpush.msra.mxu0 0.0
        %3573 = vmatpush.msra.mxu0 0.0
        %3574 = vmatpush.msra.mxu0 0.0
        %3575 = vmatpush.msra.mxu0 0.0
        %3576 = vmatpush.msra.mxu0 0.0
        %3577 = vmatpush.msra.mxu0 0.0
        %v3578 = vand.u32 %v3463, 4294901760
        %3579 = vmatpush.msra.mxu0 %v3578
        %v3580 = vand.u32 %v3453, 4294901760
        %3581 = vmatpush.msra.mxu0 %v3580
        %v3582 = vand.u32 %v3458, 4294901760
        %3583 = vmatpush.msra.mxu0 %v3582
        %v3584 = vand.u32 %v3471, 4294901760
        %v3585 = vsub.f32 %v3471, %v3584
        %v3586 = vand.u32 %v3585, 4294901760
        %3587 = vmatmul.f32.gmra.mxu0 %v3586
        %v3588 = vpop.f32.mrf.mxu0
        %v3589 = vadd.f32 %v3563, %v3588
        %3590 = vdwg.mxu0
        %3591 = vmatpush.msra.mxu0 0.0
        %3592 = vmatpush.msra.mxu0 0.0
        %3593 = vmatpush.msra.mxu0 0.0
        %3594 = vmatpush.msra.mxu0 0.0
        %3595 = vmatpush.msra.mxu0 0.0
        %3596 = vmatpush.msra.mxu0 0.0
        %3597 = vmatpush.msra.mxu0 0.0
        %3598 = vmatpush.msra.mxu0 0.0
        %3599 = vmatpush.msra.mxu0 0.0
        %3600 = vmatpush.msra.mxu0 0.0
        %3601 = vmatpush.msra.mxu0 0.0
        %3602 = vmatpush.msra.mxu0 0.0
        %3603 = vmatpush.msra.mxu0 0.0
        %v3604 = vand.u32 %v3463, 4294901760
        %v3605 = vsub.f32 %v3463, %v3604
        %v3606 = vand.u32 %v3605, 4294901760
        %3607 = vmatpush.msra.mxu0 %v3606
        %v3608 = vand.u32 %v3453, 4294901760
        %v3609 = vsub.f32 %v3453, %v3608
        %v3610 = vand.u32 %v3609, 4294901760
        %3611 = vmatpush.msra.mxu0 %v3610
        %v3612 = vand.u32 %v3458, 4294901760
        %v3613 = vsub.f32 %v3458, %v3612
        %v3614 = vand.u32 %v3613, 4294901760
        %3615 = vmatpush.msra.mxu0 %v3614
        %v3616 = vand.u32 %v3471, 4294901760
        %3617 = vmatmul.f32.gmra.mxu0 %v3616
        %v3618 = vpop.f32.mrf.mxu0
        %v3619 = vadd.f32 %v3589, %v3618
        %3620 = vdwg.mxu0
        %3621 = vmatpush.msra.mxu0 0.0
        %3622 = vmatpush.msra.mxu0 0.0
        %3623 = vmatpush.msra.mxu0 0.0
        %3624 = vmatpush.msra.mxu0 0.0
        %3625 = vmatpush.msra.mxu0 0.0
        %3626 = vmatpush.msra.mxu0 0.0
        %3627 = vmatpush.msra.mxu0 0.0
        %3628 = vmatpush.msra.mxu0 0.0
        %3629 = vmatpush.msra.mxu0 0.0
        %3630 = vmatpush.msra.mxu0 0.0
        %3631 = vmatpush.msra.mxu0 0.0
        %3632 = vmatpush.msra.mxu0 0.0
        %3633 = vmatpush.msra.mxu0 0.0
        %v3634 = vand.u32 %v3463, 4294901760
        %3635 = vmatpush.msra.mxu0 %v3634
        %v3636 = vand.u32 %v3453, 4294901760
        %3637 = vmatpush.msra.mxu0 %v3636
        %v3638 = vand.u32 %v3458, 4294901760
        %3639 = vmatpush.msra.mxu0 %v3638
        %v3640 = vand.u32 %v3471, 4294901760
        %3641 = vmatmul.f32.gmra.mxu0 %v3640
        %v3642 = vpop.f32.mrf.mxu0
        %v3643 = vadd.f32 %v3619, %v3642
        %3644 = vdwg.mxu0
        %vm3645 = vcmp.ge.f32.partialorder %v3643, 0.0
        %v3646 = vmul.f32 %v3643, 0.2
        %v3647 = vsel %vm3645, %v3643, %v3646
        %3648 = vset.pattern.permute.xlu0 1
        %3649 = vperm.xlu0 %3648, %v3445
        %v3650 = vpop.permute.xlu0 %3649
        %3652 = vrot.lane.b32.xlu0 %v3441, 104
        %v3653 = vpop.permute.xlu0 %3652
        %vm3654 = vcmask 130048
        %v3655 = vsel %vm3654, %v3653, 0
        %3657 = vmatpush.msra.mxu0 0.0
        %3658 = vmatpush.msra.mxu0 0.0
        %3659 = vmatpush.msra.mxu0 0.0
        %3660 = vmatpush.msra.mxu0 0.0
        %3661 = vmatpush.msra.mxu0 0.0
        %3662 = vmatpush.msra.mxu0 0.0
        %3663 = vmatpush.msra.mxu0 0.0
        %3664 = vmatpush.msra.mxu0 0.0
        %3665 = vmatpush.msra.mxu0 0.0
        %3666 = vmatpush.msra.mxu0 0.0
        %3667 = vmatpush.msra.mxu0 0.0
        %3668 = vmatpush.msra.mxu0 0.0
        %3669 = vmatpush.msra.mxu0 0.0
        %3670 = vmatpush.msra.mxu0 0.0
        %v3671 = vand.u32 %v3439, 4294901760
        %3672 = vmatpush.msra.mxu0 %v3671
        %v3673 = vand.u32 %v3647, 4294901760
        %3674 = vmatpush.msra.mxu0 %v3673
        %v3675 = vand.u32 %v3655, 4294901760
        %v3676 = vsub.f32 %v3655, %v3675
        %v3677 = vand.u32 %v3676, 4294901760
        %v3678 = vsub.f32 %v3676, %v3677
        %v3679 = vand.u32 %v3678, 4294901760
        %3680 = vmatmul.f32.gmra.mxu0 %v3679
        %v3681 = vpop.f32.mrf.mxu0
        %v3682 = vadd.f32 %v3650, %v3681
        %3683 = vdwg.mxu0
        %3684 = vmatpush.msra.mxu0 0.0
        %3685 = vmatpush.msra.mxu0 0.0
        %3686 = vmatpush.msra.mxu0 0.0
        %3687 = vmatpush.msra.mxu0 0.0
        %3688 = vmatpush.msra.mxu0 0.0
        %3689 = vmatpush.msra.mxu0 0.0
        %3690 = vmatpush.msra.mxu0 0.0
        %3691 = vmatpush.msra.mxu0 0.0
        %3692 = vmatpush.msra.mxu0 0.0
        %3693 = vmatpush.msra.mxu0 0.0
        %3694 = vmatpush.msra.mxu0 0.0
        %3695 = vmatpush.msra.mxu0 0.0
        %3696 = vmatpush.msra.mxu0 0.0
        %3697 = vmatpush.msra.mxu0 0.0
        %v3698 = vand.u32 %v3439, 4294901760
        %v3699 = vsub.f32 %v3439, %v3698
        %v3700 = vand.u32 %v3699, 4294901760
        %v3701 = vsub.f32 %v3699, %v3700
        %v3702 = vand.u32 %v3701, 4294901760
        %3703 = vmatpush.msra.mxu0 %v3702
        %v3704 = vand.u32 %v3647, 4294901760
        %v3705 = vsub.f32 %v3647, %v3704
        %v3706 = vand.u32 %v3705, 4294901760
        %v3707 = vsub.f32 %v3705, %v3706
        %v3708 = vand.u32 %v3707, 4294901760
        %3709 = vmatpush.msra.mxu0 %v3708
        %v3710 = vand.u32 %v3655, 4294901760
        %3711 = vmatmul.f32.gmra.mxu0 %v3710
        %v3712 = vpop.f32.mrf.mxu0
        %v3713 = vadd.f32 %v3682, %v3712
        %3714 = vdwg.mxu0
        %3715 = vmatpush.msra.mxu0 0.0
        %3716 = vmatpush.msra.mxu0 0.0
        %3717 = vmatpush.msra.mxu0 0.0
        %3718 = vmatpush.msra.mxu0 0.0
        %3719 = vmatpush.msra.mxu0 0.0
        %3720 = vmatpush.msra.mxu0 0.0
        %3721 = vmatpush.msra.mxu0 0.0
        %3722 = vmatpush.msra.mxu0 0.0
        %3723 = vmatpush.msra.mxu0 0.0
        %3724 = vmatpush.msra.mxu0 0.0
        %3725 = vmatpush.msra.mxu0 0.0
        %3726 = vmatpush.msra.mxu0 0.0
        %3727 = vmatpush.msra.mxu0 0.0
        %3728 = vmatpush.msra.mxu0 0.0
        %v3729 = vand.u32 %v3439, 4294901760
        %v3730 = vsub.f32 %v3439, %v3729
        %3731 = vmatpush.msra.mxu0 %v3730
        %v3732 = vand.u32 %v3647, 4294901760
        %v3733 = vsub.f32 %v3647, %v3732
        %3734 = vmatpush.msra.mxu0 %v3733
        %v3735 = vand.u32 %v3655, 4294901760
        %v3736 = vsub.f32 %v3655, %v3735
        %3737 = vmatmul.f32.gmra.mxu0 %v3736
        %v3738 = vpop.f32.mrf.mxu0
        %v3739 = vadd.f32 %v3713, %v3738
        %3740 = vdwg.mxu0
        %3741 = vmatpush.msra.mxu0 0.0
        %3742 = vmatpush.msra.mxu0 0.0
        %3743 = vmatpush.msra.mxu0 0.0
        %3744 = vmatpush.msra.mxu0 0.0
        %3745 = vmatpush.msra.mxu0 0.0
        %3746 = vmatpush.msra.mxu0 0.0
        %3747 = vmatpush.msra.mxu0 0.0
        %3748 = vmatpush.msra.mxu0 0.0
        %3749 = vmatpush.msra.mxu0 0.0
        %3750 = vmatpush.msra.mxu0 0.0
        %3751 = vmatpush.msra.mxu0 0.0
        %3752 = vmatpush.msra.mxu0 0.0
        %3753 = vmatpush.msra.mxu0 0.0
        %3754 = vmatpush.msra.mxu0 0.0
        %v3755 = vand.u32 %v3439, 4294901760
        %3756 = vmatpush.msra.mxu0 %v3755
        %v3757 = vand.u32 %v3647, 4294901760
        %3758 = vmatpush.msra.mxu0 %v3757
        %v3759 = vand.u32 %v3655, 4294901760
        %v3760 = vsub.f32 %v3655, %v3759
        %v3761 = vand.u32 %v3760, 4294901760
        %3762 = vmatmul.f32.gmra.mxu0 %v3761
        %v3763 = vpop.f32.mrf.mxu0
        %v3764 = vadd.f32 %v3739, %v3763
        %3765 = vdwg.mxu0
        %3766 = vmatpush.msra.mxu0 0.0
        %3767 = vmatpush.msra.mxu0 0.0
        %3768 = vmatpush.msra.mxu0 0.0
        %3769 = vmatpush.msra.mxu0 0.0
        %3770 = vmatpush.msra.mxu0 0.0
        %3771 = vmatpush.msra.mxu0 0.0
        %3772 = vmatpush.msra.mxu0 0.0
        %3773 = vmatpush.msra.mxu0 0.0
        %3774 = vmatpush.msra.mxu0 0.0
        %3775 = vmatpush.msra.mxu0 0.0
        %3776 = vmatpush.msra.mxu0 0.0
        %3777 = vmatpush.msra.mxu0 0.0
        %3778 = vmatpush.msra.mxu0 0.0
        %3779 = vmatpush.msra.mxu0 0.0
        %v3780 = vand.u32 %v3439, 4294901760
        %v3781 = vsub.f32 %v3439, %v3780
        %v3782 = vand.u32 %v3781, 4294901760
        %3783 = vmatpush.msra.mxu0 %v3782
        %v3784 = vand.u32 %v3647, 4294901760
        %v3785 = vsub.f32 %v3647, %v3784
        %v3786 = vand.u32 %v3785, 4294901760
        %3787 = vmatpush.msra.mxu0 %v3786
        %v3788 = vand.u32 %v3655, 4294901760
        %3789 = vmatmul.f32.gmra.mxu0 %v3788
        %v3790 = vpop.f32.mrf.mxu0
        %v3791 = vadd.f32 %v3764, %v3790
        %3792 = vdwg.mxu0
        %3793 = vmatpush.msra.mxu0 0.0
        %3794 = vmatpush.msra.mxu0 0.0
        %3795 = vmatpush.msra.mxu0 0.0
        %3796 = vmatpush.msra.mxu0 0.0
        %3797 = vmatpush.msra.mxu0 0.0
        %3798 = vmatpush.msra.mxu0 0.0
        %3799 = vmatpush.msra.mxu0 0.0
        %3800 = vmatpush.msra.mxu0 0.0
        %3801 = vmatpush.msra.mxu0 0.0
        %3802 = vmatpush.msra.mxu0 0.0
        %3803 = vmatpush.msra.mxu0 0.0
        %3804 = vmatpush.msra.mxu0 0.0
        %3805 = vmatpush.msra.mxu0 0.0
        %3806 = vmatpush.msra.mxu0 0.0
        %v3807 = vand.u32 %v3439, 4294901760
        %3808 = vmatpush.msra.mxu0 %v3807
        %v3809 = vand.u32 %v3647, 4294901760
        %3810 = vmatpush.msra.mxu0 %v3809
        %v3811 = vand.u32 %v3655, 4294901760
        %3812 = vmatmul.f32.gmra.mxu0 %v3811
        %v3813 = vpop.f32.mrf.mxu0
        %v3814 = vadd.f32 %v3791, %v3813
        %3815 = vdwg.mxu0
        %vm3816 = vcmp.ge.f32.partialorder %v3814, 0.0
        %v3817 = vmul.f32 %v3814, 0.2
        %v3818 = vsel %vm3816, %v3814, %v3817
        %3820 = vset.pattern.permute.xlu0 0
        %3821 = vperm.xlu0 %3820, %v3818
        %v3822 = vpop.permute.xlu0 %3821
        %3824 = vrot.lane.b32.xlu0 %v3818, 3
        %v3825 = vpop.permute.xlu0 %3824
        %v3827 = vsel %vm1164, %v3822, %v3825
        %3828 = vset.pattern.permute.xlu0 63
        %3829 = vperm.xlu0 %3828, %v3818
        %v3830 = vpop.permute.xlu0 %3829
        %3832 = vrot.lane.b32.xlu0 %v3818, 125
        %v3833 = vpop.permute.xlu0 %3832
        %vm3835 = vcmask 498688
        %v3836 = vsel %vm3835, %v3833, %v3830
        %3838 = vset.pattern.permute.xlu0 0
        %3839 = vperm.xlu0 %3838, %v3446
        %v3840 = vpop.permute.xlu0 %3839
        %v3843 = vsel %vm3469, %v3442, 0
        %3845 = vmatpush.msra.mxu0 0.0
        %3846 = vmatpush.msra.mxu0 0.0
        %3847 = vmatpush.msra.mxu0 0.0
        %3848 = vmatpush.msra.mxu0 0.0
        %3849 = vmatpush.msra.mxu0 0.0
        %3850 = vmatpush.msra.mxu0 0.0
        %3851 = vmatpush.msra.mxu0 0.0
        %3852 = vmatpush.msra.mxu0 0.0
        %3853 = vmatpush.msra.mxu0 0.0
        %3854 = vmatpush.msra.mxu0 0.0
        %3855 = vmatpush.msra.mxu0 0.0
        %3856 = vmatpush.msra.mxu0 0.0
        %3857 = vmatpush.msra.mxu0 0.0
        %v3858 = vand.u32 %v3836, 4294901760
        %3859 = vmatpush.msra.mxu0 %v3858
        %v3860 = vand.u32 %v3818, 4294901760
        %3861 = vmatpush.msra.mxu0 %v3860
        %v3862 = vand.u32 %v3827, 4294901760
        %3863 = vmatpush.msra.mxu0 %v3862
        %v3864 = vand.u32 %v3843, 4294901760
        %v3865 = vsub.f32 %v3843, %v3864
        %v3866 = vand.u32 %v3865, 4294901760
        %v3867 = vsub.f32 %v3865, %v3866
        %v3868 = vand.u32 %v3867, 4294901760
        %3869 = vmatmul.f32.gmra.mxu0 %v3868
        %v3870 = vpop.f32.mrf.mxu0
        %v3871 = vadd.f32 %v3840, %v3870
        %3872 = vdwg.mxu0
        %3873 = vmatpush.msra.mxu0 0.0
        %3874 = vmatpush.msra.mxu0 0.0
        %3875 = vmatpush.msra.mxu0 0.0
        %3876 = vmatpush.msra.mxu0 0.0
        %3877 = vmatpush.msra.mxu0 0.0
        %3878 = vmatpush.msra.mxu0 0.0
        %3879 = vmatpush.msra.mxu0 0.0
        %3880 = vmatpush.msra.mxu0 0.0
        %3881 = vmatpush.msra.mxu0 0.0
        %3882 = vmatpush.msra.mxu0 0.0
        %3883 = vmatpush.msra.mxu0 0.0
        %3884 = vmatpush.msra.mxu0 0.0
        %3885 = vmatpush.msra.mxu0 0.0
        %v3886 = vand.u32 %v3836, 4294901760
        %v3887 = vsub.f32 %v3836, %v3886
        %v3888 = vand.u32 %v3887, 4294901760
        %v3889 = vsub.f32 %v3887, %v3888
        %v3890 = vand.u32 %v3889, 4294901760
        %3891 = vmatpush.msra.mxu0 %v3890
        %v3892 = vand.u32 %v3818, 4294901760
        %v3893 = vsub.f32 %v3818, %v3892
        %v3894 = vand.u32 %v3893, 4294901760
        %v3895 = vsub.f32 %v3893, %v3894
        %v3896 = vand.u32 %v3895, 4294901760
        %3897 = vmatpush.msra.mxu0 %v3896
        %v3898 = vand.u32 %v3827, 4294901760
        %v3899 = vsub.f32 %v3827, %v3898
        %v3900 = vand.u32 %v3899, 4294901760
        %v3901 = vsub.f32 %v3899, %v3900
        %v3902 = vand.u32 %v3901, 4294901760
        %3903 = vmatpush.msra.mxu0 %v3902
        %v3904 = vand.u32 %v3843, 4294901760
        %3905 = vmatmul.f32.gmra.mxu0 %v3904
        %v3906 = vpop.f32.mrf.mxu0
        %v3907 = vadd.f32 %v3871, %v3906
        %3908 = vdwg.mxu0
        %3909 = vmatpush.msra.mxu0 0.0
        %3910 = vmatpush.msra.mxu0 0.0
        %3911 = vmatpush.msra.mxu0 0.0
        %3912 = vmatpush.msra.mxu0 0.0
        %3913 = vmatpush.msra.mxu0 0.0
        %3914 = vmatpush.msra.mxu0 0.0
        %3915 = vmatpush.msra.mxu0 0.0
        %3916 = vmatpush.msra.mxu0 0.0
        %3917 = vmatpush.msra.mxu0 0.0
        %3918 = vmatpush.msra.mxu0 0.0
        %3919 = vmatpush.msra.mxu0 0.0
        %3920 = vmatpush.msra.mxu0 0.0
        %3921 = vmatpush.msra.mxu0 0.0
        %v3922 = vand.u32 %v3836, 4294901760
        %v3923 = vsub.f32 %v3836, %v3922
        %3924 = vmatpush.msra.mxu0 %v3923
        %v3925 = vand.u32 %v3818, 4294901760
        %v3926 = vsub.f32 %v3818, %v3925
        %3927 = vmatpush.msra.mxu0 %v3926
        %v3928 = vand.u32 %v3827, 4294901760
        %v3929 = vsub.f32 %v3827, %v3928
        %3930 = vmatpush.msra.mxu0 %v3929
        %v3931 = vand.u32 %v3843, 4294901760
        %v3932 = vsub.f32 %v3843, %v3931
        %3933 = vmatmul.f32.gmra.mxu0 %v3932
        %v3934 = vpop.f32.mrf.mxu0
        %v3935 = vadd.f32 %v3907, %v3934
        %3936 = vdwg.mxu0
        %3937 = vmatpush.msra.mxu0 0.0
        %3938 = vmatpush.msra.mxu0 0.0
        %3939 = vmatpush.msra.mxu0 0.0
        %3940 = vmatpush.msra.mxu0 0.0
        %3941 = vmatpush.msra.mxu0 0.0
        %3942 = vmatpush.msra.mxu0 0.0
        %3943 = vmatpush.msra.mxu0 0.0
        %3944 = vmatpush.msra.mxu0 0.0
        %3945 = vmatpush.msra.mxu0 0.0
        %3946 = vmatpush.msra.mxu0 0.0
        %3947 = vmatpush.msra.mxu0 0.0
        %3948 = vmatpush.msra.mxu0 0.0
        %3949 = vmatpush.msra.mxu0 0.0
        %v3950 = vand.u32 %v3836, 4294901760
        %3951 = vmatpush.msra.mxu0 %v3950
        %v3952 = vand.u32 %v3818, 4294901760
        %3953 = vmatpush.msra.mxu0 %v3952
        %v3954 = vand.u32 %v3827, 4294901760
        %3955 = vmatpush.msra.mxu0 %v3954
        %v3956 = vand.u32 %v3843, 4294901760
        %v3957 = vsub.f32 %v3843, %v3956
        %v3958 = vand.u32 %v3957, 4294901760
        %3959 = vmatmul.f32.gmra.mxu0 %v3958
        %v3960 = vpop.f32.mrf.mxu0
        %v3961 = vadd.f32 %v3935, %v3960
        %3962 = vdwg.mxu0
        %3963 = vmatpush.msra.mxu0 0.0
        %3964 = vmatpush.msra.mxu0 0.0
        %3965 = vmatpush.msra.mxu0 0.0
        %3966 = vmatpush.msra.mxu0 0.0
        %3967 = vmatpush.msra.mxu0 0.0
        %3968 = vmatpush.msra.mxu0 0.0
        %3969 = vmatpush.msra.mxu0 0.0
        %3970 = vmatpush.msra.mxu0 0.0
        %3971 = vmatpush.msra.mxu0 0.0
        %3972 = vmatpush.msra.mxu0 0.0
        %3973 = vmatpush.msra.mxu0 0.0
        %3974 = vmatpush.msra.mxu0 0.0
        %3975 = vmatpush.msra.mxu0 0.0
        %v3976 = vand.u32 %v3836, 4294901760
        %v3977 = vsub.f32 %v3836, %v3976
        %v3978 = vand.u32 %v3977, 4294901760
        %3979 = vmatpush.msra.mxu0 %v3978
        %v3980 = vand.u32 %v3818, 4294901760
        %v3981 = vsub.f32 %v3818, %v3980
        %v3982 = vand.u32 %v3981, 4294901760
        %3983 = vmatpush.msra.mxu0 %v3982
        %v3984 = vand.u32 %v3827, 4294901760
        %v3985 = vsub.f32 %v3827, %v3984
        %v3986 = vand.u32 %v3985, 4294901760
        %3987 = vmatpush.msra.mxu0 %v3986
        %v3988 = vand.u32 %v3843, 4294901760
        %3989 = vmatmul.f32.gmra.mxu0 %v3988
        %v3990 = vpop.f32.mrf.mxu0
        %v3991 = vadd.f32 %v3961, %v3990
        %3992 = vdwg.mxu0
        %3993 = vmatpush.msra.mxu0 0.0
        %3994 = vmatpush.msra.mxu0 0.0
        %3995 = vmatpush.msra.mxu0 0.0
        %3996 = vmatpush.msra.mxu0 0.0
        %3997 = vmatpush.msra.mxu0 0.0
        %3998 = vmatpush.msra.mxu0 0.0
        %3999 = vmatpush.msra.mxu0 0.0
        %4000 = vmatpush.msra.mxu0 0.0
        %4001 = vmatpush.msra.mxu0 0.0
        %4002 = vmatpush.msra.mxu0 0.0
        %4003 = vmatpush.msra.mxu0 0.0
        %4004 = vmatpush.msra.mxu0 0.0
        %4005 = vmatpush.msra.mxu0 0.0
        %v4006 = vand.u32 %v3836, 4294901760
        %4007 = vmatpush.msra.mxu0 %v4006
        %v4008 = vand.u32 %v3818, 4294901760
        %4009 = vmatpush.msra.mxu0 %v4008
        %v4010 = vand.u32 %v3827, 4294901760
        %4011 = vmatpush.msra.mxu0 %v4010
        %v4012 = vand.u32 %v3843, 4294901760
        %4013 = vmatmul.f32.gmra.mxu0 %v4012
        %v4014 = vpop.f32.mrf.mxu0
        %v4015 = vadd.f32 %v3991, %v4014
        %4016 = vdwg.mxu0
        %vm4017 = vcmp.ge.f32.partialorder %v4015, 0.0
        %v4018 = vmul.f32 %v4015, 0.2
        %v4019 = vsel %vm4017, %v4015, %v4018
        %4020 = vset.pattern.permute.xlu0 1
        %4021 = vperm.xlu0 %4020, %v3446
        %v4022 = vpop.permute.xlu0 %4021
        %4024 = vrot.lane.b32.xlu0 %v3442, 104
        %v4025 = vpop.permute.xlu0 %4024
        %v4026 = vsel %vm3654, %v4025, 0
        %4028 = vmatpush.msra.mxu0 0.0
        %4029 = vmatpush.msra.mxu0 0.0
        %4030 = vmatpush.msra.mxu0 0.0
        %4031 = vmatpush.msra.mxu0 0.0
        %4032 = vmatpush.msra.mxu0 0.0
        %4033 = vmatpush.msra.mxu0 0.0
        %4034 = vmatpush.msra.mxu0 0.0
        %4035 = vmatpush.msra.mxu0 0.0
        %4036 = vmatpush.msra.mxu0 0.0
        %4037 = vmatpush.msra.mxu0 0.0
        %4038 = vmatpush.msra.mxu0 0.0
        %4039 = vmatpush.msra.mxu0 0.0
        %4040 = vmatpush.msra.mxu0 0.0
        %4041 = vmatpush.msra.mxu0 0.0
        %v4042 = vand.u32 %v3814, 4294901760
        %4043 = vmatpush.msra.mxu0 %v4042
        %v4044 = vand.u32 %v4019, 4294901760
        %4045 = vmatpush.msra.mxu0 %v4044
        %v4046 = vand.u32 %v4026, 4294901760
        %v4047 = vsub.f32 %v4026, %v4046
        %v4048 = vand.u32 %v4047, 4294901760
        %v4049 = vsub.f32 %v4047, %v4048
        %v4050 = vand.u32 %v4049, 4294901760
        %4051 = vmatmul.f32.gmra.mxu0 %v4050
        %v4052 = vpop.f32.mrf.mxu0
        %v4053 = vadd.f32 %v4022, %v4052
        %4054 = vdwg.mxu0
        %4055 = vmatpush.msra.mxu0 0.0
        %4056 = vmatpush.msra.mxu0 0.0
        %4057 = vmatpush.msra.mxu0 0.0
        %4058 = vmatpush.msra.mxu0 0.0
        %4059 = vmatpush.msra.mxu0 0.0
        %4060 = vmatpush.msra.mxu0 0.0
        %4061 = vmatpush.msra.mxu0 0.0
        %4062 = vmatpush.msra.mxu0 0.0
        %4063 = vmatpush.msra.mxu0 0.0
        %4064 = vmatpush.msra.mxu0 0.0
        %4065 = vmatpush.msra.mxu0 0.0
        %4066 = vmatpush.msra.mxu0 0.0
        %4067 = vmatpush.msra.mxu0 0.0
        %4068 = vmatpush.msra.mxu0 0.0
        %v4069 = vand.u32 %v3814, 4294901760
        %v4070 = vsub.f32 %v3814, %v4069
        %v4071 = vand.u32 %v4070, 4294901760
        %v4072 = vsub.f32 %v4070, %v4071
        %v4073 = vand.u32 %v4072, 4294901760
        %4074 = vmatpush.msra.mxu0 %v4073
        %v4075 = vand.u32 %v4019, 4294901760
        %v4076 = vsub.f32 %v4019, %v4075
        %v4077 = vand.u32 %v4076, 4294901760
        %v4078 = vsub.f32 %v4076, %v4077
        %v4079 = vand.u32 %v4078, 4294901760
        %4080 = vmatpush.msra.mxu0 %v4079
        %v4081 = vand.u32 %v4026, 4294901760
        %4082 = vmatmul.f32.gmra.mxu0 %v4081
        %v4083 = vpop.f32.mrf.mxu0
        %v4084 = vadd.f32 %v4053, %v4083
        %4085 = vdwg.mxu0
        %4086 = vmatpush.msra.mxu0 0.0
        %4087 = vmatpush.msra.mxu0 0.0
        %4088 = vmatpush.msra.mxu0 0.0
        %4089 = vmatpush.msra.mxu0 0.0
        %4090 = vmatpush.msra.mxu0 0.0
        %4091 = vmatpush.msra.mxu0 0.0
        %4092 = vmatpush.msra.mxu0 0.0
        %4093 = vmatpush.msra.mxu0 0.0
        %4094 = vmatpush.msra.mxu0 0.0
        %4095 = vmatpush.msra.mxu0 0.0
        %4096 = vmatpush.msra.mxu0 0.0
        %4097 = vmatpush.msra.mxu0 0.0
        %4098 = vmatpush.msra.mxu0 0.0
        %4099 = vmatpush.msra.mxu0 0.0
        %v4100 = vand.u32 %v3814, 4294901760
        %v4101 = vsub.f32 %v3814, %v4100
        %4102 = vmatpush.msra.mxu0 %v4101
        %v4103 = vand.u32 %v4019, 4294901760
        %v4104 = vsub.f32 %v4019, %v4103
        %4105 = vmatpush.msra.mxu0 %v4104
        %v4106 = vand.u32 %v4026, 4294901760
        %v4107 = vsub.f32 %v4026, %v4106
        %4108 = vmatmul.f32.gmra.mxu0 %v4107
        %v4109 = vpop.f32.mrf.mxu0
        %v4110 = vadd.f32 %v4084, %v4109
        %4111 = vdwg.mxu0
        %4112 = vmatpush.msra.mxu0 0.0
        %4113 = vmatpush.msra.mxu0 0.0
        %4114 = vmatpush.msra.mxu0 0.0
        %4115 = vmatpush.msra.mxu0 0.0
        %4116 = vmatpush.msra.mxu0 0.0
        %4117 = vmatpush.msra.mxu0 0.0
        %4118 = vmatpush.msra.mxu0 0.0
        %4119 = vmatpush.msra.mxu0 0.0
        %4120 = vmatpush.msra.mxu0 0.0
        %4121 = vmatpush.msra.mxu0 0.0
        %4122 = vmatpush.msra.mxu0 0.0
        %4123 = vmatpush.msra.mxu0 0.0
        %4124 = vmatpush.msra.mxu0 0.0
        %4125 = vmatpush.msra.mxu0 0.0
        %v4126 = vand.u32 %v3814, 4294901760
        %4127 = vmatpush.msra.mxu0 %v4126
        %v4128 = vand.u32 %v4019, 4294901760
        %4129 = vmatpush.msra.mxu0 %v4128
        %v4130 = vand.u32 %v4026, 4294901760
        %v4131 = vsub.f32 %v4026, %v4130
        %v4132 = vand.u32 %v4131, 4294901760
        %4133 = vmatmul.f32.gmra.mxu0 %v4132
        %v4134 = vpop.f32.mrf.mxu0
        %v4135 = vadd.f32 %v4110, %v4134
        %4136 = vdwg.mxu0
        %4137 = vmatpush.msra.mxu0 0.0
        %4138 = vmatpush.msra.mxu0 0.0
        %4139 = vmatpush.msra.mxu0 0.0
        %4140 = vmatpush.msra.mxu0 0.0
        %4141 = vmatpush.msra.mxu0 0.0
        %4142 = vmatpush.msra.mxu0 0.0
        %4143 = vmatpush.msra.mxu0 0.0
        %4144 = vmatpush.msra.mxu0 0.0
        %4145 = vmatpush.msra.mxu0 0.0
        %4146 = vmatpush.msra.mxu0 0.0
        %4147 = vmatpush.msra.mxu0 0.0
        %4148 = vmatpush.msra.mxu0 0.0
        %4149 = vmatpush.msra.mxu0 0.0
        %4150 = vmatpush.msra.mxu0 0.0
        %v4151 = vand.u32 %v3814, 4294901760
        %v4152 = vsub.f32 %v3814, %v4151
        %v4153 = vand.u32 %v4152, 4294901760
        %4154 = vmatpush.msra.mxu0 %v4153
        %v4155 = vand.u32 %v4019, 4294901760
        %v4156 = vsub.f32 %v4019, %v4155
        %v4157 = vand.u32 %v4156, 4294901760
        %4158 = vmatpush.msra.mxu0 %v4157
        %v4159 = vand.u32 %v4026, 4294901760
        %4160 = vmatmul.f32.gmra.mxu0 %v4159
        %v4161 = vpop.f32.mrf.mxu0
        %v4162 = vadd.f32 %v4135, %v4161
        %4163 = vdwg.mxu0
        %4164 = vmatpush.msra.mxu0 0.0
        %4165 = vmatpush.msra.mxu0 0.0
        %4166 = vmatpush.msra.mxu0 0.0
        %4167 = vmatpush.msra.mxu0 0.0
        %4168 = vmatpush.msra.mxu0 0.0
        %4169 = vmatpush.msra.mxu0 0.0
        %4170 = vmatpush.msra.mxu0 0.0
        %4171 = vmatpush.msra.mxu0 0.0
        %4172 = vmatpush.msra.mxu0 0.0
        %4173 = vmatpush.msra.mxu0 0.0
        %4174 = vmatpush.msra.mxu0 0.0
        %4175 = vmatpush.msra.mxu0 0.0
        %4176 = vmatpush.msra.mxu0 0.0
        %4177 = vmatpush.msra.mxu0 0.0
        %v4178 = vand.u32 %v3814, 4294901760
        %4179 = vmatpush.msra.mxu0 %v4178
        %v4180 = vand.u32 %v4019, 4294901760
        %4181 = vmatpush.msra.mxu0 %v4180
        %v4182 = vand.u32 %v4026, 4294901760
        %4183 = vmatmul.f32.gmra.mxu0 %v4182
        %v4184 = vpop.f32.mrf.mxu0
        %v4185 = vadd.f32 %v4162, %v4184
        %4186 = vdwg.mxu0
        %vm4187 = vcmp.ge.f32.partialorder %v4185, 0.0
        %v4188 = vmul.f32 %v4185, 0.2
        %v4189 = vsel %vm4187, %v4185, %v4188
        %4191 = vset.pattern.permute.xlu0 0
        %4192 = vperm.xlu0 %4191, %v4189
        %v4193 = vpop.permute.xlu0 %4192
        %4195 = vrot.lane.b32.xlu0 %v4189, 9
        %v4196 = vpop.permute.xlu0 %4195
        %v4198 = vsel %vm1702, %v4193, %v4196
        %4199 = vset.pattern.permute.xlu0 63
        %4200 = vperm.xlu0 %4199, %v4189
        %v4201 = vpop.permute.xlu0 %4200
        %4203 = vrot.lane.b32.xlu0 %v4189, 119
        %v4204 = vpop.permute.xlu0 %4203
        %vm4206 = vcmask 449536
        %v4207 = vsel %vm4206, %v4204, %v4201
        %4209 = vset.pattern.permute.xlu0 0
        %4210 = vperm.xlu0 %4209, %v3447
        %v4211 = vpop.permute.xlu0 %4210
        %v4214 = vsel %vm3469, %v3443, 0
        %4216 = vmatpush.msra.mxu0 0.0
        %4217 = vmatpush.msra.mxu0 0.0
        %4218 = vmatpush.msra.mxu0 0.0
        %4219 = vmatpush.msra.mxu0 0.0
        %4220 = vmatpush.msra.mxu0 0.0
        %4221 = vmatpush.msra.mxu0 0.0
        %4222 = vmatpush.msra.mxu0 0.0
        %4223 = vmatpush.msra.mxu0 0.0
        %4224 = vmatpush.msra.mxu0 0.0
        %4225 = vmatpush.msra.mxu0 0.0
        %4226 = vmatpush.msra.mxu0 0.0
        %4227 = vmatpush.msra.mxu0 0.0
        %4228 = vmatpush.msra.mxu0 0.0
        %v4229 = vand.u32 %v4207, 4294901760
        %4230 = vmatpush.msra.mxu0 %v4229
        %v4231 = vand.u32 %v4189, 4294901760
        %4232 = vmatpush.msra.mxu0 %v4231
        %v4233 = vand.u32 %v4198, 4294901760
        %4234 = vmatpush.msra.mxu0 %v4233
        %v4235 = vand.u32 %v4214, 4294901760
        %v4236 = vsub.f32 %v4214, %v4235
        %v4237 = vand.u32 %v4236, 4294901760
        %v4238 = vsub.f32 %v4236, %v4237
        %v4239 = vand.u32 %v4238, 4294901760
        %4240 = vmatmul.f32.gmra.mxu0 %v4239
        %v4241 = vpop.f32.mrf.mxu0
        %v4242 = vadd.f32 %v4211, %v4241
        %4243 = vdwg.mxu0
        %4244 = vmatpush.msra.mxu0 0.0
        %4245 = vmatpush.msra.mxu0 0.0
        %4246 = vmatpush.msra.mxu0 0.0
        %4247 = vmatpush.msra.mxu0 0.0
        %4248 = vmatpush.msra.mxu0 0.0
        %4249 = vmatpush.msra.mxu0 0.0
        %4250 = vmatpush.msra.mxu0 0.0
        %4251 = vmatpush.msra.mxu0 0.0
        %4252 = vmatpush.msra.mxu0 0.0
        %4253 = vmatpush.msra.mxu0 0.0
        %4254 = vmatpush.msra.mxu0 0.0
        %4255 = vmatpush.msra.mxu0 0.0
        %4256 = vmatpush.msra.mxu0 0.0
        %v4257 = vand.u32 %v4207, 4294901760
        %v4258 = vsub.f32 %v4207, %v4257
        %v4259 = vand.u32 %v4258, 4294901760
        %v4260 = vsub.f32 %v4258, %v4259
        %v4261 = vand.u32 %v4260, 4294901760
        %4262 = vmatpush.msra.mxu0 %v4261
        %v4263 = vand.u32 %v4189, 4294901760
        %v4264 = vsub.f32 %v4189, %v4263
        %v4265 = vand.u32 %v4264, 4294901760
        %v4266 = vsub.f32 %v4264, %v4265
        %v4267 = vand.u32 %v4266, 4294901760
        %4268 = vmatpush.msra.mxu0 %v4267
        %v4269 = vand.u32 %v4198, 4294901760
        %v4270 = vsub.f32 %v4198, %v4269
        %v4271 = vand.u32 %v4270, 4294901760
        %v4272 = vsub.f32 %v4270, %v4271
        %v4273 = vand.u32 %v4272, 4294901760
        %4274 = vmatpush.msra.mxu0 %v4273
        %v4275 = vand.u32 %v4214, 4294901760
        %4276 = vmatmul.f32.gmra.mxu0 %v4275
        %v4277 = vpop.f32.mrf.mxu0
        %v4278 = vadd.f32 %v4242, %v4277
        %4279 = vdwg.mxu0
        %4280 = vmatpush.msra.mxu0 0.0
        %4281 = vmatpush.msra.mxu0 0.0
        %4282 = vmatpush.msra.mxu0 0.0
        %4283 = vmatpush.msra.mxu0 0.0
        %4284 = vmatpush.msra.mxu0 0.0
        %4285 = vmatpush.msra.mxu0 0.0
        %4286 = vmatpush.msra.mxu0 0.0
        %4287 = vmatpush.msra.mxu0 0.0
        %4288 = vmatpush.msra.mxu0 0.0
        %4289 = vmatpush.msra.mxu0 0.0
        %4290 = vmatpush.msra.mxu0 0.0
        %4291 = vmatpush.msra.mxu0 0.0
        %4292 = vmatpush.msra.mxu0 0.0
        %v4293 = vand.u32 %v4207, 4294901760
        %v4294 = vsub.f32 %v4207, %v4293
        %4295 = vmatpush.msra.mxu0 %v4294
        %v4296 = vand.u32 %v4189, 4294901760
        %v4297 = vsub.f32 %v4189, %v4296
        %4298 = vmatpush.msra.mxu0 %v4297
        %v4299 = vand.u32 %v4198, 4294901760
        %v4300 = vsub.f32 %v4198, %v4299
        %4301 = vmatpush.msra.mxu0 %v4300
        %v4302 = vand.u32 %v4214, 4294901760
        %v4303 = vsub.f32 %v4214, %v4302
        %4304 = vmatmul.f32.gmra.mxu0 %v4303
        %v4305 = vpop.f32.mrf.mxu0
        %v4306 = vadd.f32 %v4278, %v4305
        %4307 = vdwg.mxu0
        %4308 = vmatpush.msra.mxu0 0.0
        %4309 = vmatpush.msra.mxu0 0.0
        %4310 = vmatpush.msra.mxu0 0.0
        %4311 = vmatpush.msra.mxu0 0.0
        %4312 = vmatpush.msra.mxu0 0.0
        %4313 = vmatpush.msra.mxu0 0.0
        %4314 = vmatpush.msra.mxu0 0.0
        %4315 = vmatpush.msra.mxu0 0.0
        %4316 = vmatpush.msra.mxu0 0.0
        %4317 = vmatpush.msra.mxu0 0.0
        %4318 = vmatpush.msra.mxu0 0.0
        %4319 = vmatpush.msra.mxu0 0.0
        %4320 = vmatpush.msra.mxu0 0.0
        %v4321 = vand.u32 %v4207, 4294901760
        %4322 = vmatpush.msra.mxu0 %v4321
        %v4323 = vand.u32 %v4189, 4294901760
        %4324 = vmatpush.msra.mxu0 %v4323
        %v4325 = vand.u32 %v4198, 4294901760
        %4326 = vmatpush.msra.mxu0 %v4325
        %v4327 = vand.u32 %v4214, 4294901760
        %v4328 = vsub.f32 %v4214, %v4327
        %v4329 = vand.u32 %v4328, 4294901760
        %4330 = vmatmul.f32.gmra.mxu0 %v4329
        %v4331 = vpop.f32.mrf.mxu0
        %v4332 = vadd.f32 %v4306, %v4331
        %4333 = vdwg.mxu0
        %4334 = vmatpush.msra.mxu0 0.0
        %4335 = vmatpush.msra.mxu0 0.0
        %4336 = vmatpush.msra.mxu0 0.0
        %4337 = vmatpush.msra.mxu0 0.0
        %4338 = vmatpush.msra.mxu0 0.0
        %4339 = vmatpush.msra.mxu0 0.0
        %4340 = vmatpush.msra.mxu0 0.0
        %4341 = vmatpush.msra.mxu0 0.0
        %4342 = vmatpush.msra.mxu0 0.0
        %4343 = vmatpush.msra.mxu0 0.0
        %4344 = vmatpush.msra.mxu0 0.0
        %4345 = vmatpush.msra.mxu0 0.0
        %4346 = vmatpush.msra.mxu0 0.0
        %v4347 = vand.u32 %v4207, 4294901760
        %v4348 = vsub.f32 %v4207, %v4347
        %v4349 = vand.u32 %v4348, 4294901760
        %4350 = vmatpush.msra.mxu0 %v4349
        %v4351 = vand.u32 %v4189, 4294901760
        %v4352 = vsub.f32 %v4189, %v4351
        %v4353 = vand.u32 %v4352, 4294901760
        %4354 = vmatpush.msra.mxu0 %v4353
        %v4355 = vand.u32 %v4198, 4294901760
        %v4356 = vsub.f32 %v4198, %v4355
        %v4357 = vand.u32 %v4356, 4294901760
        %4358 = vmatpush.msra.mxu0 %v4357
        %v4359 = vand.u32 %v4214, 4294901760
        %4360 = vmatmul.f32.gmra.mxu0 %v4359
        %v4361 = vpop.f32.mrf.mxu0
        %v4362 = vadd.f32 %v4332, %v4361
        %4363 = vdwg.mxu0
        %4364 = vmatpush.msra.mxu0 0.0
        %4365 = vmatpush.msra.mxu0 0.0
        %4366 = vmatpush.msra.mxu0 0.0
        %4367 = vmatpush.msra.mxu0 0.0
        %4368 = vmatpush.msra.mxu0 0.0
        %4369 = vmatpush.msra.mxu0 0.0
        %4370 = vmatpush.msra.mxu0 0.0
        %4371 = vmatpush.msra.mxu0 0.0
        %4372 = vmatpush.msra.mxu0 0.0
        %4373 = vmatpush.msra.mxu0 0.0
        %4374 = vmatpush.msra.mxu0 0.0
        %4375 = vmatpush.msra.mxu0 0.0
        %4376 = vmatpush.msra.mxu0 0.0
        %v4377 = vand.u32 %v4207, 4294901760
        %4378 = vmatpush.msra.mxu0 %v4377
        %v4379 = vand.u32 %v4189, 4294901760
        %4380 = vmatpush.msra.mxu0 %v4379
        %v4381 = vand.u32 %v4198, 4294901760
        %4382 = vmatpush.msra.mxu0 %v4381
        %v4383 = vand.u32 %v4214, 4294901760
        %4384 = vmatmul.f32.gmra.mxu0 %v4383
        %v4385 = vpop.f32.mrf.mxu0
        %v4386 = vadd.f32 %v4362, %v4385
        %4387 = vdwg.mxu0
        %vm4388 = vcmp.ge.f32.partialorder %v4386, 0.0
        %v4389 = vmul.f32 %v4386, 0.2
        %v4390 = vsel %vm4388, %v4386, %v4389
        %4391 = vset.pattern.permute.xlu0 1
        %4392 = vperm.xlu0 %4391, %v3447
        %v4393 = vpop.permute.xlu0 %4392
        %4395 = vrot.lane.b32.xlu0 %v3443, 104
        %v4396 = vpop.permute.xlu0 %4395
        %v4397 = vsel %vm3654, %v4396, 0
        %4399 = vmatpush.msra.mxu0 0.0
        %4400 = vmatpush.msra.mxu0 0.0
        %4401 = vmatpush.msra.mxu0 0.0
        %4402 = vmatpush.msra.mxu0 0.0
        %4403 = vmatpush.msra.mxu0 0.0
        %4404 = vmatpush.msra.mxu0 0.0
        %4405 = vmatpush.msra.mxu0 0.0
        %4406 = vmatpush.msra.mxu0 0.0
        %4407 = vmatpush.msra.mxu0 0.0
        %4408 = vmatpush.msra.mxu0 0.0
        %4409 = vmatpush.msra.mxu0 0.0
        %4410 = vmatpush.msra.mxu0 0.0
        %4411 = vmatpush.msra.mxu0 0.0
        %4412 = vmatpush.msra.mxu0 0.0
        %v4413 = vand.u32 %v4185, 4294901760
        %4414 = vmatpush.msra.mxu0 %v4413
        %v4415 = vand.u32 %v4390, 4294901760
        %4416 = vmatpush.msra.mxu0 %v4415
        %v4417 = vand.u32 %v4397, 4294901760
        %v4418 = vsub.f32 %v4397, %v4417
        %v4419 = vand.u32 %v4418, 4294901760
        %v4420 = vsub.f32 %v4418, %v4419
        %v4421 = vand.u32 %v4420, 4294901760
        %4422 = vmatmul.f32.gmra.mxu0 %v4421
        %v4423 = vpop.f32.mrf.mxu0
        %v4424 = vadd.f32 %v4393, %v4423
        %4425 = vdwg.mxu0
        %4426 = vmatpush.msra.mxu0 0.0
        %4427 = vmatpush.msra.mxu0 0.0
        %4428 = vmatpush.msra.mxu0 0.0
        %4429 = vmatpush.msra.mxu0 0.0
        %4430 = vmatpush.msra.mxu0 0.0
        %4431 = vmatpush.msra.mxu0 0.0
        %4432 = vmatpush.msra.mxu0 0.0
        %4433 = vmatpush.msra.mxu0 0.0
        %4434 = vmatpush.msra.mxu0 0.0
        %4435 = vmatpush.msra.mxu0 0.0
        %4436 = vmatpush.msra.mxu0 0.0
        %4437 = vmatpush.msra.mxu0 0.0
        %4438 = vmatpush.msra.mxu0 0.0
        %4439 = vmatpush.msra.mxu0 0.0
        %v4440 = vand.u32 %v4185, 4294901760
        %v4441 = vsub.f32 %v4185, %v4440
        %v4442 = vand.u32 %v4441, 4294901760
        %v4443 = vsub.f32 %v4441, %v4442
        %v4444 = vand.u32 %v4443, 4294901760
        %4445 = vmatpush.msra.mxu0 %v4444
        %v4446 = vand.u32 %v4390, 4294901760
        %v4447 = vsub.f32 %v4390, %v4446
        %v4448 = vand.u32 %v4447, 4294901760
        %v4449 = vsub.f32 %v4447, %v4448
        %v4450 = vand.u32 %v4449, 4294901760
        %4451 = vmatpush.msra.mxu0 %v4450
        %v4452 = vand.u32 %v4397, 4294901760
        %4453 = vmatmul.f32.gmra.mxu0 %v4452
        %v4454 = vpop.f32.mrf.mxu0
        %v4455 = vadd.f32 %v4424, %v4454
        %4456 = vdwg.mxu0
        %4457 = vmatpush.msra.mxu0 0.0
        %4458 = vmatpush.msra.mxu0 0.0
        %4459 = vmatpush.msra.mxu0 0.0
        %4460 = vmatpush.msra.mxu0 0.0
        %4461 = vmatpush.msra.mxu0 0.0
        %4462 = vmatpush.msra.mxu0 0.0
        %4463 = vmatpush.msra.mxu0 0.0
        %4464 = vmatpush.msra.mxu0 0.0
        %4465 = vmatpush.msra.mxu0 0.0
        %4466 = vmatpush.msra.mxu0 0.0
        %4467 = vmatpush.msra.mxu0 0.0
        %4468 = vmatpush.msra.mxu0 0.0
        %4469 = vmatpush.msra.mxu0 0.0
        %4470 = vmatpush.msra.mxu0 0.0
        %v4471 = vand.u32 %v4185, 4294901760
        %v4472 = vsub.f32 %v4185, %v4471
        %4473 = vmatpush.msra.mxu0 %v4472
        %v4474 = vand.u32 %v4390, 4294901760
        %v4475 = vsub.f32 %v4390, %v4474
        %4476 = vmatpush.msra.mxu0 %v4475
        %v4477 = vand.u32 %v4397, 4294901760
        %v4478 = vsub.f32 %v4397, %v4477
        %4479 = vmatmul.f32.gmra.mxu0 %v4478
        %v4480 = vpop.f32.mrf.mxu0
        %v4481 = vadd.f32 %v4455, %v4480
        %4482 = vdwg.mxu0
        %4483 = vmatpush.msra.mxu0 0.0
        %4484 = vmatpush.msra.mxu0 0.0
        %4485 = vmatpush.msra.mxu0 0.0
        %4486 = vmatpush.msra.mxu0 0.0
        %4487 = vmatpush.msra.mxu0 0.0
        %4488 = vmatpush.msra.mxu0 0.0
        %4489 = vmatpush.msra.mxu0 0.0
        %4490 = vmatpush.msra.mxu0 0.0
        %4491 = vmatpush.msra.mxu0 0.0
        %4492 = vmatpush.msra.mxu0 0.0
        %4493 = vmatpush.msra.mxu0 0.0
        %4494 = vmatpush.msra.mxu0 0.0
        %4495 = vmatpush.msra.mxu0 0.0
        %4496 = vmatpush.msra.mxu0 0.0
        %v4497 = vand.u32 %v4185, 4294901760
        %4498 = vmatpush.msra.mxu0 %v4497
        %v4499 = vand.u32 %v4390, 4294901760
        %4500 = vmatpush.msra.mxu0 %v4499
        %v4501 = vand.u32 %v4397, 4294901760
        %v4502 = vsub.f32 %v4397, %v4501
        %v4503 = vand.u32 %v4502, 4294901760
        %4504 = vmatmul.f32.gmra.mxu0 %v4503
        %v4505 = vpop.f32.mrf.mxu0
        %v4506 = vadd.f32 %v4481, %v4505
        %4507 = vdwg.mxu0
        %4508 = vmatpush.msra.mxu0 0.0
        %4509 = vmatpush.msra.mxu0 0.0
        %4510 = vmatpush.msra.mxu0 0.0
        %4511 = vmatpush.msra.mxu0 0.0
        %4512 = vmatpush.msra.mxu0 0.0
        %4513 = vmatpush.msra.mxu0 0.0
        %4514 = vmatpush.msra.mxu0 0.0
        %4515 = vmatpush.msra.mxu0 0.0
        %4516 = vmatpush.msra.mxu0 0.0
        %4517 = vmatpush.msra.mxu0 0.0
        %4518 = vmatpush.msra.mxu0 0.0
        %4519 = vmatpush.msra.mxu0 0.0
        %4520 = vmatpush.msra.mxu0 0.0
        %4521 = vmatpush.msra.mxu0 0.0
        %v4522 = vand.u32 %v4185, 4294901760
        %v4523 = vsub.f32 %v4185, %v4522
        %v4524 = vand.u32 %v4523, 4294901760
        %4525 = vmatpush.msra.mxu0 %v4524
        %v4526 = vand.u32 %v4390, 4294901760
        %v4527 = vsub.f32 %v4390, %v4526
        %v4528 = vand.u32 %v4527, 4294901760
        %4529 = vmatpush.msra.mxu0 %v4528
        %v4530 = vand.u32 %v4397, 4294901760
        %4531 = vmatmul.f32.gmra.mxu0 %v4530
        %v4532 = vpop.f32.mrf.mxu0
        %v4533 = vadd.f32 %v4506, %v4532
        %4534 = vdwg.mxu0
        %4535 = vmatpush.msra.mxu0 0.0
        %4536 = vmatpush.msra.mxu0 0.0
        %4537 = vmatpush.msra.mxu0 0.0
        %4538 = vmatpush.msra.mxu0 0.0
        %4539 = vmatpush.msra.mxu0 0.0
        %4540 = vmatpush.msra.mxu0 0.0
        %4541 = vmatpush.msra.mxu0 0.0
        %4542 = vmatpush.msra.mxu0 0.0
        %4543 = vmatpush.msra.mxu0 0.0
        %4544 = vmatpush.msra.mxu0 0.0
        %4545 = vmatpush.msra.mxu0 0.0
        %4546 = vmatpush.msra.mxu0 0.0
        %4547 = vmatpush.msra.mxu0 0.0
        %4548 = vmatpush.msra.mxu0 0.0
        %v4549 = vand.u32 %v4185, 4294901760
        %4550 = vmatpush.msra.mxu0 %v4549
        %v4551 = vand.u32 %v4390, 4294901760
        %4552 = vmatpush.msra.mxu0 %v4551
        %v4553 = vand.u32 %v4397, 4294901760
        %4554 = vmatmul.f32.gmra.mxu0 %v4553
        %v4555 = vpop.f32.mrf.mxu0
        %v4556 = vadd.f32 %v4533, %v4555
        %4557 = vdwg.mxu0
        %vm4558 = vcmp.ge.f32.partialorder %v4556, 0.0
        %v4559 = vmul.f32 %v4556, 0.2
        %v4560 = vsel %vm4558, %v4556, %v4559
        %4562 = vset.pattern.permute.xlu0 0
        %4563 = vperm.xlu0 %4562, %v4560
        %v4564 = vpop.permute.xlu0 %4563
        %4566 = vrot.lane.b32.xlu0 %v4560, 27
        %v4567 = vpop.permute.xlu0 %4566
        %v4569 = vsel %vm2240, %v4564, %v4567
        %4570 = vset.pattern.permute.xlu0 63
        %4571 = vperm.xlu0 %4570, %v4560
        %v4572 = vpop.permute.xlu0 %4571
        %4574 = vrot.lane.b32.xlu0 %v4560, 101
        %v4575 = vpop.permute.xlu0 %4574
        %vm4577 = vcmask 302080
        %v4578 = vsel %vm4577, %v4575, %v4572
        %4580 = vset.pattern.permute.xlu0 0
        %4581 = vperm.xlu0 %4580, %v3448
        %v4582 = vpop.permute.xlu0 %4581
        %v4585 = vsel %vm3469, %v3444, 0
        %4587 = vmatpush.msra.mxu0 0.0
        %4588 = vmatpush.msra.mxu0 0.0
        %4589 = vmatpush.msra.mxu0 0.0
        %4590 = vmatpush.msra.mxu0 0.0
        %4591 = vmatpush.msra.mxu0 0.0
        %4592 = vmatpush.msra.mxu0 0.0
        %4593 = vmatpush.msra.mxu0 0.0
        %4594 = vmatpush.msra.mxu0 0.0
        %4595 = vmatpush.msra.mxu0 0.0
        %4596 = vmatpush.msra.mxu0 0.0
        %4597 = vmatpush.msra.mxu0 0.0
        %4598 = vmatpush.msra.mxu0 0.0
        %4599 = vmatpush.msra.mxu0 0.0
        %v4600 = vand.u32 %v4578, 4294901760
        %4601 = vmatpush.msra.mxu0 %v4600
        %v4602 = vand.u32 %v4560, 4294901760
        %4603 = vmatpush.msra.mxu0 %v4602
        %v4604 = vand.u32 %v4569, 4294901760
        %4605 = vmatpush.msra.mxu0 %v4604
        %v4606 = vand.u32 %v4585, 4294901760
        %v4607 = vsub.f32 %v4585, %v4606
        %v4608 = vand.u32 %v4607, 4294901760
        %v4609 = vsub.f32 %v4607, %v4608
        %v4610 = vand.u32 %v4609, 4294901760
        %4611 = vmatmul.f32.gmra.mxu0 %v4610
        %v4612 = vpop.f32.mrf.mxu0
        %v4613 = vadd.f32 %v4582, %v4612
        %4614 = vdwg.mxu0
        %4615 = vmatpush.msra.mxu0 0.0
        %4616 = vmatpush.msra.mxu0 0.0
        %4617 = vmatpush.msra.mxu0 0.0
        %4618 = vmatpush.msra.mxu0 0.0
        %4619 = vmatpush.msra.mxu0 0.0
        %4620 = vmatpush.msra.mxu0 0.0
        %4621 = vmatpush.msra.mxu0 0.0
        %4622 = vmatpush.msra.mxu0 0.0
        %4623 = vmatpush.msra.mxu0 0.0
        %4624 = vmatpush.msra.mxu0 0.0
        %4625 = vmatpush.msra.mxu0 0.0
        %4626 = vmatpush.msra.mxu0 0.0
        %4627 = vmatpush.msra.mxu0 0.0
        %v4628 = vand.u32 %v4578, 4294901760
        %v4629 = vsub.f32 %v4578, %v4628
        %v4630 = vand.u32 %v4629, 4294901760
        %v4631 = vsub.f32 %v4629, %v4630
        %v4632 = vand.u32 %v4631, 4294901760
        %4633 = vmatpush.msra.mxu0 %v4632
        %v4634 = vand.u32 %v4560, 4294901760
        %v4635 = vsub.f32 %v4560, %v4634
        %v4636 = vand.u32 %v4635, 4294901760
        %v4637 = vsub.f32 %v4635, %v4636
        %v4638 = vand.u32 %v4637, 4294901760
        %4639 = vmatpush.msra.mxu0 %v4638
        %v4640 = vand.u32 %v4569, 4294901760
        %v4641 = vsub.f32 %v4569, %v4640
        %v4642 = vand.u32 %v4641, 4294901760
        %v4643 = vsub.f32 %v4641, %v4642
        %v4644 = vand.u32 %v4643, 4294901760
        %4645 = vmatpush.msra.mxu0 %v4644
        %v4646 = vand.u32 %v4585, 4294901760
        %4647 = vmatmul.f32.gmra.mxu0 %v4646
        %v4648 = vpop.f32.mrf.mxu0
        %v4649 = vadd.f32 %v4613, %v4648
        %4650 = vdwg.mxu0
        %4651 = vmatpush.msra.mxu0 0.0
        %4652 = vmatpush.msra.mxu0 0.0
        %4653 = vmatpush.msra.mxu0 0.0
        %4654 = vmatpush.msra.mxu0 0.0
        %4655 = vmatpush.msra.mxu0 0.0
        %4656 = vmatpush.msra.mxu0 0.0
        %4657 = vmatpush.msra.mxu0 0.0
        %4658 = vmatpush.msra.mxu0 0.0
        %4659 = vmatpush.msra.mxu0 0.0
        %4660 = vmatpush.msra.mxu0 0.0
        %4661 = vmatpush.msra.mxu0 0.0
        %4662 = vmatpush.msra.mxu0 0.0
        %4663 = vmatpush.msra.mxu0 0.0
        %v4664 = vand.u32 %v4578, 4294901760
        %v4665 = vsub.f32 %v4578, %v4664
        %4666 = vmatpush.msra.mxu0 %v4665
        %v4667 = vand.u32 %v4560, 4294901760
        %v4668 = vsub.f32 %v4560, %v4667
        %4669 = vmatpush.msra.mxu0 %v4668
        %v4670 = vand.u32 %v4569, 4294901760
        %v4671 = vsub.f32 %v4569, %v4670
        %4672 = vmatpush.msra.mxu0 %v4671
        %v4673 = vand.u32 %v4585, 4294901760
        %v4674 = vsub.f32 %v4585, %v4673
        %4675 = vmatmul.f32.gmra.mxu0 %v4674
        %v4676 = vpop.f32.mrf.mxu0
        %v4677 = vadd.f32 %v4649, %v4676
        %4678 = vdwg.mxu0
        %4679 = vmatpush.msra.mxu0 0.0
        %4680 = vmatpush.msra.mxu0 0.0
        %4681 = vmatpush.msra.mxu0 0.0
        %4682 = vmatpush.msra.mxu0 0.0
        %4683 = vmatpush.msra.mxu0 0.0
        %4684 = vmatpush.msra.mxu0 0.0
        %4685 = vmatpush.msra.mxu0 0.0
        %4686 = vmatpush.msra.mxu0 0.0
        %4687 = vmatpush.msra.mxu0 0.0
        %4688 = vmatpush.msra.mxu0 0.0
        %4689 = vmatpush.msra.mxu0 0.0
        %4690 = vmatpush.msra.mxu0 0.0
        %4691 = vmatpush.msra.mxu0 0.0
        %v4692 = vand.u32 %v4578, 4294901760
        %4693 = vmatpush.msra.mxu0 %v4692
        %v4694 = vand.u32 %v4560, 4294901760
        %4695 = vmatpush.msra.mxu0 %v4694
        %v4696 = vand.u32 %v4569, 4294901760
        %4697 = vmatpush.msra.mxu0 %v4696
        %v4698 = vand.u32 %v4585, 4294901760
        %v4699 = vsub.f32 %v4585, %v4698
        %v4700 = vand.u32 %v4699, 4294901760
        %4701 = vmatmul.f32.gmra.mxu0 %v4700
        %v4702 = vpop.f32.mrf.mxu0
        %v4703 = vadd.f32 %v4677, %v4702
        %4704 = vdwg.mxu0
        %4705 = vmatpush.msra.mxu0 0.0
        %4706 = vmatpush.msra.mxu0 0.0
        %4707 = vmatpush.msra.mxu0 0.0
        %4708 = vmatpush.msra.mxu0 0.0
        %4709 = vmatpush.msra.mxu0 0.0
        %4710 = vmatpush.msra.mxu0 0.0
        %4711 = vmatpush.msra.mxu0 0.0
        %4712 = vmatpush.msra.mxu0 0.0
        %4713 = vmatpush.msra.mxu0 0.0
        %4714 = vmatpush.msra.mxu0 0.0
        %4715 = vmatpush.msra.mxu0 0.0
        %4716 = vmatpush.msra.mxu0 0.0
        %4717 = vmatpush.msra.mxu0 0.0
        %v4718 = vand.u32 %v4578, 4294901760
        %v4719 = vsub.f32 %v4578, %v4718
        %v4720 = vand.u32 %v4719, 4294901760
        %4721 = vmatpush.msra.mxu0 %v4720
        %v4722 = vand.u32 %v4560, 4294901760
        %v4723 = vsub.f32 %v4560, %v4722
        %v4724 = vand.u32 %v4723, 4294901760
        %4725 = vmatpush.msra.mxu0 %v4724
        %v4726 = vand.u32 %v4569, 4294901760
        %v4727 = vsub.f32 %v4569, %v4726
        %v4728 = vand.u32 %v4727, 4294901760
        %4729 = vmatpush.msra.mxu0 %v4728
        %v4730 = vand.u32 %v4585, 4294901760
        %4731 = vmatmul.f32.gmra.mxu0 %v4730
        %v4732 = vpop.f32.mrf.mxu0
        %v4733 = vadd.f32 %v4703, %v4732
        %4734 = vdwg.mxu0
        %4735 = vmatpush.msra.mxu0 0.0
        %4736 = vmatpush.msra.mxu0 0.0
        %4737 = vmatpush.msra.mxu0 0.0
        %4738 = vmatpush.msra.mxu0 0.0
        %4739 = vmatpush.msra.mxu0 0.0
        %4740 = vmatpush.msra.mxu0 0.0
        %4741 = vmatpush.msra.mxu0 0.0
        %4742 = vmatpush.msra.mxu0 0.0
        %4743 = vmatpush.msra.mxu0 0.0
        %4744 = vmatpush.msra.mxu0 0.0
        %4745 = vmatpush.msra.mxu0 0.0
        %4746 = vmatpush.msra.mxu0 0.0
        %4747 = vmatpush.msra.mxu0 0.0
        %v4748 = vand.u32 %v4578, 4294901760
        %4749 = vmatpush.msra.mxu0 %v4748
        %v4750 = vand.u32 %v4560, 4294901760
        %4751 = vmatpush.msra.mxu0 %v4750
        %v4752 = vand.u32 %v4569, 4294901760
        %4753 = vmatpush.msra.mxu0 %v4752
        %v4754 = vand.u32 %v4585, 4294901760
        %4755 = vmatmul.f32.gmra.mxu0 %v4754
        %v4756 = vpop.f32.mrf.mxu0
        %v4757 = vadd.f32 %v4733, %v4756
        %4758 = vdwg.mxu0
        %vm4759 = vcmp.ge.f32.partialorder %v4757, 0.0
        %v4760 = vmul.f32 %v4757, 0.2
        %v4761 = vsel %vm4759, %v4757, %v4760
        %4762 = vset.pattern.permute.xlu0 1
        %4763 = vperm.xlu0 %4762, %v3448
        %v4764 = vpop.permute.xlu0 %4763
        %4766 = vrot.lane.b32.xlu0 %v3444, 104
        %v4767 = vpop.permute.xlu0 %4766
        %v4768 = vsel %vm3654, %v4767, 0
        %4770 = vmatpush.msra.mxu0 0.0
        %4771 = vmatpush.msra.mxu0 0.0
        %4772 = vmatpush.msra.mxu0 0.0
        %4773 = vmatpush.msra.mxu0 0.0
        %4774 = vmatpush.msra.mxu0 0.0
        %4775 = vmatpush.msra.mxu0 0.0
        %4776 = vmatpush.msra.mxu0 0.0
        %4777 = vmatpush.msra.mxu0 0.0
        %4778 = vmatpush.msra.mxu0 0.0
        %4779 = vmatpush.msra.mxu0 0.0
        %4780 = vmatpush.msra.mxu0 0.0
        %4781 = vmatpush.msra.mxu0 0.0
        %4782 = vmatpush.msra.mxu0 0.0
        %4783 = vmatpush.msra.mxu0 0.0
        %v4784 = vand.u32 %v4556, 4294901760
        %4785 = vmatpush.msra.mxu0 %v4784
        %v4786 = vand.u32 %v4761, 4294901760
        %4787 = vmatpush.msra.mxu0 %v4786
        %v4788 = vand.u32 %v4768, 4294901760
        %v4789 = vsub.f32 %v4768, %v4788
        %v4790 = vand.u32 %v4789, 4294901760
        %v4791 = vsub.f32 %v4789, %v4790
        %v4792 = vand.u32 %v4791, 4294901760
        %4793 = vmatmul.f32.gmra.mxu0 %v4792
        %v4794 = vpop.f32.mrf.mxu0
        %v4795 = vadd.f32 %v4764, %v4794
        %4796 = vdwg.mxu0
        %4797 = vmatpush.msra.mxu0 0.0
        %4798 = vmatpush.msra.mxu0 0.0
        %4799 = vmatpush.msra.mxu0 0.0
        %4800 = vmatpush.msra.mxu0 0.0
        %4801 = vmatpush.msra.mxu0 0.0
        %4802 = vmatpush.msra.mxu0 0.0
        %4803 = vmatpush.msra.mxu0 0.0
        %4804 = vmatpush.msra.mxu0 0.0
        %4805 = vmatpush.msra.mxu0 0.0
        %4806 = vmatpush.msra.mxu0 0.0
        %4807 = vmatpush.msra.mxu0 0.0
        %4808 = vmatpush.msra.mxu0 0.0
        %4809 = vmatpush.msra.mxu0 0.0
        %4810 = vmatpush.msra.mxu0 0.0
        %v4811 = vand.u32 %v4556, 4294901760
        %v4812 = vsub.f32 %v4556, %v4811
        %v4813 = vand.u32 %v4812, 4294901760
        %v4814 = vsub.f32 %v4812, %v4813
        %v4815 = vand.u32 %v4814, 4294901760
        %4816 = vmatpush.msra.mxu0 %v4815
        %v4817 = vand.u32 %v4761, 4294901760
        %v4818 = vsub.f32 %v4761, %v4817
        %v4819 = vand.u32 %v4818, 4294901760
        %v4820 = vsub.f32 %v4818, %v4819
        %v4821 = vand.u32 %v4820, 4294901760
        %4822 = vmatpush.msra.mxu0 %v4821
        %v4823 = vand.u32 %v4768, 4294901760
        %4824 = vmatmul.f32.gmra.mxu0 %v4823
        %v4825 = vpop.f32.mrf.mxu0
        %v4826 = vadd.f32 %v4795, %v4825
        %4827 = vdwg.mxu0
        %4828 = vmatpush.msra.mxu0 0.0
        %4829 = vmatpush.msra.mxu0 0.0
        %4830 = vmatpush.msra.mxu0 0.0
        %4831 = vmatpush.msra.mxu0 0.0
        %4832 = vmatpush.msra.mxu0 0.0
        %4833 = vmatpush.msra.mxu0 0.0
        %4834 = vmatpush.msra.mxu0 0.0
        %4835 = vmatpush.msra.mxu0 0.0
        %4836 = vmatpush.msra.mxu0 0.0
        %4837 = vmatpush.msra.mxu0 0.0
        %4838 = vmatpush.msra.mxu0 0.0
        %4839 = vmatpush.msra.mxu0 0.0
        %4840 = vmatpush.msra.mxu0 0.0
        %4841 = vmatpush.msra.mxu0 0.0
        %v4842 = vand.u32 %v4556, 4294901760
        %v4843 = vsub.f32 %v4556, %v4842
        %4844 = vmatpush.msra.mxu0 %v4843
        %v4845 = vand.u32 %v4761, 4294901760
        %v4846 = vsub.f32 %v4761, %v4845
        %4847 = vmatpush.msra.mxu0 %v4846
        %v4848 = vand.u32 %v4768, 4294901760
        %v4849 = vsub.f32 %v4768, %v4848
        %4850 = vmatmul.f32.gmra.mxu0 %v4849
        %v4851 = vpop.f32.mrf.mxu0
        %v4852 = vadd.f32 %v4826, %v4851
        %4853 = vdwg.mxu0
        %4854 = vmatpush.msra.mxu0 0.0
        %4855 = vmatpush.msra.mxu0 0.0
        %4856 = vmatpush.msra.mxu0 0.0
        %4857 = vmatpush.msra.mxu0 0.0
        %4858 = vmatpush.msra.mxu0 0.0
        %4859 = vmatpush.msra.mxu0 0.0
        %4860 = vmatpush.msra.mxu0 0.0
        %4861 = vmatpush.msra.mxu0 0.0
        %4862 = vmatpush.msra.mxu0 0.0
        %4863 = vmatpush.msra.mxu0 0.0
        %4864 = vmatpush.msra.mxu0 0.0
        %4865 = vmatpush.msra.mxu0 0.0
        %4866 = vmatpush.msra.mxu0 0.0
        %4867 = vmatpush.msra.mxu0 0.0
        %v4868 = vand.u32 %v4556, 4294901760
        %4869 = vmatpush.msra.mxu0 %v4868
        %v4870 = vand.u32 %v4761, 4294901760
        %4871 = vmatpush.msra.mxu0 %v4870
        %v4872 = vand.u32 %v4768, 4294901760
        %v4873 = vsub.f32 %v4768, %v4872
        %v4874 = vand.u32 %v4873, 4294901760
        %4875 = vmatmul.f32.gmra.mxu0 %v4874
        %v4876 = vpop.f32.mrf.mxu0
        %v4877 = vadd.f32 %v4852, %v4876
        %4878 = vdwg.mxu0
        %4879 = vmatpush.msra.mxu0 0.0
        %4880 = vmatpush.msra.mxu0 0.0
        %4881 = vmatpush.msra.mxu0 0.0
        %4882 = vmatpush.msra.mxu0 0.0
        %4883 = vmatpush.msra.mxu0 0.0
        %4884 = vmatpush.msra.mxu0 0.0
        %4885 = vmatpush.msra.mxu0 0.0
        %4886 = vmatpush.msra.mxu0 0.0
        %4887 = vmatpush.msra.mxu0 0.0
        %4888 = vmatpush.msra.mxu0 0.0
        %4889 = vmatpush.msra.mxu0 0.0
        %4890 = vmatpush.msra.mxu0 0.0
        %4891 = vmatpush.msra.mxu0 0.0
        %4892 = vmatpush.msra.mxu0 0.0
        %v4893 = vand.u32 %v4556, 4294901760
        %v4894 = vsub.f32 %v4556, %v4893
        %v4895 = vand.u32 %v4894, 4294901760
        %4896 = vmatpush.msra.mxu0 %v4895
        %v4897 = vand.u32 %v4761, 4294901760
        %v4898 = vsub.f32 %v4761, %v4897
        %v4899 = vand.u32 %v4898, 4294901760
        %4900 = vmatpush.msra.mxu0 %v4899
        %v4901 = vand.u32 %v4768, 4294901760
        %4902 = vmatmul.f32.gmra.mxu0 %v4901
        %v4903 = vpop.f32.mrf.mxu0
        %v4904 = vadd.f32 %v4877, %v4903
        %4905 = vdwg.mxu0
        %4906 = vmatpush.msra.mxu0 0.0
        %4907 = vmatpush.msra.mxu0 0.0
        %4908 = vmatpush.msra.mxu0 0.0
        %4909 = vmatpush.msra.mxu0 0.0
        %4910 = vmatpush.msra.mxu0 0.0
        %4911 = vmatpush.msra.mxu0 0.0
        %4912 = vmatpush.msra.mxu0 0.0
        %4913 = vmatpush.msra.mxu0 0.0
        %4914 = vmatpush.msra.mxu0 0.0
        %4915 = vmatpush.msra.mxu0 0.0
        %4916 = vmatpush.msra.mxu0 0.0
        %4917 = vmatpush.msra.mxu0 0.0
        %4918 = vmatpush.msra.mxu0 0.0
        %4919 = vmatpush.msra.mxu0 0.0
        %v4920 = vand.u32 %v4556, 4294901760
        %4921 = vmatpush.msra.mxu0 %v4920
        %v4922 = vand.u32 %v4761, 4294901760
        %4923 = vmatpush.msra.mxu0 %v4922
        %v4924 = vand.u32 %v4768, 4294901760
        %4925 = vmatmul.f32.gmra.mxu0 %v4924
        %v4926 = vpop.f32.mrf.mxu0
        %v4927 = vadd.f32 %v4904, %v4926
        %4928 = vdwg.mxu0
        %v4929 = vld [vmem:[%s512] sm:$0xff]
        %vm4930 = vcmp.ge.f32.partialorder %v4927, 0.0
        %v4931 = vmul.f32 %v4927, 0.2
        %v4932 = vsel %vm4930, %v4927, %v4931
        %4935 = vrot.lane.b32.xlu0 %v4932, 1
        %v4936 = vpop.permute.xlu0 %4935
        %4937 = vrot.lane.b32.xlu0 %v4929, 1
        %v4938 = vpop.permute.xlu0 %4937
        %v4941 = vsel %vm632, 0.0, %v4936
        %v4942 = vsel %vm632, 0.0, %v4938
        %4943 = vrot.lane.b32.xlu0 %v4932, 127
        %v4944 = vpop.permute.xlu0 %4943
        %4945 = vrot.lane.b32.xlu0 %v4929, 127
        %v4946 = vpop.permute.xlu0 %4945
        %v4949 = vsel %vm3462, %v4944, 0.0
        %v4950 = vsel %vm3462, %v4946, 0.0
        %v4952 = vsel %vm654, %v3449, 0
        %4954 = vmatpush.msra.mxu0 0.0
        %4955 = vmatpush.msra.mxu0 0.0
        %4956 = vmatpush.msra.mxu0 0.0
        %4957 = vmatpush.msra.mxu0 0.0
        %4958 = vmatpush.msra.mxu0 0.0
        %4959 = vmatpush.msra.mxu0 0.0
        %4960 = vmatpush.msra.mxu0 0.0
        %4961 = vmatpush.msra.mxu0 0.0
        %4962 = vmatpush.msra.mxu0 0.0
        %4963 = vmatpush.msra.mxu0 0.0
        %v4964 = vand.u32 %v4950, 4294901760
        %4965 = vmatpush.msra.mxu0 %v4964
        %v4966 = vand.u32 %v4949, 4294901760
        %4967 = vmatpush.msra.mxu0 %v4966
        %v4968 = vand.u32 %v4929, 4294901760
        %4969 = vmatpush.msra.mxu0 %v4968
        %v4970 = vand.u32 %v4932, 4294901760
        %4971 = vmatpush.msra.mxu0 %v4970
        %v4972 = vand.u32 %v4942, 4294901760
        %4973 = vmatpush.msra.mxu0 %v4972
        %v4974 = vand.u32 %v4941, 4294901760
        %4975 = vmatpush.msra.mxu0 %v4974
        %v4976 = vand.u32 %v4952, 4294901760
        %v4977 = vsub.f32 %v4952, %v4976
        %v4978 = vand.u32 %v4977, 4294901760
        %v4979 = vsub.f32 %v4977, %v4978
        %v4980 = vand.u32 %v4979, 4294901760
        %4981 = vmatmul.f32.gmra.mxu0 %v4980
        %v4982 = vpop.f32.mrf.mxu0
        %v4983 = vadd.f32 0.0, %v4982
        %4984 = vdwg.mxu0
        %4985 = vmatpush.msra.mxu0 0.0
        %4986 = vmatpush.msra.mxu0 0.0
        %4987 = vmatpush.msra.mxu0 0.0
        %4988 = vmatpush.msra.mxu0 0.0
        %4989 = vmatpush.msra.mxu0 0.0
        %4990 = vmatpush.msra.mxu0 0.0
        %4991 = vmatpush.msra.mxu0 0.0
        %4992 = vmatpush.msra.mxu0 0.0
        %4993 = vmatpush.msra.mxu0 0.0
        %4994 = vmatpush.msra.mxu0 0.0
        %v4995 = vand.u32 %v4950, 4294901760
        %v4996 = vsub.f32 %v4950, %v4995
        %v4997 = vand.u32 %v4996, 4294901760
        %v4998 = vsub.f32 %v4996, %v4997
        %v4999 = vand.u32 %v4998, 4294901760
        %5000 = vmatpush.msra.mxu0 %v4999
        %v5001 = vand.u32 %v4949, 4294901760
        %v5002 = vsub.f32 %v4949, %v5001
        %v5003 = vand.u32 %v5002, 4294901760
        %v5004 = vsub.f32 %v5002, %v5003
        %v5005 = vand.u32 %v5004, 4294901760
        %5006 = vmatpush.msra.mxu0 %v5005
        %v5007 = vand.u32 %v4929, 4294901760
        %v5008 = vsub.f32 %v4929, %v5007
        %v5009 = vand.u32 %v5008, 4294901760
        %v5010 = vsub.f32 %v5008, %v5009
        %v5011 = vand.u32 %v5010, 4294901760
        %5012 = vmatpush.msra.mxu0 %v5011
        %v5013 = vand.u32 %v4932, 4294901760
        %v5014 = vsub.f32 %v4932, %v5013
        %v5015 = vand.u32 %v5014, 4294901760
        %v5016 = vsub.f32 %v5014, %v5015
        %v5017 = vand.u32 %v5016, 4294901760
        %5018 = vmatpush.msra.mxu0 %v5017
        %v5019 = vand.u32 %v4942, 4294901760
        %v5020 = vsub.f32 %v4942, %v5019
        %v5021 = vand.u32 %v5020, 4294901760
        %v5022 = vsub.f32 %v5020, %v5021
        %v5023 = vand.u32 %v5022, 4294901760
        %5024 = vmatpush.msra.mxu0 %v5023
        %v5025 = vand.u32 %v4941, 4294901760
        %v5026 = vsub.f32 %v4941, %v5025
        %v5027 = vand.u32 %v5026, 4294901760
        %v5028 = vsub.f32 %v5026, %v5027
        %v5029 = vand.u32 %v5028, 4294901760
        %5030 = vmatpush.msra.mxu0 %v5029
        %v5031 = vand.u32 %v4952, 4294901760
        %5032 = vmatmul.f32.gmra.mxu0 %v5031
        %v5033 = vpop.f32.mrf.mxu0
        %v5034 = vadd.f32 %v4983, %v5033
        %5035 = vdwg.mxu0
        %5036 = vmatpush.msra.mxu0 0.0
        %5037 = vmatpush.msra.mxu0 0.0
        %5038 = vmatpush.msra.mxu0 0.0
        %5039 = vmatpush.msra.mxu0 0.0
        %5040 = vmatpush.msra.mxu0 0.0
        %5041 = vmatpush.msra.mxu0 0.0
        %5042 = vmatpush.msra.mxu0 0.0
        %5043 = vmatpush.msra.mxu0 0.0
        %5044 = vmatpush.msra.mxu0 0.0
        %5045 = vmatpush.msra.mxu0 0.0
        %v5046 = vand.u32 %v4950, 4294901760
        %v5047 = vsub.f32 %v4950, %v5046
        %5048 = vmatpush.msra.mxu0 %v5047
        %v5049 = vand.u32 %v4949, 4294901760
        %v5050 = vsub.f32 %v4949, %v5049
        %5051 = vmatpush.msra.mxu0 %v5050
        %v5052 = vand.u32 %v4929, 4294901760
        %v5053 = vsub.f32 %v4929, %v5052
        %5054 = vmatpush.msra.mxu0 %v5053
        %v5055 = vand.u32 %v4932, 4294901760
        %v5056 = vsub.f32 %v4932, %v5055
        %5057 = vmatpush.msra.mxu0 %v5056
        %v5058 = vand.u32 %v4942, 4294901760
        %v5059 = vsub.f32 %v4942, %v5058
        %5060 = vmatpush.msra.mxu0 %v5059
        %v5061 = vand.u32 %v4941, 4294901760
        %v5062 = vsub.f32 %v4941, %v5061
        %5063 = vmatpush.msra.mxu0 %v5062
        %v5064 = vand.u32 %v4952, 4294901760
        %v5065 = vsub.f32 %v4952, %v5064
        %5066 = vmatmul.f32.gmra.mxu0 %v5065
        %v5067 = vpop.f32.mrf.mxu0
        %v5068 = vadd.f32 %v5034, %v5067
        %5069 = vdwg.mxu0
        %5070 = vmatpush.msra.mxu0 0.0
        %5071 = vmatpush.msra.mxu0 0.0
        %5072 = vmatpush.msra.mxu0 0.0
        %5073 = vmatpush.msra.mxu0 0.0
        %5074 = vmatpush.msra.mxu0 0.0
        %5075 = vmatpush.msra.mxu0 0.0
        %5076 = vmatpush.msra.mxu0 0.0
        %5077 = vmatpush.msra.mxu0 0.0
        %5078 = vmatpush.msra.mxu0 0.0
        %5079 = vmatpush.msra.mxu0 0.0
        %v5080 = vand.u32 %v4950, 4294901760
        %5081 = vmatpush.msra.mxu0 %v5080
        %v5082 = vand.u32 %v4949, 4294901760
        %5083 = vmatpush.msra.mxu0 %v5082
        %v5084 = vand.u32 %v4929, 4294901760
        %5085 = vmatpush.msra.mxu0 %v5084
        %v5086 = vand.u32 %v4932, 4294901760
        %5087 = vmatpush.msra.mxu0 %v5086
        %v5088 = vand.u32 %v4942, 4294901760
        %5089 = vmatpush.msra.mxu0 %v5088
        %v5090 = vand.u32 %v4941, 4294901760
        %5091 = vmatpush.msra.mxu0 %v5090
        %v5092 = vand.u32 %v4952, 4294901760
        %v5093 = vsub.f32 %v4952, %v5092
        %v5094 = vand.u32 %v5093, 4294901760
        %5095 = vmatmul.f32.gmra.mxu0 %v5094
        %v5096 = vpop.f32.mrf.mxu0
        %v5097 = vadd.f32 %v5068, %v5096
        %5098 = vdwg.mxu0
        %5099 = vmatpush.msra.mxu0 0.0
        %5100 = vmatpush.msra.mxu0 0.0
        %5101 = vmatpush.msra.mxu0 0.0
        %5102 = vmatpush.msra.mxu0 0.0
        %5103 = vmatpush.msra.mxu0 0.0
        %5104 = vmatpush.msra.mxu0 0.0
        %5105 = vmatpush.msra.mxu0 0.0
        %5106 = vmatpush.msra.mxu0 0.0
        %5107 = vmatpush.msra.mxu0 0.0
        %5108 = vmatpush.msra.mxu0 0.0
        %v5109 = vand.u32 %v4950, 4294901760
        %v5110 = vsub.f32 %v4950, %v5109
        %v5111 = vand.u32 %v5110, 4294901760
        %5112 = vmatpush.msra.mxu0 %v5111
        %v5113 = vand.u32 %v4949, 4294901760
        %v5114 = vsub.f32 %v4949, %v5113
        %v5115 = vand.u32 %v5114, 4294901760
        %5116 = vmatpush.msra.mxu0 %v5115
        %v5117 = vand.u32 %v4929, 4294901760
        %v5118 = vsub.f32 %v4929, %v5117
        %v5119 = vand.u32 %v5118, 4294901760
        %5120 = vmatpush.msra.mxu0 %v5119
        %v5121 = vand.u32 %v4932, 4294901760
        %v5122 = vsub.f32 %v4932, %v5121
        %v5123 = vand.u32 %v5122, 4294901760
        %5124 = vmatpush.msra.mxu0 %v5123
        %v5125 = vand.u32 %v4942, 4294901760
        %v5126 = vsub.f32 %v4942, %v5125
        %v5127 = vand.u32 %v5126, 4294901760
        %5128 = vmatpush.msra.mxu0 %v5127
        %v5129 = vand.u32 %v4941, 4294901760
        %v5130 = vsub.f32 %v4941, %v5129
        %v5131 = vand.u32 %v5130, 4294901760
        %5132 = vmatpush.msra.mxu0 %v5131
        %v5133 = vand.u32 %v4952, 4294901760
        %5134 = vmatmul.f32.gmra.mxu0 %v5133
        %v5135 = vpop.f32.mrf.mxu0
        %v5136 = vadd.f32 %v5097, %v5135
        %5137 = vdwg.mxu0
        %5138 = vmatpush.msra.mxu0 0.0
        %5139 = vmatpush.msra.mxu0 0.0
        %5140 = vmatpush.msra.mxu0 0.0
        %5141 = vmatpush.msra.mxu0 0.0
        %5142 = vmatpush.msra.mxu0 0.0
        %5143 = vmatpush.msra.mxu0 0.0
        %5144 = vmatpush.msra.mxu0 0.0
        %5145 = vmatpush.msra.mxu0 0.0
        %5146 = vmatpush.msra.mxu0 0.0
        %5147 = vmatpush.msra.mxu0 0.0
        %v5148 = vand.u32 %v4950, 4294901760
        %5149 = vmatpush.msra.mxu0 %v5148
        %v5150 = vand.u32 %v4949, 4294901760
        %5151 = vmatpush.msra.mxu0 %v5150
        %v5152 = vand.u32 %v4929, 4294901760
        %5153 = vmatpush.msra.mxu0 %v5152
        %v5154 = vand.u32 %v4932, 4294901760
        %5155 = vmatpush.msra.mxu0 %v5154
        %v5156 = vand.u32 %v4942, 4294901760
        %5157 = vmatpush.msra.mxu0 %v5156
        %v5158 = vand.u32 %v4941, 4294901760
        %5159 = vmatpush.msra.mxu0 %v5158
        %v5160 = vand.u32 %v4952, 4294901760
        %5161 = vmatmul.f32.gmra.mxu0 %v5160
        %v5162 = vpop.f32.mrf.mxu0
        %v5163 = vadd.f32 %v5136, %v5162
        %5164 = vdwg.mxu0
        %v5166 = vrot.slane %v5163, 4
        %5167 = vrot.lane.b32.xlu0 %v5166, 64
        %v5168 = vpop.permute.xlu0 %5167
        %v5170 = vsel %vm3200, %v5163, %v5168
        %v5171 = vadd.s32 %v3133, 32
        %v5172 = vadd.s32 %v3133, 40
        %v5173 = vadd.s32 %v3133, 48
        %v5174 = vadd.s32 %v3133, 56
        %v5175 = vmul.u32 %v5171, 2
        %v5176 = vmul.u32 %v5172, 2
        %v5177 = vmul.u32 %v5173, 2
        %v5178 = vmul.u32 %v5174, 2
        %v5179 = vadd.s32 %v5175, 1
        %v5180 = vadd.s32 %v5176, 1
        %v5181 = vadd.s32 %v5177, 1
        %v5182 = vadd.s32 %v5178, 1
        %5183 = vset.pattern.permute.xlu0 0
        %5184 = vperm.xlu0 %5183, %v5175
        %v5185 = vpop.permute.xlu0 %5184
        %5186 = vset.pattern.permute.xlu0 0
        %5187 = vperm.xlu0 %5186, %v5176
        %v5188 = vpop.permute.xlu0 %5187
        %5189 = vset.pattern.permute.xlu0 0
        %5190 = vperm.xlu0 %5189, %v5177
        %v5191 = vpop.permute.xlu0 %5190
        %5192 = vset.pattern.permute.xlu0 0
        %5193 = vperm.xlu0 %5192, %v5178
        %v5194 = vpop.permute.xlu0 %5193
        %5195 = vset.pattern.permute.xlu0 0
        %5196 = vperm.xlu0 %5195, %v5179
        %v5197 = vpop.permute.xlu0 %5196
        %5198 = vset.pattern.permute.xlu0 0
        %5199 = vperm.xlu0 %5198, %v5180
        %v5200 = vpop.permute.xlu0 %5199
        %5201 = vset.pattern.permute.xlu0 0
        %5202 = vperm.xlu0 %5201, %v5181
        %v5203 = vpop.permute.xlu0 %5202
        %5204 = vset.pattern.permute.xlu0 0
        %5205 = vperm.xlu0 %5204, %v5182
        %v5206 = vpop.permute.xlu0 %5205
        %vm5207 = vcmp.eq.s32.totalorder %v3146, %v5185
        %vm5208 = vcmp.eq.s32.totalorder %v3146, %v5188
        %vm5209 = vcmp.eq.s32.totalorder %v3146, %v5191
        %vm5210 = vcmp.eq.s32.totalorder %v3146, %v5194
        %vm5211 = vcmp.eq.s32.totalorder %v3146, %v5197
        %vm5212 = vcmp.eq.s32.totalorder %v3146, %v5200
        %vm5213 = vcmp.eq.s32.totalorder %v3146, %v5203
        %vm5214 = vcmp.eq.s32.totalorder %v3146, %v5206
        %v5215 = vsel %vm5207, 1, 0
        %v5216 = vsel %vm5208, 1, 0
        %v5217 = vsel %vm5209, 1, 0
        %v5218 = vsel %vm5210, 1, 0
        %v5219 = vsel %vm5211, 1, 0
        %v5220 = vsel %vm5212, 1, 0
        %v5221 = vsel %vm5213, 1, 0
        %v5222 = vsel %vm5214, 1, 0
        %v5223 = vcvt.s32.f32 %v5215
        %v5224 = vcvt.s32.f32 %v5216
        %v5225 = vcvt.s32.f32 %v5217
        %v5226 = vcvt.s32.f32 %v5218
        %v5227 = vcvt.s32.f32 %v5219
        %v5228 = vcvt.s32.f32 %v5220
        %v5229 = vcvt.s32.f32 %v5221
        %v5230 = vcvt.s32.f32 %v5222
        %5232 = vset.pattern.permute.xlu0 0
        %5233 = vperm.xlu0 %5232, %v3450
        %v5234 = vpop.permute.xlu0 %5233
        %v5236 = vand.u32 %v5230, 4294901760
        %5237 = vmatpush.msra.mxu0 %v5236
        %v5238 = vand.u32 %v5229, 4294901760
        %5239 = vmatpush.msra.mxu0 %v5238
        %v5240 = vand.u32 %v5228, 4294901760
        %5241 = vmatpush.msra.mxu0 %v5240
        %v5242 = vand.u32 %v5227, 4294901760
        %5243 = vmatpush.msra.mxu0 %v5242
        %v5244 = vand.u32 %v3194, 4294901760
        %5245 = vmatpush.msra.mxu0 %v5244
        %v5246 = vand.u32 %v3193, 4294901760
        %5247 = vmatpush.msra.mxu0 %v5246
        %v5248 = vand.u32 %v3192, 4294901760
        %5249 = vmatpush.msra.mxu0 %v5248
        %v5250 = vand.u32 %v3191, 4294901760
        %5251 = vmatpush.msra.mxu0 %v5250
        %v5252 = vand.u32 %v5226, 4294901760
        %5253 = vmatpush.msra.mxu0 %v5252
        %v5254 = vand.u32 %v5225, 4294901760
        %5255 = vmatpush.msra.mxu0 %v5254
        %v5256 = vand.u32 %v5224, 4294901760
        %5257 = vmatpush.msra.mxu0 %v5256
        %v5258 = vand.u32 %v5223, 4294901760
        %5259 = vmatpush.msra.mxu0 %v5258
        %v5260 = vand.u32 %v3190, 4294901760
        %5261 = vmatpush.msra.mxu0 %v5260
        %v5262 = vand.u32 %v3189, 4294901760
        %5263 = vmatpush.msra.mxu0 %v5262
        %v5264 = vand.u32 %v3188, 4294901760
        %5265 = vmatpush.msra.mxu0 %v5264
        %v5266 = vand.u32 %v3187, 4294901760
        %5267 = vmatpush.msra.mxu0 %v5266
        %v5268 = vand.u32 %v5170, 4294901760
        %v5269 = vsub.f32 %v5170, %v5268
        %v5270 = vand.u32 %v5269, 4294901760
        %v5271 = vsub.f32 %v5269, %v5270
        %v5272 = vand.u32 %v5271, 4294901760
        %5273 = vmatmul.f32.gmra.mxu0 %v5272
        %v5274 = vpop.f32.mrf.mxu0
        %v5275 = vadd.f32 %v5234, %v5274
        %5276 = vdwg.mxu0
        %v5277 = vand.u32 %v5230, 4294901760
        %v5278 = vsub.f32 %v5230, %v5277
        %v5279 = vand.u32 %v5278, 4294901760
        %v5280 = vsub.f32 %v5278, %v5279
        %v5281 = vand.u32 %v5280, 4294901760
        %5282 = vmatpush.msra.mxu0 %v5281
        %v5283 = vand.u32 %v5229, 4294901760
        %v5284 = vsub.f32 %v5229, %v5283
        %v5285 = vand.u32 %v5284, 4294901760
        %v5286 = vsub.f32 %v5284, %v5285
        %v5287 = vand.u32 %v5286, 4294901760
        %5288 = vmatpush.msra.mxu0 %v5287
        %v5289 = vand.u32 %v5228, 4294901760
        %v5290 = vsub.f32 %v5228, %v5289
        %v5291 = vand.u32 %v5290, 4294901760
        %v5292 = vsub.f32 %v5290, %v5291
        %v5293 = vand.u32 %v5292, 4294901760
        %5294 = vmatpush.msra.mxu0 %v5293
        %v5295 = vand.u32 %v5227, 4294901760
        %v5296 = vsub.f32 %v5227, %v5295
        %v5297 = vand.u32 %v5296, 4294901760
        %v5298 = vsub.f32 %v5296, %v5297
        %v5299 = vand.u32 %v5298, 4294901760
        %5300 = vmatpush.msra.mxu0 %v5299
        %v5301 = vand.u32 %v3194, 4294901760
        %v5302 = vsub.f32 %v3194, %v5301
        %v5303 = vand.u32 %v5302, 4294901760
        %v5304 = vsub.f32 %v5302, %v5303
        %v5305 = vand.u32 %v5304, 4294901760
        %5306 = vmatpush.msra.mxu0 %v5305
        %v5307 = vand.u32 %v3193, 4294901760
        %v5308 = vsub.f32 %v3193, %v5307
        %v5309 = vand.u32 %v5308, 4294901760
        %v5310 = vsub.f32 %v5308, %v5309
        %v5311 = vand.u32 %v5310, 4294901760
        %5312 = vmatpush.msra.mxu0 %v5311
        %v5313 = vand.u32 %v3192, 4294901760
        %v5314 = vsub.f32 %v3192, %v5313
        %v5315 = vand.u32 %v5314, 4294901760
        %v5316 = vsub.f32 %v5314, %v5315
        %v5317 = vand.u32 %v5316, 4294901760
        %5318 = vmatpush.msra.mxu0 %v5317
        %v5319 = vand.u32 %v3191, 4294901760
        %v5320 = vsub.f32 %v3191, %v5319
        %v5321 = vand.u32 %v5320, 4294901760
        %v5322 = vsub.f32 %v5320, %v5321
        %v5323 = vand.u32 %v5322, 4294901760
        %5324 = vmatpush.msra.mxu0 %v5323
        %v5325 = vand.u32 %v5226, 4294901760
        %v5326 = vsub.f32 %v5226, %v5325
        %v5327 = vand.u32 %v5326, 4294901760
        %v5328 = vsub.f32 %v5326, %v5327
        %v5329 = vand.u32 %v5328, 4294901760
        %5330 = vmatpush.msra.mxu0 %v5329
        %v5331 = vand.u32 %v5225, 4294901760
        %v5332 = vsub.f32 %v5225, %v5331
        %v5333 = vand.u32 %v5332, 4294901760
        %v5334 = vsub.f32 %v5332, %v5333
        %v5335 = vand.u32 %v5334, 4294901760
        %5336 = vmatpush.msra.mxu0 %v5335
        %v5337 = vand.u32 %v5224, 4294901760
        %v5338 = vsub.f32 %v5224, %v5337
        %v5339 = vand.u32 %v5338, 4294901760
        %v5340 = vsub.f32 %v5338, %v5339
        %v5341 = vand.u32 %v5340, 4294901760
        %5342 = vmatpush.msra.mxu0 %v5341
        %v5343 = vand.u32 %v5223, 4294901760
        %v5344 = vsub.f32 %v5223, %v5343
        %v5345 = vand.u32 %v5344, 4294901760
        %v5346 = vsub.f32 %v5344, %v5345
        %v5347 = vand.u32 %v5346, 4294901760
        %5348 = vmatpush.msra.mxu0 %v5347
        %v5349 = vand.u32 %v3190, 4294901760
        %v5350 = vsub.f32 %v3190, %v5349
        %v5351 = vand.u32 %v5350, 4294901760
        %v5352 = vsub.f32 %v5350, %v5351
        %v5353 = vand.u32 %v5352, 4294901760
        %5354 = vmatpush.msra.mxu0 %v5353
        %v5355 = vand.u32 %v3189, 4294901760
        %v5356 = vsub.f32 %v3189, %v5355
        %v5357 = vand.u32 %v5356, 4294901760
        %v5358 = vsub.f32 %v5356, %v5357
        %v5359 = vand.u32 %v5358, 4294901760
        %5360 = vmatpush.msra.mxu0 %v5359
        %v5361 = vand.u32 %v3188, 4294901760
        %v5362 = vsub.f32 %v3188, %v5361
        %v5363 = vand.u32 %v5362, 4294901760
        %v5364 = vsub.f32 %v5362, %v5363
        %v5365 = vand.u32 %v5364, 4294901760
        %5366 = vmatpush.msra.mxu0 %v5365
        %v5367 = vand.u32 %v3187, 4294901760
        %v5368 = vsub.f32 %v3187, %v5367
        %v5369 = vand.u32 %v5368, 4294901760
        %v5370 = vsub.f32 %v5368, %v5369
        %v5371 = vand.u32 %v5370, 4294901760
        %5372 = vmatpush.msra.mxu0 %v5371
        %v5373 = vand.u32 %v5170, 4294901760
        %5374 = vmatmul.f32.gmra.mxu0 %v5373
        %v5375 = vpop.f32.mrf.mxu0
        %v5376 = vadd.f32 %v5275, %v5375
        %5377 = vdwg.mxu0
        %v5378 = vand.u32 %v5230, 4294901760
        %v5379 = vsub.f32 %v5230, %v5378
        %5380 = vmatpush.msra.mxu0 %v5379
        %v5381 = vand.u32 %v5229, 4294901760
        %v5382 = vsub.f32 %v5229, %v5381
        %5383 = vmatpush.msra.mxu0 %v5382
        %v5384 = vand.u32 %v5228, 4294901760
        %v5385 = vsub.f32 %v5228, %v5384
        %5386 = vmatpush.msra.mxu0 %v5385
        %v5387 = vand.u32 %v5227, 4294901760
        %v5388 = vsub.f32 %v5227, %v5387
        %5389 = vmatpush.msra.mxu0 %v5388
        %v5390 = vand.u32 %v3194, 4294901760
        %v5391 = vsub.f32 %v3194, %v5390
        %5392 = vmatpush.msra.mxu0 %v5391
        %v5393 = vand.u32 %v3193, 4294901760
        %v5394 = vsub.f32 %v3193, %v5393
        %5395 = vmatpush.msra.mxu0 %v5394
        %v5396 = vand.u32 %v3192, 4294901760
        %v5397 = vsub.f32 %v3192, %v5396
        %5398 = vmatpush.msra.mxu0 %v5397
        %v5399 = vand.u32 %v3191, 4294901760
        %v5400 = vsub.f32 %v3191, %v5399
        %5401 = vmatpush.msra.mxu0 %v5400
        %v5402 = vand.u32 %v5226, 4294901760
        %v5403 = vsub.f32 %v5226, %v5402
        %5404 = vmatpush.msra.mxu0 %v5403
        %v5405 = vand.u32 %v5225, 4294901760
        %v5406 = vsub.f32 %v5225, %v5405
        %5407 = vmatpush.msra.mxu0 %v5406
        %v5408 = vand.u32 %v5224, 4294901760
        %v5409 = vsub.f32 %v5224, %v5408
        %5410 = vmatpush.msra.mxu0 %v5409
        %v5411 = vand.u32 %v5223, 4294901760
        %v5412 = vsub.f32 %v5223, %v5411
        %5413 = vmatpush.msra.mxu0 %v5412
        %v5414 = vand.u32 %v3190, 4294901760
        %v5415 = vsub.f32 %v3190, %v5414
        %5416 = vmatpush.msra.mxu0 %v5415
        %v5417 = vand.u32 %v3189, 4294901760
        %v5418 = vsub.f32 %v3189, %v5417
        %5419 = vmatpush.msra.mxu0 %v5418
        %v5420 = vand.u32 %v3188, 4294901760
        %v5421 = vsub.f32 %v3188, %v5420
        %5422 = vmatpush.msra.mxu0 %v5421
        %v5423 = vand.u32 %v3187, 4294901760
        %v5424 = vsub.f32 %v3187, %v5423
        %5425 = vmatpush.msra.mxu0 %v5424
        %v5426 = vand.u32 %v5170, 4294901760
        %v5427 = vsub.f32 %v5170, %v5426
        %5428 = vmatmul.f32.gmra.mxu0 %v5427
        %v5429 = vpop.f32.mrf.mxu0
        %v5430 = vadd.f32 %v5376, %v5429
        %5431 = vdwg.mxu0
        %v5432 = vand.u32 %v5230, 4294901760
        %5433 = vmatpush.msra.mxu0 %v5432
        %v5434 = vand.u32 %v5229, 4294901760
        %5435 = vmatpush.msra.mxu0 %v5434
        %v5436 = vand.u32 %v5228, 4294901760
        %5437 = vmatpush.msra.mxu0 %v5436
        %v5438 = vand.u32 %v5227, 4294901760
        %5439 = vmatpush.msra.mxu0 %v5438
        %v5440 = vand.u32 %v3194, 4294901760
        %5441 = vmatpush.msra.mxu0 %v5440
        %v5442 = vand.u32 %v3193, 4294901760
        %5443 = vmatpush.msra.mxu0 %v5442
        %v5444 = vand.u32 %v3192, 4294901760
        %5445 = vmatpush.msra.mxu0 %v5444
        %v5446 = vand.u32 %v3191, 4294901760
        %5447 = vmatpush.msra.mxu0 %v5446
        %v5448 = vand.u32 %v5226, 4294901760
        %5449 = vmatpush.msra.mxu0 %v5448
        %v5450 = vand.u32 %v5225, 4294901760
        %5451 = vmatpush.msra.mxu0 %v5450
        %v5452 = vand.u32 %v5224, 4294901760
        %5453 = vmatpush.msra.mxu0 %v5452
        %v5454 = vand.u32 %v5223, 4294901760
        %5455 = vmatpush.msra.mxu0 %v5454
        %v5456 = vand.u32 %v3190, 4294901760
        %5457 = vmatpush.msra.mxu0 %v5456
        %v5458 = vand.u32 %v3189, 4294901760
        %5459 = vmatpush.msra.mxu0 %v5458
        %v5460 = vand.u32 %v3188, 4294901760
        %5461 = vmatpush.msra.mxu0 %v5460
        %v5462 = vand.u32 %v3187, 4294901760
        %5463 = vmatpush.msra.mxu0 %v5462
        %v5464 = vand.u32 %v5170, 4294901760
        %v5465 = vsub.f32 %v5170, %v5464
        %v5466 = vand.u32 %v5465, 4294901760
        %5467 = vmatmul.f32.gmra.mxu0 %v5466
        %v5468 = vpop.f32.mrf.mxu0
        %v5469 = vadd.f32 %v5430, %v5468
        %5470 = vdwg.mxu0
        %v5471 = vand.u32 %v5230, 4294901760
        %v5472 = vsub.f32 %v5230, %v5471
        %v5473 = vand.u32 %v5472, 4294901760
        %5474 = vmatpush.msra.mxu0 %v5473
        %v5475 = vand.u32 %v5229, 4294901760
        %v5476 = vsub.f32 %v5229, %v5475
        %v5477 = vand.u32 %v5476, 4294901760
        %5478 = vmatpush.msra.mxu0 %v5477
        %v5479 = vand.u32 %v5228, 4294901760
        %v5480 = vsub.f32 %v5228, %v5479
        %v5481 = vand.u32 %v5480, 4294901760
        %5482 = vmatpush.msra.mxu0 %v5481
        %v5483 = vand.u32 %v5227, 4294901760
        %v5484 = vsub.f32 %v5227, %v5483
        %v5485 = vand.u32 %v5484, 4294901760
        %5486 = vmatpush.msra.mxu0 %v5485
        %v5487 = vand.u32 %v3194, 4294901760
        %v5488 = vsub.f32 %v3194, %v5487
        %v5489 = vand.u32 %v5488, 4294901760
        %5490 = vmatpush.msra.mxu0 %v5489
        %v5491 = vand.u32 %v3193, 4294901760
        %v5492 = vsub.f32 %v3193, %v5491
        %v5493 = vand.u32 %v5492, 4294901760
        %5494 = vmatpush.msra.mxu0 %v5493
        %v5495 = vand.u32 %v3192, 4294901760
        %v5496 = vsub.f32 %v3192, %v5495
        %v5497 = vand.u32 %v5496, 4294901760
        %5498 = vmatpush.msra.mxu0 %v5497
        %v5499 = vand.u32 %v3191, 4294901760
        %v5500 = vsub.f32 %v3191, %v5499
        %v5501 = vand.u32 %v5500, 4294901760
        %5502 = vmatpush.msra.mxu0 %v5501
        %v5503 = vand.u32 %v5226, 4294901760
        %v5504 = vsub.f32 %v5226, %v5503
        %v5505 = vand.u32 %v5504, 4294901760
        %5506 = vmatpush.msra.mxu0 %v5505
        %v5507 = vand.u32 %v5225, 4294901760
        %v5508 = vsub.f32 %v5225, %v5507
        %v5509 = vand.u32 %v5508, 4294901760
        %5510 = vmatpush.msra.mxu0 %v5509
        %v5511 = vand.u32 %v5224, 4294901760
        %v5512 = vsub.f32 %v5224, %v5511
        %v5513 = vand.u32 %v5512, 4294901760
        %5514 = vmatpush.msra.mxu0 %v5513
        %v5515 = vand.u32 %v5223, 4294901760
        %v5516 = vsub.f32 %v5223, %v5515
        %v5517 = vand.u32 %v5516, 4294901760
        %5518 = vmatpush.msra.mxu0 %v5517
        %v5519 = vand.u32 %v3190, 4294901760
        %v5520 = vsub.f32 %v3190, %v5519
        %v5521 = vand.u32 %v5520, 4294901760
        %5522 = vmatpush.msra.mxu0 %v5521
        %v5523 = vand.u32 %v3189, 4294901760
        %v5524 = vsub.f32 %v3189, %v5523
        %v5525 = vand.u32 %v5524, 4294901760
        %5526 = vmatpush.msra.mxu0 %v5525
        %v5527 = vand.u32 %v3188, 4294901760
        %v5528 = vsub.f32 %v3188, %v5527
        %v5529 = vand.u32 %v5528, 4294901760
        %5530 = vmatpush.msra.mxu0 %v5529
        %v5531 = vand.u32 %v3187, 4294901760
        %v5532 = vsub.f32 %v3187, %v5531
        %v5533 = vand.u32 %v5532, 4294901760
        %5534 = vmatpush.msra.mxu0 %v5533
        %v5535 = vand.u32 %v5170, 4294901760
        %5536 = vmatmul.f32.gmra.mxu0 %v5535
        %v5537 = vpop.f32.mrf.mxu0
        %v5538 = vadd.f32 %v5469, %v5537
        %5539 = vdwg.mxu0
        %v5540 = vand.u32 %v5230, 4294901760
        %5541 = vmatpush.msra.mxu0 %v5540
        %v5542 = vand.u32 %v5229, 4294901760
        %5543 = vmatpush.msra.mxu0 %v5542
        %v5544 = vand.u32 %v5228, 4294901760
        %5545 = vmatpush.msra.mxu0 %v5544
        %v5546 = vand.u32 %v5227, 4294901760
        %5547 = vmatpush.msra.mxu0 %v5546
        %v5548 = vand.u32 %v3194, 4294901760
        %5549 = vmatpush.msra.mxu0 %v5548
        %v5550 = vand.u32 %v3193, 4294901760
        %5551 = vmatpush.msra.mxu0 %v5550
        %v5552 = vand.u32 %v3192, 4294901760
        %5553 = vmatpush.msra.mxu0 %v5552
        %v5554 = vand.u32 %v3191, 4294901760
        %5555 = vmatpush.msra.mxu0 %v5554
        %v5556 = vand.u32 %v5226, 4294901760
        %5557 = vmatpush.msra.mxu0 %v5556
        %v5558 = vand.u32 %v5225, 4294901760
        %5559 = vmatpush.msra.mxu0 %v5558
        %v5560 = vand.u32 %v5224, 4294901760
        %5561 = vmatpush.msra.mxu0 %v5560
        %v5562 = vand.u32 %v5223, 4294901760
        %5563 = vmatpush.msra.mxu0 %v5562
        %v5564 = vand.u32 %v3190, 4294901760
        %5565 = vmatpush.msra.mxu0 %v5564
        %v5566 = vand.u32 %v3189, 4294901760
        %5567 = vmatpush.msra.mxu0 %v5566
        %v5568 = vand.u32 %v3188, 4294901760
        %5569 = vmatpush.msra.mxu0 %v5568
        %v5570 = vand.u32 %v3187, 4294901760
        %5571 = vmatpush.msra.mxu0 %v5570
        %v5572 = vand.u32 %v5170, 4294901760
        %5573 = vmatmul.f32.gmra.mxu0 %v5572
        %v5574 = vpop.f32.mrf.mxu0
        %v5575 = vadd.f32 %v5538, %v5574
        %5576 = vdwg.mxu0
        %5577 = vst [vmem:[%s596] sm:$0xf] %v5575
        %s5578 = sand.u32 %s289, 1
        %s5579 = scalar_lea.sflag [#allocation4], %s5578
        %s5580 = sand.u32 %s289, 1
        %s5581 = smul.addr %s5580, 4
        %s5582 = scalar_lea.vmem [#allocation19], %s5581
        // Predicated region
        $region105: #{_lambda_.1} parent=63 // pred_check
          %p5583 = pneg %p299
        $region106: #{_lambda_.1} parent=63 // pred_check_branch
          %5585 = sbr.rel (%p5583) target = $region108
        $region107: #{_lambda_.1} parent=63 // pred_region
          %5587 = vsyncadd %s5579, 0
          %s5588 = smul.addr %s35, 4
          %s5589 = scalar_lea.hbm %s11, %s5588
          %s5591 = sshll.u32 %s5582, 4
          %s5592 = int_to_ptr.vmem [resolvable:$true] %s5591
          %s5593 = sshll.u32 %s5589, 4
          %s5594 = int_to_ptr.hbm [resolvable:$true] %s5593
          %5596 = dma.vmem_to_hbm [thread:$0]  %s5592, 64, %s5594, %s5579
        $region108: #{_lambda_.1} parent=63 // pred_fallthru
          _
      $region64: #{_lambda_.1} parent=5 // pred_fallthru
        _
      %p5597 = scmp.le.s32.totalorder 2, %s30
      // Predicated region
      $region109: #{_lambda_.1} parent=5 // pred_check
        %p5598 = pneg %p5597
      $region110: #{_lambda_.1} parent=5 // pred_check_branch
        %5600 = sbr.rel (%p5598) target = $region112
      $region111: #{_lambda_.1} parent=5 // pred_region
        %s5601 = ssub.s32 %s30, 2
        // Predicated region
        $region113: #{_lambda_.1} parent=111 // pred_check
          %p5602 = pneg %p305
        $region114: #{_lambda_.1} parent=111 // pred_check_branch
          %5604 = sbr.rel (%p5602) target = $region116
        $region115: #{_lambda_.1} parent=111 // pred_region
          %s5605 = sand.u32 %s290, 1
          %s5606 = scalar_lea.sflag [#allocation4], %s5605
          %s5607 = sand.u32 %s290, 1
          %s5608 = smul.addr %s5607, 4
          %s5609 = scalar_lea.vmem [#allocation19], %s5608
          %5611 = dma.done %s5606, 64
        $region116: #{_lambda_.1} parent=111 // pred_fallthru
          _
      $region112: #{_lambda_.1} parent=5 // pred_fallthru
        _
    $region6: #{_lambda_.1} parent=1 // loop_footer
      %s34 = sadd.s32 1, %s30
    $region7: #{_lambda_.1} parent=1 // loop_footer_branch
      %29 = sbr.rel target = $region3
    $region8: #{_lambda_.1} parent=1 // loop_exit
      _
    %5612 = vsyncpa [#allocation3], 1
    %s5613 = scalar_lea.sflag [#allocation3], 1
    %5614 = vsyncpa %s5613, 1
    %5615 = vsyncpa [#allocation6], 1
    %s5616 = scalar_lea.sflag [#allocation6], 1
    %5617 = vsyncpa %s5616, 1
    %5618 = vsyncpa [#allocation9], 1
    %5619 = vsyncpa [#allocation12], 1
    %5620 = vsyncpa [#allocation15], 1
    %5621 = vsyncpa [#allocation18], 1
    %5622 = vsyncpa [#allocation4], 1
    %s5623 = scalar_lea.sflag [#allocation4], 1
    %5624 = vsyncpa %s5623, 1

</llo_original>
